<compile_context>
chip_gen: v7x
topology: tpu7x:2x2x1
jax: 0.10.0
libtpu: 0.0.40
codegen_flags: <defaults>
</compile_context>

<pallas_src>
import functools

import jax
import jax.numpy as jnp
from jax import lax
from jax.experimental import pallas as pl
from jax.experimental.pallas import tpu as pltpu


# --------------------------- Pallas conv kernel -----------------------------
#
# 3x3 / stride-2 / pad-1 conv (+ folded bias) as 9 accumulated MXU matmuls.
#
#   planes_ref : [2, 2, Ho+1, Wo+1, Cin]  (bf16)  space-to-depth of padded x
#   w_ref      : [3, 3, Cin, TN]          (bf16)  per-tap weight tile
#   bias_ref   : [1, TN]                  (f32)
#   out_ref    : [Ho*Wo, TN]
#
# planes[py, px, m, n, :] = x_padded[2*m + py, 2*n + px, :], so the conv tap
# (ky, kx) for every output pixel (oy, ox) is the contiguous window
#   planes[ky % 2, kx % 2, oy + ky//2, ox + kx//2, :].

def _conv3x3_s2_kernel(planes_ref, w_ref, bias_ref, out_ref, *, ho, wo):
    cin = planes_ref.shape[-1]
    tn = w_ref.shape[-1]
    acc = jnp.zeros((ho * wo, tn), jnp.float32)
    for ky in range(3):                       # fully unrolled: 9 static taps
        py, qy = ky % 2, ky // 2
        for kx in range(3):
            px, qx = kx % 2, kx // 2
            tap = planes_ref[py, px, qy:qy + ho, qx:qx + wo, :]   # [ho,wo,cin]
            # wo is a multiple of 8 for GOT-OCR2 shapes -> layout-trivial merge
            tap2d = tap.reshape(ho * wo, cin)                      # [M, K] bf16
            acc = acc + jnp.dot(tap2d, w_ref[ky, kx],
                                preferred_element_type=jnp.float32)
    out_ref[...] = (acc + bias_ref[...]).astype(out_ref.dtype)


# ------------------------------- wrappers ------------------------------------

def _pick_cout_tile(cout):
    for tn in (512, 256, 128):
        if cout % tn == 0:
            return tn
    return cout


def _space_to_depth_pad(x_nhwc):
    """[B,H,W,C] -> [B,2,2,H/2+1,W/2+1,C] parity planes of the 1-padded input."""
    b, h, w, c = x_nhwc.shape
    xp = jnp.pad(x_nhwc, ((0, 0), (1, 1), (1, 1), (0, 0)))
    xp = xp.reshape(b, (h + 2) // 2, 2, (w + 2) // 2, 2, c)
    return xp.transpose(0, 2, 4, 1, 3, 5)


def _conv3x3_s2(planes, w_tap, bias, out_dtype):
    """planes: [B,2,2,Ho+1,Wo+1,Cin]; w_tap: [3,3,Cin,Cout]; bias: [1,Cout]."""
    b, _, _, hop1, wop1, cin = planes.shape
    ho, wo = hop1 - 1, wop1 - 1
    cout = w_tap.shape[-1]
    tn = _pick_cout_tile(cout)
    m = ho * wo

    kernel = functools.partial(_conv3x3_s2_kernel, ho=ho, wo=wo)
    flops = 2 * b * m * 9 * cin * cout
    bytes_accessed = (planes.size * planes.dtype.itemsize
                      + w_tap.size * w_tap.dtype.itemsize
                      + bias.size * bias.dtype.itemsize
                      + b * m * cout * jnp.dtype(out_dtype).itemsize)

    return pl.pallas_call(
        kernel,
        out_shape=jax.ShapeDtypeStruct((b, m, cout), out_dtype),
        grid=(b, cout // tn),
        in_specs=[
            # full per-batch parity planes, resident across Cout tiles
            pl.BlockSpec((None, 2, 2, hop1, wop1, cin),
                         lambda i, j: (i, 0, 0, 0, 0, 0)),
            pl.BlockSpec((3, 3, cin, tn), lambda i, j: (0, 0, 0, j)),
            pl.BlockSpec((1, tn), lambda i, j: (0, j)),
        ],
        out_specs=pl.BlockSpec((None, m, tn), lambda i, j: (i, 0, j)),
        compiler_params=pltpu.CompilerParams(
            dimension_semantics=("parallel", "parallel"),
            vmem_limit_bytes=48 * 1024 * 1024,
        ),
        cost_estimate=pl.CostEstimate(flops=int(flops), transcendentals=0,
                                      bytes_accessed=int(bytes_accessed)),
    )(planes, w_tap, bias)


def prepare_projector_params(w1_oihw, w2_oihw, lin_w, lin_b):
    """One-time weight transforms: layout change, Linear fold, bf16 cast."""
    # OIHW -> [ky, kx, Cin, Cout]
    w1_tap = jnp.transpose(w1_oihw, (2, 3, 1, 0)).astype(jnp.bfloat16)
    w2_tap = jnp.transpose(w2_oihw, (2, 3, 1, 0)).astype(jnp.float32)
    # Fold the trailing Linear (y = h @ lin_w.T + lin_b) into conv2's weight.
    w2_fold = jnp.tensordot(w2_tap, lin_w.astype(jnp.float32),
                            axes=[[3], [1]]).astype(jnp.bfloat16)
    b1 = jnp.zeros((1, w1_tap.shape[-1]), jnp.float32)   # conv1 has no bias
    b2 = lin_b.astype(jnp.float32).reshape(1, -1)        # Linear bias, folded in
    return w1_tap, b1, w2_fold, b2


def got_ocr2_multimodal_projector(x_nchw, w1_tap, b1, w2_fold, b2):
    """x_nchw: [B, Cv, H, W] -> [B, (H//4)*(W//4), Hlang]."""
    b, _, h, w = x_nchw.shape
    assert h % 4 == 0 and w % 4 == 0, "two stride-2 convs need H, W % 4 == 0"

    x = jnp.transpose(x_nchw, (0, 2, 3, 1)).astype(jnp.bfloat16)   # NHWC, bf16

    # conv1: Cv -> 2*Cv, stride 2 (bf16 output stays lane-packed for conv2)
    h1 = _conv3x3_s2(_space_to_depth_pad(x), w1_tap, b1, jnp.bfloat16)
    h1 = h1.reshape(b, h // 2, w // 2, -1)                          # free reshape

    # conv2 (+ folded Linear + bias): 2*Cv -> Hlang, stride 2
    out = _conv3x3_s2(_space_to_depth_pad(h1), w2_fold, b2, jnp.float32)
    return out                                   # [B, (H//4)*(W//4), Hlang]


# ----------------------------- reference (pure JAX) --------------------------

def _reference(x_nchw, w1, w2, lin_w, lin_b):
    dn = ("NCHW", "OIHW", "NCHW")
    h = lax.conv_general_dilated(x_nchw, w1, (2, 2), ((1, 1), (1, 1)),
                                 dimension_numbers=dn)
    h = lax.conv_general_dilated(h, w2, (2, 2), ((1, 1), (1, 1)),
                                 dimension_numbers=dn)
    b, c, ho, wo = h.shape
    h = h.reshape(b, c, ho * wo).transpose(0, 2, 1)                 # [B, S, C]
    return h @ lin_w.T + lin_b


# ----------------------------------- main ------------------------------------

if __name__ == "__main__":
    # Small synthetic config: output_channels=8, language hidden=32, 32x32 grid
    B, Cv, H, W = 2, 8, 32, 32
    Hlang = 32

    key = jax.random.PRNGKey(0)
    k_x, k_w1, k_w2, k_lw, k_lb = jax.random.split(key, 5)

    x = jax.random.normal(k_x, (B, Cv, H, W), dtype=jnp.float32)
    w1 = jax.random.normal(k_w1, (2 * Cv, Cv, 3, 3), dtype=jnp.float32) * 0.1
    w2 = jax.random.normal(k_w2, (Hlang, 2 * Cv, 3, 3), dtype=jnp.float32) * 0.1
    lin_w = jax.random.normal(k_lw, (Hlang, Hlang), dtype=jnp.float32) * 0.1
    lin_b = jax.random.normal(k_lb, (Hlang,), dtype=jnp.float32) * 0.1

    params = prepare_projector_params(w1, w2, lin_w, lin_b)   # one-time prep
    projector = jax.jit(got_ocr2_multimodal_projector)

    out = jax.block_until_ready(projector(x, *params))

    ref = _reference(x, w1, w2, lin_w, lin_b)
    assert out.shape == (B, (H // 4) * (W // 4), Hlang), out.shape
    # bf16 MXU operands with f32 accumulation -> compare at bf16-level tolerance
    err = jnp.max(jnp.abs(out - ref))
    assert jnp.allclose(out, ref, atol=5e-2, rtol=5e-2), f"max abs err {err}"

    print("KERNEL_OK")
</pallas_src>

<mosaic_0001>
module attributes {stable_mosaic.version = 11 : i64} {
  func.func @_conv3x3_s2_kernel(%arg0: i32, %arg1: i32, %arg2: memref<1x2x2x17x17x8xbf16, #tpu.memory_space<vmem>>, %arg3: memref<3x3x8x16xbf16, #tpu.memory_space<vmem>>, %arg4: memref<1x16xf32, #tpu.memory_space<vmem>>, %arg5: memref<1x256x16xbf16, #tpu.memory_space<vmem>>) attributes {dimension_semantics = [#tpu.dimension_semantics<parallel>, #tpu.dimension_semantics<parallel>], iteration_bounds = array<i64: 2, 1>, scalar_prefetch = 0 : i64, scratch_operands = 0 : i64, tpu.core_type = #tpu.core_type<tc>, window_params = [{transform_indices = @transform_0, window_bounds = array<i64: 1, 2, 2, 17, 17, 8>}, {transform_indices = @transform_1, window_bounds = array<i64: 3, 3, 8, 16>}, {transform_indices = @transform_2, window_bounds = array<i64: 1, 16>}, {transform_indices = @transform_3, window_bounds = array<i64: 1, 256, 16>}]} {
    %cst = arith.constant 0.000000e+00 : f32
    %0 = vector.broadcast %cst : f32 to vector<256x16xf32>
    %c0 = arith.constant 0 : index
    %c0_0 = arith.constant 0 : index
    %c0_1 = arith.constant 0 : index
    %c0_2 = arith.constant 0 : index
    %c0_3 = arith.constant 0 : index
    %c0_4 = arith.constant 0 : index
    %1 = vector.load %arg2[%c0, %c0_0, %c0_1, %c0_2, %c0_3, %c0_4] : memref<1x2x2x17x17x8xbf16, #tpu.memory_space<vmem>>, vector<1x1x1x16x16x8xbf16>
    %2 = vector.shape_cast %1 : vector<1x1x1x16x16x8xbf16> to vector<16x16x8xbf16>
    %3 = vector.shape_cast %2 : vector<16x16x8xbf16> to vector<256x8xbf16>
    %c0_5 = arith.constant 0 : index
    %c0_6 = arith.constant 0 : index
    %c0_7 = arith.constant 0 : index
    %c0_8 = arith.constant 0 : index
    %4 = vector.load %arg3[%c0_5, %c0_6, %c0_7, %c0_8] : memref<3x3x8x16xbf16, #tpu.memory_space<vmem>>, vector<1x1x8x16xbf16>
    %5 = vector.shape_cast %4 : vector<1x1x8x16xbf16> to vector<8x16xbf16>
    %cst_9 = arith.constant dense<0.000000e+00> : vector<256x16xf32>
    %6 = tpu.matmul %3, %5, %cst_9 {dimension_numbers = #tpu.dot_dimension_numbers<[1], [0], [0], [1], [0, 0, 1, 1], [], []>} : vector<256x8xbf16>, vector<8x16xbf16>, vector<256x16xf32> -> vector<256x16xf32>
    %7 = arith.addf %0, %6 : vector<256x16xf32>
    %c0_10 = arith.constant 0 : index
    %c0_11 = arith.constant 0 : index
    %c1 = arith.constant 1 : index
    %c0_12 = arith.constant 0 : index
    %c0_13 = arith.constant 0 : index
    %c0_14 = arith.constant 0 : index
    %8 = vector.load %arg2[%c0_10, %c0_11, %c1, %c0_12, %c0_13, %c0_14] : memref<1x2x2x17x17x8xbf16, #tpu.memory_space<vmem>>, vector<1x1x1x16x16x8xbf16>
    %9 = vector.shape_cast %8 : vector<1x1x1x16x16x8xbf16> to vector<16x16x8xbf16>
    %10 = vector.shape_cast %9 : vector<16x16x8xbf16> to vector<256x8xbf16>
    %c0_15 = arith.constant 0 : index
    %c1_16 = arith.constant 1 : index
    %c0_17 = arith.constant 0 : index
    %c0_18 = arith.constant 0 : index
    %11 = vector.load %arg3[%c0_15, %c1_16, %c0_17, %c0_18] : memref<3x3x8x16xbf16, #tpu.memory_space<vmem>>, vector<1x1x8x16xbf16>
    %12 = vector.shape_cast %11 : vector<1x1x8x16xbf16> to vector<8x16xbf16>
    %cst_19 = arith.constant dense<0.000000e+00> : vector<256x16xf32>
    %13 = tpu.matmul %10, %12, %cst_19 {dimension_numbers = #tpu.dot_dimension_numbers<[1], [0], [0], [1], [0, 0, 1, 1], [], []>} : vector<256x8xbf16>, vector<8x16xbf16>, vector<256x16xf32> -> vector<256x16xf32>
    %14 = arith.addf %7, %13 : vector<256x16xf32>
    %c0_20 = arith.constant 0 : index
    %c0_21 = arith.constant 0 : index
    %c0_22 = arith.constant 0 : index
    %c0_23 = arith.constant 0 : index
    %c1_24 = arith.constant 1 : index
    %c0_25 = arith.constant 0 : index
    %15 = vector.load %arg2[%c0_20, %c0_21, %c0_22, %c0_23, %c1_24, %c0_25] : memref<1x2x2x17x17x8xbf16, #tpu.memory_space<vmem>>, vector<1x1x1x16x16x8xbf16>
    %16 = vector.shape_cast %15 : vector<1x1x1x16x16x8xbf16> to vector<16x16x8xbf16>
    %17 = vector.shape_cast %16 : vector<16x16x8xbf16> to vector<256x8xbf16>
    %c0_26 = arith.constant 0 : index
    %c2 = arith.constant 2 : index
    %c0_27 = arith.constant 0 : index
    %c0_28 = arith.constant 0 : index
    %18 = vector.load %arg3[%c0_26, %c2, %c0_27, %c0_28] : memref<3x3x8x16xbf16, #tpu.memory_space<vmem>>, vector<1x1x8x16xbf16>
    %19 = vector.shape_cast %18 : vector<1x1x8x16xbf16> to vector<8x16xbf16>
    %cst_29 = arith.constant dense<0.000000e+00> : vector<256x16xf32>
    %20 = tpu.matmul %17, %19, %cst_29 {dimension_numbers = #tpu.dot_dimension_numbers<[1], [0], [0], [1], [0, 0, 1, 1], [], []>} : vector<256x8xbf16>, vector<8x16xbf16>, vector<256x16xf32> -> vector<256x16xf32>
    %21 = arith.addf %14, %20 : vector<256x16xf32>
    %c0_30 = arith.constant 0 : index
    %c1_31 = arith.constant 1 : index
    %c0_32 = arith.constant 0 : index
    %c0_33 = arith.constant 0 : index
    %c0_34 = arith.constant 0 : index
    %c0_35 = arith.constant 0 : index
    %22 = vector.load %arg2[%c0_30, %c1_31, %c0_32, %c0_33, %c0_34, %c0_35] : memref<1x2x2x17x17x8xbf16, #tpu.memory_space<vmem>>, vector<1x1x1x16x16x8xbf16>
    %23 = vector.shape_cast %22 : vector<1x1x1x16x16x8xbf16> to vector<16x16x8xbf16>
    %24 = vector.shape_cast %23 : vector<16x16x8xbf16> to vector<256x8xbf16>
    %c1_36 = arith.constant 1 : index
    %c0_37 = arith.constant 0 : index
    %c0_38 = arith.constant 0 : index
    %c0_39 = arith.constant 0 : index
    %25 = vector.load %arg3[%c1_36, %c0_37, %c0_38, %c0_39] : memref<3x3x8x16xbf16, #tpu.memory_space<vmem>>, vector<1x1x8x16xbf16>
    %26 = vector.shape_cast %25 : vector<1x1x8x16xbf16> to vector<8x16xbf16>
    %cst_40 = arith.constant dense<0.000000e+00> : vector<256x16xf32>
    %27 = tpu.matmul %24, %26, %cst_40 {dimension_numbers = #tpu.dot_dimension_numbers<[1], [0], [0], [1], [0, 0, 1, 1], [], []>} : vector<256x8xbf16>, vector<8x16xbf16>, vector<256x16xf32> -> vector<256x16xf32>
    %28 = arith.addf %21, %27 : vector<256x16xf32>
    %c0_41 = arith.constant 0 : index
    %c1_42 = arith.constant 1 : index
    %c1_43 = arith.constant 1 : index
    %c0_44 = arith.constant 0 : index
    %c0_45 = arith.constant 0 : index
    %c0_46 = arith.constant 0 : index
    %29 = vector.load %arg2[%c0_41, %c1_42, %c1_43, %c0_44, %c0_45, %c0_46] : memref<1x2x2x17x17x8xbf16, #tpu.memory_space<vmem>>, vector<1x1x1x16x16x8xbf16>
    %30 = vector.shape_cast %29 : vector<1x1x1x16x16x8xbf16> to vector<16x16x8xbf16>
    %31 = vector.shape_cast %30 : vector<16x16x8xbf16> to vector<256x8xbf16>
    %c1_47 = arith.constant 1 : index
    %c1_48 = arith.constant 1 : index
    %c0_49 = arith.constant 0 : index
    %c0_50 = arith.constant 0 : index
    %32 = vector.load %arg3[%c1_47, %c1_48, %c0_49, %c0_50] : memref<3x3x8x16xbf16, #tpu.memory_space<vmem>>, vector<1x1x8x16xbf16>
    %33 = vector.shape_cast %32 : vector<1x1x8x16xbf16> to vector<8x16xbf16>
    %cst_51 = arith.constant dense<0.000000e+00> : vector<256x16xf32>
    %34 = tpu.matmul %31, %33, %cst_51 {dimension_numbers = #tpu.dot_dimension_numbers<[1], [0], [0], [1], [0, 0, 1, 1], [], []>} : vector<256x8xbf16>, vector<8x16xbf16>, vector<256x16xf32> -> vector<256x16xf32>
    %35 = arith.addf %28, %34 : vector<256x16xf32>
    %c0_52 = arith.constant 0 : index
    %c1_53 = arith.constant 1 : index
    %c0_54 = arith.constant 0 : index
    %c0_55 = arith.constant 0 : index
    %c1_56 = arith.constant 1 : index
    %c0_57 = arith.constant 0 : index
    %36 = vector.load %arg2[%c0_52, %c1_53, %c0_54, %c0_55, %c1_56, %c0_57] : memref<1x2x2x17x17x8xbf16, #tpu.memory_space<vmem>>, vector<1x1x1x16x16x8xbf16>
    %37 = vector.shape_cast %36 : vector<1x1x1x16x16x8xbf16> to vector<16x16x8xbf16>
    %38 = vector.shape_cast %37 : vector<16x16x8xbf16> to vector<256x8xbf16>
    %c1_58 = arith.constant 1 : index
    %c2_59 = arith.constant 2 : index
    %c0_60 = arith.constant 0 : index
    %c0_61 = arith.constant 0 : index
    %39 = vector.load %arg3[%c1_58, %c2_59, %c0_60, %c0_61] : memref<3x3x8x16xbf16, #tpu.memory_space<vmem>>, vector<1x1x8x16xbf16>
    %40 = vector.shape_cast %39 : vector<1x1x8x16xbf16> to vector<8x16xbf16>
    %cst_62 = arith.constant dense<0.000000e+00> : vector<256x16xf32>
    %41 = tpu.matmul %38, %40, %cst_62 {dimension_numbers = #tpu.dot_dimension_numbers<[1], [0], [0], [1], [0, 0, 1, 1], [], []>} : vector<256x8xbf16>, vector<8x16xbf16>, vector<256x16xf32> -> vector<256x16xf32>
    %42 = arith.addf %35, %41 : vector<256x16xf32>
    %c0_63 = arith.constant 0 : index
    %c0_64 = arith.constant 0 : index
    %c0_65 = arith.constant 0 : index
    %c1_66 = arith.constant 1 : index
    %c0_67 = arith.constant 0 : index
    %c0_68 = arith.constant 0 : index
    %43 = vector.load %arg2[%c0_63, %c0_64, %c0_65, %c1_66, %c0_67, %c0_68] : memref<1x2x2x17x17x8xbf16, #tpu.memory_space<vmem>>, vector<1x1x1x16x16x8xbf16>
    %44 = vector.shape_cast %43 : vector<1x1x1x16x16x8xbf16> to vector<16x16x8xbf16>
    %45 = vector.shape_cast %44 : vector<16x16x8xbf16> to vector<256x8xbf16>
    %c2_69 = arith.constant 2 : index
    %c0_70 = arith.constant 0 : index
    %c0_71 = arith.constant 0 : index
    %c0_72 = arith.constant 0 : index
    %46 = vector.load %arg3[%c2_69, %c0_70, %c0_71, %c0_72] : memref<3x3x8x16xbf16, #tpu.memory_space<vmem>>, vector<1x1x8x16xbf16>
    %47 = vector.shape_cast %46 : vector<1x1x8x16xbf16> to vector<8x16xbf16>
    %cst_73 = arith.constant dense<0.000000e+00> : vector<256x16xf32>
    %48 = tpu.matmul %45, %47, %cst_73 {dimension_numbers = #tpu.dot_dimension_numbers<[1], [0], [0], [1], [0, 0, 1, 1], [], []>} : vector<256x8xbf16>, vector<8x16xbf16>, vector<256x16xf32> -> vector<256x16xf32>
    %49 = arith.addf %42, %48 : vector<256x16xf32>
    %c0_74 = arith.constant 0 : index
    %c0_75 = arith.constant 0 : index
    %c1_76 = arith.constant 1 : index
    %c1_77 = arith.constant 1 : index
    %c0_78 = arith.constant 0 : index
    %c0_79 = arith.constant 0 : index
    %50 = vector.load %arg2[%c0_74, %c0_75, %c1_76, %c1_77, %c0_78, %c0_79] : memref<1x2x2x17x17x8xbf16, #tpu.memory_space<vmem>>, vector<1x1x1x16x16x8xbf16>
    %51 = vector.shape_cast %50 : vector<1x1x1x16x16x8xbf16> to vector<16x16x8xbf16>
    %52 = vector.shape_cast %51 : vector<16x16x8xbf16> to vector<256x8xbf16>
    %c2_80 = arith.constant 2 : index
    %c1_81 = arith.constant 1 : index
    %c0_82 = arith.constant 0 : index
    %c0_83 = arith.constant 0 : index
    %53 = vector.load %arg3[%c2_80, %c1_81, %c0_82, %c0_83] : memref<3x3x8x16xbf16, #tpu.memory_space<vmem>>, vector<1x1x8x16xbf16>
    %54 = vector.shape_cast %53 : vector<1x1x8x16xbf16> to vector<8x16xbf16>
    %cst_84 = arith.constant dense<0.000000e+00> : vector<256x16xf32>
    %55 = tpu.matmul %52, %54, %cst_84 {dimension_numbers = #tpu.dot_dimension_numbers<[1], [0], [0], [1], [0, 0, 1, 1], [], []>} : vector<256x8xbf16>, vector<8x16xbf16>, vector<256x16xf32> -> vector<256x16xf32>
    %56 = arith.addf %49, %55 : vector<256x16xf32>
    %c0_85 = arith.constant 0 : index
    %c0_86 = arith.constant 0 : index
    %c0_87 = arith.constant 0 : index
    %c1_88 = arith.constant 1 : index
    %c1_89 = arith.constant 1 : index
    %c0_90 = arith.constant 0 : index
    %57 = vector.load %arg2[%c0_85, %c0_86, %c0_87, %c1_88, %c1_89, %c0_90] : memref<1x2x2x17x17x8xbf16, #tpu.memory_space<vmem>>, vector<1x1x1x16x16x8xbf16>
    %58 = vector.shape_cast %57 : vector<1x1x1x16x16x8xbf16> to vector<16x16x8xbf16>
    %59 = vector.shape_cast %58 : vector<16x16x8xbf16> to vector<256x8xbf16>
    %c2_91 = arith.constant 2 : index
    %c2_92 = arith.constant 2 : index
    %c0_93 = arith.constant 0 : index
    %c0_94 = arith.constant 0 : index
    %60 = vector.load %arg3[%c2_91, %c2_92, %c0_93, %c0_94] : memref<3x3x8x16xbf16, #tpu.memory_space<vmem>>, vector<1x1x8x16xbf16>
    %61 = vector.shape_cast %60 : vector<1x1x8x16xbf16> to vector<8x16xbf16>
    %cst_95 = arith.constant dense<0.000000e+00> : vector<256x16xf32>
    %62 = tpu.matmul %59, %61, %cst_95 {dimension_numbers = #tpu.dot_dimension_numbers<[1], [0], [0], [1], [0, 0, 1, 1], [], []>} : vector<256x8xbf16>, vector<8x16xbf16>, vector<256x16xf32> -> vector<256x16xf32>
    %63 = arith.addf %56, %62 : vector<256x16xf32>
    %c0_96 = arith.constant 0 : index
    %c0_97 = arith.constant 0 : index
    %64 = vector.load %arg4[%c0_96, %c0_97] : memref<1x16xf32, #tpu.memory_space<vmem>>, vector<1x16xf32>
    %65 = vector.broadcast %64 : vector<1x16xf32> to vector<256x16xf32>
    %66 = arith.addf %63, %65 : vector<256x16xf32>
    %67 = arith.truncf %66 : vector<256x16xf32> to vector<256x16xbf16>
    %c0_98 = arith.constant 0 : index
    %c0_99 = arith.constant 0 : index
    %c0_100 = arith.constant 0 : index
    %68 = vector.load %arg5[%c0_98, %c0_99, %c0_100] : memref<1x256x16xbf16, #tpu.memory_space<vmem>>, vector<1x256x16xbf16>
    %69 = vector.shape_cast %68 : vector<1x256x16xbf16> to vector<256x16xbf16>
    %70 = vector.shape_cast %67 : vector<256x16xbf16> to vector<1x256x16xbf16>
    tpu.vector_store %arg5[%c0_98, %c0_99, %c0_100], %70 {strides = array<i32>} : memref<1x256x16xbf16, #tpu.memory_space<vmem>>, vector<1x256x16xbf16>,
    return
  }
  func.func @transform_0(%arg0: i32, %arg1: i32) -> (i32, i32, i32, i32, i32, i32) {
    %c0_i32 = arith.constant 0 : i32
    %c0_i32_0 = arith.constant 0 : i32
    %c0_i32_1 = arith.constant 0 : i32
    %c0_i32_2 = arith.constant 0 : i32
    %c0_i32_3 = arith.constant 0 : i32
    %c0_i32_4 = arith.constant 0 : i32
    return %arg0, %c0_i32, %c0_i32_0, %c0_i32_1, %c0_i32_2, %c0_i32_3 : i32, i32, i32, i32, i32, i32
  }
  func.func @transform_1(%arg0: i32, %arg1: i32) -> (i32, i32, i32, i32) {
    %c0_i32 = arith.constant 0 : i32
    %c0_i32_0 = arith.constant 0 : i32
    %c0_i32_1 = arith.constant 0 : i32
    %c0_i32_2 = arith.constant 0 : i32
    return %c0_i32, %c0_i32_0, %c0_i32_1, %arg1 : i32, i32, i32, i32
  }
  func.func @transform_2(%arg0: i32, %arg1: i32) -> (i32, i32) {
    %c0_i32 = arith.constant 0 : i32
    %c0_i32_0 = arith.constant 0 : i32
    return %c0_i32, %arg1 : i32, i32
  }
  func.func @transform_3(%arg0: i32, %arg1: i32) -> (i32, i32, i32) {
    %c0_i32 = arith.constant 0 : i32
    %c0_i32_0 = arith.constant 0 : i32
    return %arg0, %c0_i32, %arg1 : i32, i32, i32
  }
}

module attributes {stable_mosaic.version = 11 : i64} {
  func.func @_conv3x3_s2_kernel(%arg0: i32, %arg1: i32, %arg2: memref<1x2x2x9x9x16xbf16, #tpu.memory_space<vmem>>, %arg3: memref<3x3x16x32xbf16, #tpu.memory_space<vmem>>, %arg4: memref<1x32xf32, #tpu.memory_space<vmem>>, %arg5: memref<1x64x32xf32, #tpu.memory_space<vmem>>) attributes {dimension_semantics = [#tpu.dimension_semantics<parallel>, #tpu.dimension_semantics<parallel>], iteration_bounds = array<i64: 2, 1>, scalar_prefetch = 0 : i64, scratch_operands = 0 : i64, tpu.core_type = #tpu.core_type<tc>, window_params = [{transform_indices = @transform_0, window_bounds = array<i64: 1, 2, 2, 9, 9, 16>}, {transform_indices = @transform_1, window_bounds = array<i64: 3, 3, 16, 32>}, {transform_indices = @transform_2, window_bounds = array<i64: 1, 32>}, {transform_indices = @transform_3, window_bounds = array<i64: 1, 64, 32>}]} {
    %cst = arith.constant 0.000000e+00 : f32
    %0 = vector.broadcast %cst : f32 to vector<64x32xf32>
    %c0 = arith.constant 0 : index
    %c0_0 = arith.constant 0 : index
    %c0_1 = arith.constant 0 : index
    %c0_2 = arith.constant 0 : index
    %c0_3 = arith.constant 0 : index
    %c0_4 = arith.constant 0 : index
    %1 = vector.load %arg2[%c0, %c0_0, %c0_1, %c0_2, %c0_3, %c0_4] : memref<1x2x2x9x9x16xbf16, #tpu.memory_space<vmem>>, vector<1x1x1x8x8x16xbf16>
    %2 = vector.shape_cast %1 : vector<1x1x1x8x8x16xbf16> to vector<8x8x16xbf16>
    %3 = vector.shape_cast %2 : vector<8x8x16xbf16> to vector<64x16xbf16>
    %c0_5 = arith.constant 0 : index
    %c0_6 = arith.constant 0 : index
    %c0_7 = arith.constant 0 : index
    %c0_8 = arith.constant 0 : index
    %4 = vector.load %arg3[%c0_5, %c0_6, %c0_7, %c0_8] : memref<3x3x16x32xbf16, #tpu.memory_space<vmem>>, vector<1x1x16x32xbf16>
    %5 = vector.shape_cast %4 : vector<1x1x16x32xbf16> to vector<16x32xbf16>
    %cst_9 = arith.constant dense<0.000000e+00> : vector<64x32xf32>
    %6 = tpu.matmul %3, %5, %cst_9 {dimension_numbers = #tpu.dot_dimension_numbers<[1], [0], [0], [1], [0, 0, 1, 1], [], []>} : vector<64x16xbf16>, vector<16x32xbf16>, vector<64x32xf32> -> vector<64x32xf32>
    %7 = arith.addf %0, %6 : vector<64x32xf32>
    %c0_10 = arith.constant 0 : index
    %c0_11 = arith.constant 0 : index
    %c1 = arith.constant 1 : index
    %c0_12 = arith.constant 0 : index
    %c0_13 = arith.constant 0 : index
    %c0_14 = arith.constant 0 : index
    %8 = vector.load %arg2[%c0_10, %c0_11, %c1, %c0_12, %c0_13, %c0_14] : memref<1x2x2x9x9x16xbf16, #tpu.memory_space<vmem>>, vector<1x1x1x8x8x16xbf16>
    %9 = vector.shape_cast %8 : vector<1x1x1x8x8x16xbf16> to vector<8x8x16xbf16>
    %10 = vector.shape_cast %9 : vector<8x8x16xbf16> to vector<64x16xbf16>
    %c0_15 = arith.constant 0 : index
    %c1_16 = arith.constant 1 : index
    %c0_17 = arith.constant 0 : index
    %c0_18 = arith.constant 0 : index
    %11 = vector.load %arg3[%c0_15, %c1_16, %c0_17, %c0_18] : memref<3x3x16x32xbf16, #tpu.memory_space<vmem>>, vector<1x1x16x32xbf16>
    %12 = vector.shape_cast %11 : vector<1x1x16x32xbf16> to vector<16x32xbf16>
    %cst_19 = arith.constant dense<0.000000e+00> : vector<64x32xf32>
    %13 = tpu.matmul %10, %12, %cst_19 {dimension_numbers = #tpu.dot_dimension_numbers<[1], [0], [0], [1], [0, 0, 1, 1], [], []>} : vector<64x16xbf16>, vector<16x32xbf16>, vector<64x32xf32> -> vector<64x32xf32>
    %14 = arith.addf %7, %13 : vector<64x32xf32>
    %c0_20 = arith.constant 0 : index
    %c0_21 = arith.constant 0 : index
    %c0_22 = arith.constant 0 : index
    %c0_23 = arith.constant 0 : index
    %c1_24 = arith.constant 1 : index
    %c0_25 = arith.constant 0 : index
    %15 = vector.load %arg2[%c0_20, %c0_21, %c0_22, %c0_23, %c1_24, %c0_25] : memref<1x2x2x9x9x16xbf16, #tpu.memory_space<vmem>>, vector<1x1x1x8x8x16xbf16>
    %16 = vector.shape_cast %15 : vector<1x1x1x8x8x16xbf16> to vector<8x8x16xbf16>
    %17 = vector.shape_cast %16 : vector<8x8x16xbf16> to vector<64x16xbf16>
    %c0_26 = arith.constant 0 : index
    %c2 = arith.constant 2 : index
    %c0_27 = arith.constant 0 : index
    %c0_28 = arith.constant 0 : index
    %18 = vector.load %arg3[%c0_26, %c2, %c0_27, %c0_28] : memref<3x3x16x32xbf16, #tpu.memory_space<vmem>>, vector<1x1x16x32xbf16>
    %19 = vector.shape_cast %18 : vector<1x1x16x32xbf16> to vector<16x32xbf16>
    %cst_29 = arith.constant dense<0.000000e+00> : vector<64x32xf32>
    %20 = tpu.matmul %17, %19, %cst_29 {dimension_numbers = #tpu.dot_dimension_numbers<[1], [0], [0], [1], [0, 0, 1, 1], [], []>} : vector<64x16xbf16>, vector<16x32xbf16>, vector<64x32xf32> -> vector<64x32xf32>
    %21 = arith.addf %14, %20 : vector<64x32xf32>
    %c0_30 = arith.constant 0 : index
    %c1_31 = arith.constant 1 : index
    %c0_32 = arith.constant 0 : index
    %c0_33 = arith.constant 0 : index
    %c0_34 = arith.constant 0 : index
    %c0_35 = arith.constant 0 : index
    %22 = vector.load %arg2[%c0_30, %c1_31, %c0_32, %c0_33, %c0_34, %c0_35] : memref<1x2x2x9x9x16xbf16, #tpu.memory_space<vmem>>, vector<1x1x1x8x8x16xbf16>
    %23 = vector.shape_cast %22 : vector<1x1x1x8x8x16xbf16> to vector<8x8x16xbf16>
    %24 = vector.shape_cast %23 : vector<8x8x16xbf16> to vector<64x16xbf16>
    %c1_36 = arith.constant 1 : index
    %c0_37 = arith.constant 0 : index
    %c0_38 = arith.constant 0 : index
    %c0_39 = arith.constant 0 : index
    %25 = vector.load %arg3[%c1_36, %c0_37, %c0_38, %c0_39] : memref<3x3x16x32xbf16, #tpu.memory_space<vmem>>, vector<1x1x16x32xbf16>
    %26 = vector.shape_cast %25 : vector<1x1x16x32xbf16> to vector<16x32xbf16>
    %cst_40 = arith.constant dense<0.000000e+00> : vector<64x32xf32>
    %27 = tpu.matmul %24, %26, %cst_40 {dimension_numbers = #tpu.dot_dimension_numbers<[1], [0], [0], [1], [0, 0, 1, 1], [], []>} : vector<64x16xbf16>, vector<16x32xbf16>, vector<64x32xf32> -> vector<64x32xf32>
    %28 = arith.addf %21, %27 : vector<64x32xf32>
    %c0_41 = arith.constant 0 : index
    %c1_42 = arith.constant 1 : index
    %c1_43 = arith.constant 1 : index
    %c0_44 = arith.constant 0 : index
    %c0_45 = arith.constant 0 : index
    %c0_46 = arith.constant 0 : index
    %29 = vector.load %arg2[%c0_41, %c1_42, %c1_43, %c0_44, %c0_45, %c0_46] : memref<1x2x2x9x9x16xbf16, #tpu.memory_space<vmem>>, vector<1x1x1x8x8x16xbf16>
    %30 = vector.shape_cast %29 : vector<1x1x1x8x8x16xbf16> to vector<8x8x16xbf16>
    %31 = vector.shape_cast %30 : vector<8x8x16xbf16> to vector<64x16xbf16>
    %c1_47 = arith.constant 1 : index
    %c1_48 = arith.constant 1 : index
    %c0_49 = arith.constant 0 : index
    %c0_50 = arith.constant 0 : index
    %32 = vector.load %arg3[%c1_47, %c1_48, %c0_49, %c0_50] : memref<3x3x16x32xbf16, #tpu.memory_space<vmem>>, vector<1x1x16x32xbf16>
    %33 = vector.shape_cast %32 : vector<1x1x16x32xbf16> to vector<16x32xbf16>
    %cst_51 = arith.constant dense<0.000000e+00> : vector<64x32xf32>
    %34 = tpu.matmul %31, %33, %cst_51 {dimension_numbers = #tpu.dot_dimension_numbers<[1], [0], [0], [1], [0, 0, 1, 1], [], []>} : vector<64x16xbf16>, vector<16x32xbf16>, vector<64x32xf32> -> vector<64x32xf32>
    %35 = arith.addf %28, %34 : vector<64x32xf32>
    %c0_52 = arith.constant 0 : index
    %c1_53 = arith.constant 1 : index
    %c0_54 = arith.constant 0 : index
    %c0_55 = arith.constant 0 : index
    %c1_56 = arith.constant 1 : index
    %c0_57 = arith.constant 0 : index
    %36 = vector.load %arg2[%c0_52, %c1_53, %c0_54, %c0_55, %c1_56, %c0_57] : memref<1x2x2x9x9x16xbf16, #tpu.memory_space<vmem>>, vector<1x1x1x8x8x16xbf16>
    %37 = vector.shape_cast %36 : vector<1x1x1x8x8x16xbf16> to vector<8x8x16xbf16>
    %38 = vector.shape_cast %37 : vector<8x8x16xbf16> to vector<64x16xbf16>
    %c1_58 = arith.constant 1 : index
    %c2_59 = arith.constant 2 : index
    %c0_60 = arith.constant 0 : index
    %c0_61 = arith.constant 0 : index
    %39 = vector.load %arg3[%c1_58, %c2_59, %c0_60, %c0_61] : memref<3x3x16x32xbf16, #tpu.memory_space<vmem>>, vector<1x1x16x32xbf16>
    %40 = vector.shape_cast %39 : vector<1x1x16x32xbf16> to vector<16x32xbf16>
    %cst_62 = arith.constant dense<0.000000e+00> : vector<64x32xf32>
    %41 = tpu.matmul %38, %40, %cst_62 {dimension_numbers = #tpu.dot_dimension_numbers<[1], [0], [0], [1], [0, 0, 1, 1], [], []>} : vector<64x16xbf16>, vector<16x32xbf16>, vector<64x32xf32> -> vector<64x32xf32>
    %42 = arith.addf %35, %41 : vector<64x32xf32>
    %c0_63 = arith.constant 0 : index
    %c0_64 = arith.constant 0 : index
    %c0_65 = arith.constant 0 : index
    %c1_66 = arith.constant 1 : index
    %c0_67 = arith.constant 0 : index
    %c0_68 = arith.constant 0 : index
    %43 = vector.load %arg2[%c0_63, %c0_64, %c0_65, %c1_66, %c0_67, %c0_68] : memref<1x2x2x9x9x16xbf16, #tpu.memory_space<vmem>>, vector<1x1x1x8x8x16xbf16>
    %44 = vector.shape_cast %43 : vector<1x1x1x8x8x16xbf16> to vector<8x8x16xbf16>
    %45 = vector.shape_cast %44 : vector<8x8x16xbf16> to vector<64x16xbf16>
    %c2_69 = arith.constant 2 : index
    %c0_70 = arith.constant 0 : index
    %c0_71 = arith.constant 0 : index
    %c0_72 = arith.constant 0 : index
    %46 = vector.load %arg3[%c2_69, %c0_70, %c0_71, %c0_72] : memref<3x3x16x32xbf16, #tpu.memory_space<vmem>>, vector<1x1x16x32xbf16>
    %47 = vector.shape_cast %46 : vector<1x1x16x32xbf16> to vector<16x32xbf16>
    %cst_73 = arith.constant dense<0.000000e+00> : vector<64x32xf32>
    %48 = tpu.matmul %45, %47, %cst_73 {dimension_numbers = #tpu.dot_dimension_numbers<[1], [0], [0], [1], [0, 0, 1, 1], [], []>} : vector<64x16xbf16>, vector<16x32xbf16>, vector<64x32xf32> -> vector<64x32xf32>
    %49 = arith.addf %42, %48 : vector<64x32xf32>
    %c0_74 = arith.constant 0 : index
    %c0_75 = arith.constant 0 : index
    %c1_76 = arith.constant 1 : index
    %c1_77 = arith.constant 1 : index
    %c0_78 = arith.constant 0 : index
    %c0_79 = arith.constant 0 : index
    %50 = vector.load %arg2[%c0_74, %c0_75, %c1_76, %c1_77, %c0_78, %c0_79] : memref<1x2x2x9x9x16xbf16, #tpu.memory_space<vmem>>, vector<1x1x1x8x8x16xbf16>
    %51 = vector.shape_cast %50 : vector<1x1x1x8x8x16xbf16> to vector<8x8x16xbf16>
    %52 = vector.shape_cast %51 : vector<8x8x16xbf16> to vector<64x16xbf16>
    %c2_80 = arith.constant 2 : index
    %c1_81 = arith.constant 1 : index
    %c0_82 = arith.constant 0 : index
    %c0_83 = arith.constant 0 : index
    %53 = vector.load %arg3[%c2_80, %c1_81, %c0_82, %c0_83] : memref<3x3x16x32xbf16, #tpu.memory_space<vmem>>, vector<1x1x16x32xbf16>
    %54 = vector.shape_cast %53 : vector<1x1x16x32xbf16> to vector<16x32xbf16>
    %cst_84 = arith.constant dense<0.000000e+00> : vector<64x32xf32>
    %55 = tpu.matmul %52, %54, %cst_84 {dimension_numbers = #tpu.dot_dimension_numbers<[1], [0], [0], [1], [0, 0, 1, 1], [], []>} : vector<64x16xbf16>, vector<16x32xbf16>, vector<64x32xf32> -> vector<64x32xf32>
    %56 = arith.addf %49, %55 : vector<64x32xf32>
    %c0_85 = arith.constant 0 : index
    %c0_86 = arith.constant 0 : index
    %c0_87 = arith.constant 0 : index
    %c1_88 = arith.constant 1 : index
    %c1_89 = arith.constant 1 : index
    %c0_90 = arith.constant 0 : index
    %57 = vector.load %arg2[%c0_85, %c0_86, %c0_87, %c1_88, %c1_89, %c0_90] : memref<1x2x2x9x9x16xbf16, #tpu.memory_space<vmem>>, vector<1x1x1x8x8x16xbf16>
    %58 = vector.shape_cast %57 : vector<1x1x1x8x8x16xbf16> to vector<8x8x16xbf16>
    %59 = vector.shape_cast %58 : vector<8x8x16xbf16> to vector<64x16xbf16>
    %c2_91 = arith.constant 2 : index
    %c2_92 = arith.constant 2 : index
    %c0_93 = arith.constant 0 : index
    %c0_94 = arith.constant 0 : index
    %60 = vector.load %arg3[%c2_91, %c2_92, %c0_93, %c0_94] : memref<3x3x16x32xbf16, #tpu.memory_space<vmem>>, vector<1x1x16x32xbf16>
    %61 = vector.shape_cast %60 : vector<1x1x16x32xbf16> to vector<16x32xbf16>
    %cst_95 = arith.constant dense<0.000000e+00> : vector<64x32xf32>
    %62 = tpu.matmul %59, %61, %cst_95 {dimension_numbers = #tpu.dot_dimension_numbers<[1], [0], [0], [1], [0, 0, 1, 1], [], []>} : vector<64x16xbf16>, vector<16x32xbf16>, vector<64x32xf32> -> vector<64x32xf32>
    %63 = arith.addf %56, %62 : vector<64x32xf32>
    %c0_96 = arith.constant 0 : index
    %c0_97 = arith.constant 0 : index
    %64 = vector.load %arg4[%c0_96, %c0_97] : memref<1x32xf32, #tpu.memory_space<vmem>>, vector<1x32xf32>
    %65 = vector.broadcast %64 : vector<1x32xf32> to vector<64x32xf32>
    %66 = arith.addf %63, %65 : vector<64x32xf32>
    %c0_98 = arith.constant 0 : index
    %c0_99 = arith.constant 0 : index
    %c0_100 = arith.constant 0 : index
    %67 = vector.load %arg5[%c0_98, %c0_99, %c0_100] : memref<1x64x32xf32, #tpu.memory_space<vmem>>, vector<1x64x32xf32>
    %68 = vector.shape_cast %67 : vector<1x64x32xf32> to vector<64x32xf32>
    %69 = vector.shape_cast %66 : vector<64x32xf32> to vector<1x64x32xf32>
    tpu.vector_store %arg5[%c0_98, %c0_99, %c0_100], %69 {strides = array<i32>} : memref<1x64x32xf32, #tpu.memory_space<vmem>>, vector<1x64x32xf32>,
    return
  }
  func.func @transform_0(%arg0: i32, %arg1: i32) -> (i32, i32, i32, i32, i32, i32) {
    %c0_i32 = arith.constant 0 : i32
    %c0_i32_0 = arith.constant 0 : i32
    %c0_i32_1 = arith.constant 0 : i32
    %c0_i32_2 = arith.constant 0 : i32
    %c0_i32_3 = arith.constant 0 : i32
    %c0_i32_4 = arith.constant 0 : i32
    return %arg0, %c0_i32, %c0_i32_0, %c0_i32_1, %c0_i32_2, %c0_i32_3 : i32, i32, i32, i32, i32, i32
  }
  func.func @transform_1(%arg0: i32, %arg1: i32) -> (i32, i32, i32, i32) {
    %c0_i32 = arith.constant 0 : i32
    %c0_i32_0 = arith.constant 0 : i32
    %c0_i32_1 = arith.constant 0 : i32
    %c0_i32_2 = arith.constant 0 : i32
    return %c0_i32, %c0_i32_0, %c0_i32_1, %arg1 : i32, i32, i32, i32
  }
  func.func @transform_2(%arg0: i32, %arg1: i32) -> (i32, i32) {
    %c0_i32 = arith.constant 0 : i32
    %c0_i32_0 = arith.constant 0 : i32
    return %c0_i32, %arg1 : i32, i32
  }
  func.func @transform_3(%arg0: i32, %arg1: i32) -> (i32, i32, i32) {
    %c0_i32 = arith.constant 0 : i32
    %c0_i32_0 = arith.constant 0 : i32
    return %arg0, %c0_i32, %arg1 : i32, i32, i32
  }
}

</mosaic_0001>

<llo_original>
// kernel: got_ocr2_multimodal_projector.3
$region0: #{got_ocr2_multimodal_projector.3}
  #allocation0 [shape = 'u32[]', space=smem, size = 0x4, offset = 0x4, fixed_abs, tag = 'smem constant byte address 0x4 - core index']
  #allocation1 [shape = 'u32[144,128]{1,0:T(1,128)}', space=vmem, size = 0x12000, scoped, tag = 'internal scratch']
  %s0 = inlined_call_operand.vmem [shape: bf16[2,2,2,9,9,16], index: 0, kind: input, shape index: {}]
  %s1 = inlined_call_operand.vmem [shape: bf16[3,3,16,32], index: 1, kind: input, shape index: {}]
  %s2 = inlined_call_operand.vmem [shape: f32[1,32], index: 2, kind: input, shape index: {}]
  %s3 = inlined_call_operand.vmem [shape: f32[2,64,32], index: 3, kind: output, shape index: {}]
  %s4 = sld [smem:[#allocation0]]
  $region45: #{got_ocr2_multimodal_projector.3} parent=0
    _
  %s6 = ssub.s32 1, %s4
  %s7 = scalar_select 0, %s6, %s4
  loop: start=0, step=1, limit=4
  $region2: #{got_ocr2_multimodal_projector.3} parent=0 // loop_pre_header
    _
  $region3: #{got_ocr2_multimodal_projector.3} parent=0 // loop_header
    %s9 = sphi 0, %s13
    %p10 = scmp.ge.s32.totalorder %s9, 4
    %s16 = sphi 0, %s28
    %s17 = sphi 0, %s24
    %s18 = sphi 0, %s16
    %s19 = sphi 0, %s17
    %s20 = sphi 0, %s18
    %s21 = sphi 0, %s19
    %s31 = sphi 0, %s33
    %s34 = sphi 0, %s31
    %s35 = sphi 0, %s34
    %s51 = sphi 0, %s35
    %s57 = sphi 0, %s59
    %s60 = sphi 0, %s57
    %s61 = sphi 0, %s60
    %s77 = sphi 0, %s61
    %s83 = sphi 0, %s85
    %s86 = sphi 0, %s83
    %s87 = sphi 0, %s86
    %s103 = sphi 0, %s87
    %s111 = sphi 0, %s113
    %s114 = sphi 0, %s111
    %s115 = sphi 0, %s114
    %s131 = sphi 0, %s115
  $region4: #{got_ocr2_multimodal_projector.3} parent=0 // loop_header_branch
    %12 = sbr.rel (%p10) target = $region8
  $region5: #{got_ocr2_multimodal_projector.3} parent=0 // loop_body
    %s14 = ssub.s32 %s9, 1
    %s15 = ssub.s32 %s9, 2
    %s22 = sadd.s32 1, %s17
    %p23 = scmp.ge.s32.totalorder %s22, 1
    %s24 = scalar_select %p23, 0, %s22
    %s25 = sadd.s32 1, %s16
    %s26 = scalar_select %p23, %s25, %s16
    %p27 = scmp.ge.s32.totalorder %s26, 2
    %s28 = scalar_select %p27, 0, %s26
    %s29 = ssub.s32 %s16, %s28
    %p30 = scmp.eq.s32.totalorder %s29, 0
    %s32 = sadd.s32 %s31, 1
    %s33 = scalar_select %p30, %s31, %s32
    %p36 = pneg %p30
    %p37 = scmp.eq.s32.totalorder %s9, 1
    %p38 = por %p36, %p37
    %p39 = scmp.ne.s32.totalorder %s31, %s34
    %p40 = scmp.eq.s32.totalorder %s9, 0
    %p41 = por %p39, %p40
    %p42 = scmp.ne.s32.totalorder %s31, %s34
    %p43 = scmp.eq.s32.totalorder %s14, 1
    %p44 = por %p42, %p43
    %p45 = scmp.ne.s32.totalorder %s34, %s35
    %p46 = scmp.eq.s32.totalorder %s14, 0
    %p47 = por %p45, %p46
    %p48 = scmp.ne.s32.totalorder %s34, %s35
    %p49 = scmp.eq.s32.totalorder %s15, 1
    %p50 = por %p48, %p49
    %p52 = scmp.ne.s32.totalorder %s35, %s51
    %p53 = scmp.eq.s32.totalorder %s15, 0
    %p54 = por %p52, %p53
    %s55 = ssub.s32 %s17, %s24
    %p56 = scmp.eq.s32.totalorder %s55, 0
    %s58 = sadd.s32 %s57, 1
    %s59 = scalar_select %p56, %s57, %s58
    %p62 = pneg %p56
    %p63 = scmp.eq.s32.totalorder %s9, 1
    %p64 = por %p62, %p63
    %p65 = scmp.ne.s32.totalorder %s57, %s60
    %p66 = scmp.eq.s32.totalorder %s9, 0
    %p67 = por %p65, %p66
    %p68 = scmp.ne.s32.totalorder %s57, %s60
    %p69 = scmp.eq.s32.totalorder %s14, 1
    %p70 = por %p68, %p69
    %p71 = scmp.ne.s32.totalorder %s60, %s61
    %p72 = scmp.eq.s32.totalorder %s14, 0
    %p73 = por %p71, %p72
    %p74 = scmp.ne.s32.totalorder %s60, %s61
    %p75 = scmp.eq.s32.totalorder %s15, 1
    %p76 = por %p74, %p75
    %p78 = scmp.ne.s32.totalorder %s61, %s77
    %p79 = scmp.eq.s32.totalorder %s15, 0
    %p80 = por %p78, %p79
    %s81 = ssub.s32 %s17, %s24
    %p82 = scmp.eq.s32.totalorder %s81, 0
    %s84 = sadd.s32 %s83, 1
    %s85 = scalar_select %p82, %s83, %s84
    %p88 = pneg %p82
    %p89 = scmp.eq.s32.totalorder %s9, 1
    %p90 = por %p88, %p89
    %p91 = scmp.ne.s32.totalorder %s83, %s86
    %p92 = scmp.eq.s32.totalorder %s9, 0
    %p93 = por %p91, %p92
    %p94 = scmp.ne.s32.totalorder %s83, %s86
    %p95 = scmp.eq.s32.totalorder %s14, 1
    %p96 = por %p94, %p95
    %p97 = scmp.ne.s32.totalorder %s86, %s87
    %p98 = scmp.eq.s32.totalorder %s14, 0
    %p99 = por %p97, %p98
    %p100 = scmp.ne.s32.totalorder %s86, %s87
    %p101 = scmp.eq.s32.totalorder %s15, 1
    %p102 = por %p100, %p101
    %p104 = scmp.ne.s32.totalorder %s87, %s103
    %p105 = scmp.eq.s32.totalorder %s15, 0
    %p106 = por %p104, %p105
    %s107 = ssub.s32 %s16, %s28
    %s108 = ssub.s32 %s17, %s24
    %s109 = sor.u32 %s107, %s108
    %p110 = scmp.eq.s32.totalorder %s109, 0
    %s112 = sadd.s32 %s111, 1
    %s113 = scalar_select %p110, %s111, %s112
    %p116 = pneg %p110
    %p117 = scmp.eq.s32.totalorder %s9, 1
    %p118 = por %p116, %p117
    %p119 = scmp.ne.s32.totalorder %s111, %s114
    %p120 = scmp.eq.s32.totalorder %s9, 0
    %p121 = por %p119, %p120
    %p122 = scmp.ne.s32.totalorder %s111, %s114
    %p123 = scmp.eq.s32.totalorder %s14, 1
    %p124 = por %p122, %p123
    %p125 = scmp.ne.s32.totalorder %s114, %s115
    %p126 = scmp.eq.s32.totalorder %s14, 0
    %p127 = por %p125, %p126
    %p128 = scmp.ne.s32.totalorder %s114, %s115
    %p129 = scmp.eq.s32.totalorder %s15, 1
    %p130 = por %p128, %p129
    %p132 = scmp.ne.s32.totalorder %s115, %s131
    %p133 = scmp.eq.s32.totalorder %s15, 0
    %p134 = por %p132, %p133
    %p135 = scmp.le.s32.totalorder 1, %s9
    %p136 = scmp.lt.s32.totalorder %s9, 3
    %p137 = pnand %p135, %p136
    %p138 = pneg %p137
    // Predicated region
    $region9: #{got_ocr2_multimodal_projector.3} parent=5 // pred_check
      _
    $region10: #{got_ocr2_multimodal_projector.3} parent=5 // pred_check_branch
      %140 = sbr.rel (%p137) target = $region12
    $region11: #{got_ocr2_multimodal_projector.3} parent=5 // pred_region
      %s141 = ssub.s32 %s9, 1
      // Predicated region
      $region13: #{got_ocr2_multimodal_projector.3} parent=11 // pred_check
        %p142 = pneg %p73
      $region14: #{got_ocr2_multimodal_projector.3} parent=11 // pred_check_branch
        %144 = sbr.rel (%p142) target = $region16
      $region15: #{got_ocr2_multimodal_projector.3} parent=11 // pred_region
        %p145 = scmp.lt.s32.totalorder %s19, 0
        %s146 = scalar_select %p145, %s19, 0
        %s147 = smul.addr %s146, 4
        %s148 = scalar_lea.vmem %s1, %s147
      $region16: #{got_ocr2_multimodal_projector.3} parent=11 // pred_fallthru
        _
      // Predicated region
      $region17: #{got_ocr2_multimodal_projector.3} parent=11 // pred_check
        %p149 = pneg %p99
      $region18: #{got_ocr2_multimodal_projector.3} parent=11 // pred_check_branch
        %151 = sbr.rel (%p149) target = $region20
      $region19: #{got_ocr2_multimodal_projector.3} parent=11 // pred_region
        %p152 = scmp.lt.s32.totalorder %s19, 0
        %s153 = scalar_select %p152, %s19, 0
        %s154 = scalar_lea.vmem %s2, %s153
      $region20: #{got_ocr2_multimodal_projector.3} parent=11 // pred_fallthru
        _
    $region12: #{got_ocr2_multimodal_projector.3} parent=5 // pred_fallthru
      _
    %p155 = scmp.lt.s32.totalorder %s9, 2
    // Predicated region
    $region21: #{got_ocr2_multimodal_projector.3} parent=5 // pred_check
      %p156 = pneg %p155
    $region22: #{got_ocr2_multimodal_projector.3} parent=5 // pred_check_branch
      %158 = sbr.rel (%p156) target = $region24
    $region23: #{got_ocr2_multimodal_projector.3} parent=5 // pred_region
      // Predicated region
      $region25: #{got_ocr2_multimodal_projector.3} parent=23 // pred_check
        %p159 = pneg %p41
      $region26: #{got_ocr2_multimodal_projector.3} parent=23 // pred_check_branch
        %161 = sbr.rel (%p159) target = $region28
      $region27: #{got_ocr2_multimodal_projector.3} parent=23 // pred_region
        %p162 = scmp.lt.s32.totalorder %s16, 1
        %s163 = scalar_select %p162, %s16, 1
        %s164 = smul.addr %s163, 72
        %s165 = smul.addr %s164, 4
        %s166 = scalar_lea.vmem %s0, %s165
      $region28: #{got_ocr2_multimodal_projector.3} parent=23 // pred_fallthru
        _
    $region24: #{got_ocr2_multimodal_projector.3} parent=5 // pred_fallthru
      _
    %p167 = scmp.le.s32.totalorder 1, %s9
    %p168 = scmp.lt.s32.totalorder %s9, 3
    %p169 = pnand %p167, %p168
    %p170 = pneg %p169
    // Predicated region
    $region29: #{got_ocr2_multimodal_projector.3} parent=5 // pred_check
      _
    $region30: #{got_ocr2_multimodal_projector.3} parent=5 // pred_check_branch
      %172 = sbr.rel (%p169) target = $region32
    $region31: #{got_ocr2_multimodal_projector.3} parent=5 // pred_region
      %s173 = ssub.s32 %s9, 1
      %p174 = scmp.lt.s32.totalorder %s18, 1
      %s175 = scalar_select %p174, %s18, 1
      %s176 = smul.addr %s175, 72
      %s177 = smul.addr %s176, 4
      %s178 = scalar_lea.vmem %s0, %s177
      %p179 = pneg %p47
      %p180 = pneg %p44
      %p181 = scmp.lt.s32.totalorder %s19, 0
      %s182 = scalar_select %p181, %s19, 0
      %s183 = smul.addr %s182, 4
      %s184 = scalar_lea.vmem %s1, %s183
      %p185 = pneg %p73
      %p186 = pneg %p70
      %p187 = scmp.lt.s32.totalorder %s19, 0
      %s188 = scalar_select %p187, %s19, 0
      %s189 = scalar_lea.vmem %s2, %s188
      %p190 = pneg %p99
      %p191 = pneg %p96
      %p192 = pneg %p127
      %p193 = pneg %p124
      %p194 = scmp.lt.s32.totalorder %s18, 1
      %s195 = scalar_select %p194, %s18, 1
      %p196 = scmp.lt.s32.totalorder %s19, 0
      %s197 = scalar_select %p196, %s19, 0
      %s198 = smul.addr %s195, 8
      %s199 = sadd.s32 %s197, %s198
      %s200 = smul.addr %s199, 8
      %s201 = scalar_lea.vmem %s3, %s200
      %p202 = scmp.lt.s32.totalorder %s18, 1
      %s203 = scalar_select %p202, %s18, 1
      %s204 = smul.addr %s203, 72
      %s205 = smul.addr %s204, 4
      %s206 = scalar_lea.vmem %s0, %s205
      %p207 = scmp.lt.s32.totalorder %s19, 0
      %s208 = scalar_select %p207, %s19, 0
      %s209 = smul.addr %s208, 4
      %s210 = scalar_lea.vmem %s1, %s209
      %p211 = scmp.lt.s32.totalorder %s19, 0
      %s212 = scalar_select %p211, %s19, 0
      %s213 = scalar_lea.vmem %s2, %s212
      %p214 = scmp.lt.s32.totalorder %s18, 1
      %s215 = scalar_select %p214, %s18, 1
      %p216 = scmp.lt.s32.totalorder %s19, 0
      %s217 = scalar_select %p216, %s19, 0
      %s218 = smul.addr %s215, 8
      %s219 = sadd.s32 %s217, %s218
      %s220 = smul.addr %s219, 8
      %s221 = scalar_lea.vmem %s3, %s220
      %v223 = vld [vmem:[%s206] sm:$0xf]
      %v224 = vld [vmem:[%s206 + $0x8] sm:$0xf]
      %v225 = vld [vmem:[%s206 + $0x10] sm:$0xf]
      %v226 = vld [vmem:[%s206 + $0x18] sm:$0xf]
      %v227 = vld [vmem:[%s206 + $0x20] sm:$0xf]
      %v228 = vld [vmem:[%s206 + $0x28] sm:$0xf]
      %v229 = vld [vmem:[%s206 + $0x30] sm:$0xf]
      %v230 = vld [vmem:[%s206 + $0x38] sm:$0xf]
      %v231 = vld [vmem:[%s210] sm:$0xf]
      %v232 = vld [vmem:[%s210 + $0x4] sm:$0xf]
      %s233 = scalar_lea.vmem %s206, 72
      %v234 = vld [vmem:[%s233] sm:$0xf]
      %v235 = vld [vmem:[%s233 + $0x8] sm:$0xf]
      %v236 = vld [vmem:[%s233 + $0x10] sm:$0xf]
      %v237 = vld [vmem:[%s233 + $0x18] sm:$0xf]
      %v238 = vld [vmem:[%s233 + $0x20] sm:$0xf]
      %v239 = vld [vmem:[%s233 + $0x28] sm:$0xf]
      %v240 = vld [vmem:[%s233 + $0x30] sm:$0xf]
      %v241 = vld [vmem:[%s233 + $0x38] sm:$0xf]
      %s242 = scalar_lea.vmem %s210, 8
      %v243 = vld [vmem:[%s242] sm:$0xf]
      %v244 = vld [vmem:[%s242 + $0x4] sm:$0xf]
      %v253 = vunpack.c.l.b16 %v234
      %v254 = vunpack.c.l.b16 %v235
      %v255 = vunpack.c.l.b16 %v236
      %v256 = vunpack.c.l.b16 %v237
      %v257 = vunpack.c.l.b16 %v238
      %v258 = vunpack.c.l.b16 %v239
      %v259 = vunpack.c.l.b16 %v240
      %v260 = vunpack.c.l.b16 %v241
      %v261 = vpack.c.b16 %v254, %v253
      %v262 = vpack.c.b16 %v256, %v255
      %v263 = vpack.c.b16 %v258, %v257
      %v264 = vpack.c.b16 %v260, %v259
      %v267 = vunpack.c.l.b16 %v243
      %v268 = vunpack.c.l.b16 %v244
      %v269 = vpack.c.b16 %v268, %v267
      %vm271 = vcmask 130048
      %v273 = vsel %vm271, %v261, 0
      %v276 = vsel %vm271, %v262, 0
      %v279 = vsel %vm271, %v263, 0
      %v282 = vsel %vm271, %v264, 0
      %284 = vmatprep.subr.bf16.mxu0 0
      %285 = vmatpush1.bf16.msra.mxu0 %v269
      %286 = vmatprep.subr.bf16.mxu0 0
      %287 = vmatpush1.bf16.msra.mxu0 0
      %288 = vmatprep.subr.bf16.mxu0 0
      %289 = vmatpush1.bf16.msra.mxu0 0
      %290 = vmatprep.subr.bf16.mxu0 0
      %291 = vmatpush1.bf16.msra.mxu0 0
      %292 = vmatprep.subr.bf16.mxu0 0
      %293 = vmatpush1.bf16.msra.mxu0 0
      %294 = vmatprep.subr.bf16.mxu0 0
      %295 = vmatpush1.bf16.msra.mxu0 0
      %296 = vmatprep.subr.bf16.mxu0 0
      %297 = vmatpush1.bf16.msra.mxu0 0
      %298 = vmatprep.subr.bf16.mxu0 0
      %299 = vmatpush1.bf16.msra.mxu0 0
      %300 = vmatprep.subr.bf16.mxu0 0
      %301 = vmatpush1.bf16.msra.mxu0 0
      %302 = vmatprep.subr.bf16.mxu0 0
      %303 = vmatpush1.bf16.msra.mxu0 0
      %304 = vmatprep.subr.bf16.mxu0 0
      %305 = vmatpush1.bf16.msra.mxu0 0
      %306 = vmatprep.subr.bf16.mxu0 0
      %307 = vmatpush1.bf16.msra.mxu0 0
      %308 = vmatprep.subr.bf16.mxu0 0
      %309 = vmatpush1.bf16.msra.mxu0 0
      %310 = vmatprep.subr.bf16.mxu0 0
      %311 = vmatpush1.bf16.msra.mxu0 0
      %312 = vmatprep.subr.bf16.mxu0 0
      %313 = vmatpush1.bf16.msra.mxu0 0
      %314 = vmatprep.subr.bf16.mxu0 0
      %315 = vmatpush1.bf16.msra.mxu0 0
      %316 = vmatprep.mubr.bf16.mxu0 0
      %317 = vmatmul.mubr.bf16.gmra.mrb[0].mxu0 %v273
      %v318 = vpop.f32.mrb[0].mxu0
      %v319 = vadd.f32 0.0, %v318
      %v320 = vpop.f32.mrb[0].mxu0
      %v321 = vpop.f32.mrb[0].mxu0
      %v322 = vadd.f32 0.0, %v321
      %v323 = vpop.f32.mrb[0].mxu0
      %324 = vmatprep.mubr.bf16.mxu0 0
      %325 = vmatmul.mubr.bf16.gmra.mrb[0].mxu0 %v276
      %v326 = vpop.f32.mrb[0].mxu0
      %v327 = vadd.f32 0.0, %v326
      %v328 = vpop.f32.mrb[0].mxu0
      %v329 = vpop.f32.mrb[0].mxu0
      %v330 = vadd.f32 0.0, %v329
      %v331 = vpop.f32.mrb[0].mxu0
      %332 = vmatprep.mubr.bf16.mxu0 0
      %333 = vmatmul.mubr.bf16.gmra.mrb[0].mxu0 %v279
      %v334 = vpop.f32.mrb[0].mxu0
      %v335 = vadd.f32 0.0, %v334
      %v336 = vpop.f32.mrb[0].mxu0
      %v337 = vpop.f32.mrb[0].mxu0
      %v338 = vadd.f32 0.0, %v337
      %v339 = vpop.f32.mrb[0].mxu0
      %340 = vmatprep.mubr.bf16.mxu0 0
      %341 = vmatmul.mubr.bf16.gmra.mrb[0].mxu0 %v282
      %v342 = vpop.f32.mrb[0].mxu0
      %v343 = vadd.f32 0.0, %v342
      %v344 = vpop.f32.mrb[0].mxu0
      %v345 = vpop.f32.mrb[0].mxu0
      %v346 = vadd.f32 0.0, %v345
      %v347 = vpop.f32.mrb[0].mxu0
      %348 = vdwg.mxu0
      %v357 = vunpack.c.l.b16 %v223
      %v358 = vunpack.c.l.b16 %v224
      %v359 = vunpack.c.l.b16 %v225
      %v360 = vunpack.c.l.b16 %v226
      %v361 = vunpack.c.l.b16 %v227
      %v362 = vunpack.c.l.b16 %v228
      %v363 = vunpack.c.l.b16 %v229
      %v364 = vunpack.c.l.b16 %v230
      %v365 = vpack.c.b16 %v358, %v357
      %v366 = vpack.c.b16 %v360, %v359
      %v367 = vpack.c.b16 %v362, %v361
      %v368 = vpack.c.b16 %v364, %v363
      %v371 = vunpack.c.l.b16 %v231
      %v372 = vunpack.c.l.b16 %v232
      %v373 = vpack.c.b16 %v372, %v371
      %v376 = vsel %vm271, %v365, 0
      %v379 = vsel %vm271, %v366, 0
      %v382 = vsel %vm271, %v367, 0
      %v385 = vsel %vm271, %v368, 0
      %387 = vmatprep.subr.bf16.mxu0 0
      %388 = vmatpush1.bf16.msra.mxu0 %v373
      %389 = vmatprep.subr.bf16.mxu0 0
      %390 = vmatpush1.bf16.msra.mxu0 0
      %391 = vmatprep.subr.bf16.mxu0 0
      %392 = vmatpush1.bf16.msra.mxu0 0
      %393 = vmatprep.subr.bf16.mxu0 0
      %394 = vmatpush1.bf16.msra.mxu0 0
      %395 = vmatprep.subr.bf16.mxu0 0
      %396 = vmatpush1.bf16.msra.mxu0 0
      %397 = vmatprep.subr.bf16.mxu0 0
      %398 = vmatpush1.bf16.msra.mxu0 0
      %399 = vmatprep.subr.bf16.mxu0 0
      %400 = vmatpush1.bf16.msra.mxu0 0
      %401 = vmatprep.subr.bf16.mxu0 0
      %402 = vmatpush1.bf16.msra.mxu0 0
      %403 = vmatprep.subr.bf16.mxu0 0
      %404 = vmatpush1.bf16.msra.mxu0 0
      %405 = vmatprep.subr.bf16.mxu0 0
      %406 = vmatpush1.bf16.msra.mxu0 0
      %407 = vmatprep.subr.bf16.mxu0 0
      %408 = vmatpush1.bf16.msra.mxu0 0
      %409 = vmatprep.subr.bf16.mxu0 0
      %410 = vmatpush1.bf16.msra.mxu0 0
      %411 = vmatprep.subr.bf16.mxu0 0
      %412 = vmatpush1.bf16.msra.mxu0 0
      %413 = vmatprep.subr.bf16.mxu0 0
      %414 = vmatpush1.bf16.msra.mxu0 0
      %415 = vmatprep.subr.bf16.mxu0 0
      %416 = vmatpush1.bf16.msra.mxu0 0
      %417 = vmatprep.subr.bf16.mxu0 0
      %418 = vmatpush1.bf16.msra.mxu0 0
      %419 = vmatprep.mubr.bf16.mxu0 0
      %420 = vmatmul.mubr.bf16.gmra.mrb[0].mxu0 %v376
      %v421 = vpop.f32.mrb[0].mxu0
      %v422 = vadd.f32 %v319, %v421
      %v423 = vpop.f32.mrb[0].mxu0
      %v424 = vpop.f32.mrb[0].mxu0
      %v425 = vadd.f32 %v322, %v424
      %v426 = vpop.f32.mrb[0].mxu0
      %427 = vmatprep.mubr.bf16.mxu0 0
      %428 = vmatmul.mubr.bf16.gmra.mrb[0].mxu0 %v379
      %v429 = vpop.f32.mrb[0].mxu0
      %v430 = vadd.f32 %v327, %v429
      %v431 = vpop.f32.mrb[0].mxu0
      %v432 = vpop.f32.mrb[0].mxu0
      %v433 = vadd.f32 %v330, %v432
      %v434 = vpop.f32.mrb[0].mxu0
      %435 = vmatprep.mubr.bf16.mxu0 0
      %436 = vmatmul.mubr.bf16.gmra.mrb[0].mxu0 %v382
      %v437 = vpop.f32.mrb[0].mxu0
      %v438 = vadd.f32 %v335, %v437
      %v439 = vpop.f32.mrb[0].mxu0
      %v440 = vpop.f32.mrb[0].mxu0
      %v441 = vadd.f32 %v338, %v440
      %v442 = vpop.f32.mrb[0].mxu0
      %443 = vmatprep.mubr.bf16.mxu0 0
      %444 = vmatmul.mubr.bf16.gmra.mrb[0].mxu0 %v385
      %v445 = vpop.f32.mrb[0].mxu0
      %v446 = vadd.f32 %v343, %v445
      %v447 = vpop.f32.mrb[0].mxu0
      %v448 = vpop.f32.mrb[0].mxu0
      %v449 = vadd.f32 %v346, %v448
      %v450 = vpop.f32.mrb[0].mxu0
      %451 = vdwg.mxu0
      %v452 = vld [vmem:[%s206] sm:$0xf]
      %v453 = vld [vmem:[%s206 + $0x4] sm:$0x1]
      %v454 = vld [vmem:[%s206 + $0x8] sm:$0xf]
      %v455 = vld [vmem:[%s206 + $0xc] sm:$0x1]
      %v456 = vld [vmem:[%s206 + $0x10] sm:$0xf]
      %v457 = vld [vmem:[%s206 + $0x14] sm:$0x1]
      %v458 = vld [vmem:[%s206 + $0x18] sm:$0xf]
      %v459 = vld [vmem:[%s206 + $0x1c] sm:$0x1]
      %v460 = vld [vmem:[%s206 + $0x20] sm:$0xf]
      %v461 = vld [vmem:[%s206 + $0x24] sm:$0x1]
      %v462 = vld [vmem:[%s206 + $0x28] sm:$0xf]
      %v463 = vld [vmem:[%s206 + $0x2c] sm:$0x1]
      %v464 = vld [vmem:[%s206 + $0x30] sm:$0xf]
      %v465 = vld [vmem:[%s206 + $0x34] sm:$0x1]
      %v466 = vld [vmem:[%s206 + $0x38] sm:$0xf]
      %v467 = vld [vmem:[%s206 + $0x3c] sm:$0x1]
      %vm468 = vsmask.f32 3328
      %vm469 = vsmask.f32 7440
      %vm470 = vmor %vm468, %vm469
      %v472 = vshrl.u32 %v452, 16
      %v474 = vrot.slane %v472, 4
      %v475 = vshll.u32 %v452, 16
      %v477 = vrot.slane %v475, 5
      %v478 = vor.u32 %v474, %v477
      %v479 = vrot.slane %v478, 4
      %v481 = vshll.u32 %v453, 16
      %v483 = vrot.slane %v481, 5
      %v484 = vsel %vm470, %v479, %v483
      %v486 = vshrl.u32 %v454, 16
      %v488 = vrot.slane %v486, 4
      %v489 = vshll.u32 %v454, 16
      %v491 = vrot.slane %v489, 5
      %v492 = vor.u32 %v488, %v491
      %v493 = vrot.slane %v492, 4
      %v495 = vshll.u32 %v455, 16
      %v497 = vrot.slane %v495, 5
      %v498 = vsel %vm470, %v493, %v497
      %v500 = vshrl.u32 %v456, 16
      %v502 = vrot.slane %v500, 4
      %v503 = vshll.u32 %v456, 16
      %v505 = vrot.slane %v503, 5
      %v506 = vor.u32 %v502, %v505
      %v507 = vrot.slane %v506, 4
      %v509 = vshll.u32 %v457, 16
      %v511 = vrot.slane %v509, 5
      %v512 = vsel %vm470, %v507, %v511
      %v514 = vshrl.u32 %v458, 16
      %v516 = vrot.slane %v514, 4
      %v517 = vshll.u32 %v458, 16
      %v519 = vrot.slane %v517, 5
      %v520 = vor.u32 %v516, %v519
      %v521 = vrot.slane %v520, 4
      %v523 = vshll.u32 %v459, 16
      %v525 = vrot.slane %v523, 5
      %v526 = vsel %vm470, %v521, %v525
      %v528 = vshrl.u32 %v460, 16
      %v530 = vrot.slane %v528, 4
      %v531 = vshll.u32 %v460, 16
      %v533 = vrot.slane %v531, 5
      %v534 = vor.u32 %v530, %v533
      %v535 = vrot.slane %v534, 4
      %v537 = vshll.u32 %v461, 16
      %v539 = vrot.slane %v537, 5
      %v540 = vsel %vm470, %v535, %v539
      %v542 = vshrl.u32 %v462, 16
      %v544 = vrot.slane %v542, 4
      %v545 = vshll.u32 %v462, 16
      %v547 = vrot.slane %v545, 5
      %v548 = vor.u32 %v544, %v547
      %v549 = vrot.slane %v548, 4
      %v551 = vshll.u32 %v463, 16
      %v553 = vrot.slane %v551, 5
      %v554 = vsel %vm470, %v549, %v553
      %v556 = vshrl.u32 %v464, 16
      %v558 = vrot.slane %v556, 4
      %v559 = vshll.u32 %v464, 16
      %v561 = vrot.slane %v559, 5
      %v562 = vor.u32 %v558, %v561
      %v563 = vrot.slane %v562, 4
      %v565 = vshll.u32 %v465, 16
      %v567 = vrot.slane %v565, 5
      %v568 = vsel %vm470, %v563, %v567
      %v570 = vshrl.u32 %v466, 16
      %v572 = vrot.slane %v570, 4
      %v573 = vshll.u32 %v466, 16
      %v575 = vrot.slane %v573, 5
      %v576 = vor.u32 %v572, %v575
      %v577 = vrot.slane %v576, 4
      %v579 = vshll.u32 %v467, 16
      %v581 = vrot.slane %v579, 5
      %v582 = vsel %vm470, %v577, %v581
      %s583 = scalar_lea.vmem %s210, 16
      %v584 = vld [vmem:[%s583] sm:$0xf]
      %v585 = vld [vmem:[%s583 + $0x4] sm:$0xf]
      %v586 = vunpack.c.l.b16 %v484
      %v587 = vunpack.c.l.b16 %v498
      %v588 = vunpack.c.l.b16 %v512
      %v589 = vunpack.c.l.b16 %v526
      %v590 = vunpack.c.l.b16 %v540
      %v591 = vunpack.c.l.b16 %v554
      %v592 = vunpack.c.l.b16 %v568
      %v593 = vunpack.c.l.b16 %v582
      %v594 = vpack.c.b16 %v587, %v586
      %v595 = vpack.c.b16 %v589, %v588
      %v596 = vpack.c.b16 %v591, %v590
      %v597 = vpack.c.b16 %v593, %v592
      %v600 = vunpack.c.l.b16 %v584
      %v601 = vunpack.c.l.b16 %v585
      %v602 = vpack.c.b16 %v601, %v600
      %v605 = vsel %vm271, %v594, 0
      %v608 = vsel %vm271, %v595, 0
      %v611 = vsel %vm271, %v596, 0
      %v614 = vsel %vm271, %v597, 0
      %616 = vmatprep.subr.bf16.mxu0 0
      %617 = vmatpush1.bf16.msra.mxu0 %v602
      %618 = vmatprep.subr.bf16.mxu0 0
      %619 = vmatpush1.bf16.msra.mxu0 0
      %620 = vmatprep.subr.bf16.mxu0 0
      %621 = vmatpush1.bf16.msra.mxu0 0
      %622 = vmatprep.subr.bf16.mxu0 0
      %623 = vmatpush1.bf16.msra.mxu0 0
      %624 = vmatprep.subr.bf16.mxu0 0
      %625 = vmatpush1.bf16.msra.mxu0 0
      %626 = vmatprep.subr.bf16.mxu0 0
      %627 = vmatpush1.bf16.msra.mxu0 0
      %628 = vmatprep.subr.bf16.mxu0 0
      %629 = vmatpush1.bf16.msra.mxu0 0
      %630 = vmatprep.subr.bf16.mxu0 0
      %631 = vmatpush1.bf16.msra.mxu0 0
      %632 = vmatprep.subr.bf16.mxu0 0
      %633 = vmatpush1.bf16.msra.mxu0 0
      %634 = vmatprep.subr.bf16.mxu0 0
      %635 = vmatpush1.bf16.msra.mxu0 0
      %636 = vmatprep.subr.bf16.mxu0 0
      %637 = vmatpush1.bf16.msra.mxu0 0
      %638 = vmatprep.subr.bf16.mxu0 0
      %639 = vmatpush1.bf16.msra.mxu0 0
      %640 = vmatprep.subr.bf16.mxu0 0
      %641 = vmatpush1.bf16.msra.mxu0 0
      %642 = vmatprep.subr.bf16.mxu0 0
      %643 = vmatpush1.bf16.msra.mxu0 0
      %644 = vmatprep.subr.bf16.mxu0 0
      %645 = vmatpush1.bf16.msra.mxu0 0
      %646 = vmatprep.subr.bf16.mxu0 0
      %647 = vmatpush1.bf16.msra.mxu0 0
      %648 = vmatprep.mubr.bf16.mxu0 0
      %649 = vmatmul.mubr.bf16.gmra.mrb[0].mxu0 %v605
      %v650 = vpop.f32.mrb[0].mxu0
      %v651 = vadd.f32 0.0, %v650
      %v652 = vpop.f32.mrb[0].mxu0
      %v653 = vpop.f32.mrb[0].mxu0
      %v654 = vadd.f32 0.0, %v653
      %v655 = vpop.f32.mrb[0].mxu0
      %656 = vmatprep.mubr.bf16.mxu0 0
      %657 = vmatmul.mubr.bf16.gmra.mrb[0].mxu0 %v608
      %v658 = vpop.f32.mrb[0].mxu0
      %v659 = vadd.f32 0.0, %v658
      %v660 = vpop.f32.mrb[0].mxu0
      %v661 = vpop.f32.mrb[0].mxu0
      %v662 = vadd.f32 0.0, %v661
      %v663 = vpop.f32.mrb[0].mxu0
      %664 = vmatprep.mubr.bf16.mxu0 0
      %665 = vmatmul.mubr.bf16.gmra.mrb[0].mxu0 %v611
      %v666 = vpop.f32.mrb[0].mxu0
      %v667 = vadd.f32 0.0, %v666
      %v668 = vpop.f32.mrb[0].mxu0
      %v669 = vpop.f32.mrb[0].mxu0
      %v670 = vadd.f32 0.0, %v669
      %v671 = vpop.f32.mrb[0].mxu0
      %672 = vmatprep.mubr.bf16.mxu0 0
      %673 = vmatmul.mubr.bf16.gmra.mrb[0].mxu0 %v614
      %v674 = vpop.f32.mrb[0].mxu0
      %v675 = vadd.f32 0.0, %v674
      %v676 = vpop.f32.mrb[0].mxu0
      %v677 = vpop.f32.mrb[0].mxu0
      %v678 = vadd.f32 0.0, %v677
      %v679 = vpop.f32.mrb[0].mxu0
      %680 = vdwg.mxu0
      %v681 = vadd.f32 %v422, %v651
      %v682 = vadd.f32 %v425, %v654
      %v683 = vadd.f32 %v430, %v659
      %v684 = vadd.f32 %v433, %v662
      %v685 = vadd.f32 %v438, %v667
      %v686 = vadd.f32 %v441, %v670
      %v687 = vadd.f32 %v446, %v675
      %v688 = vadd.f32 %v449, %v678
      %s689 = scalar_lea.vmem %s206, 144
      %v690 = vld [vmem:[%s689] sm:$0xf]
      %v691 = vld [vmem:[%s689 + $0x8] sm:$0xf]
      %v692 = vld [vmem:[%s689 + $0x10] sm:$0xf]
      %v693 = vld [vmem:[%s689 + $0x18] sm:$0xf]
      %v694 = vld [vmem:[%s689 + $0x20] sm:$0xf]
      %v695 = vld [vmem:[%s689 + $0x28] sm:$0xf]
      %v696 = vld [vmem:[%s689 + $0x30] sm:$0xf]
      %v697 = vld [vmem:[%s689 + $0x38] sm:$0xf]
      %s698 = scalar_lea.vmem %s210, 24
      %v699 = vld [vmem:[%s698] sm:$0xf]
      %v700 = vld [vmem:[%s698 + $0x4] sm:$0xf]
      %v709 = vunpack.c.l.b16 %v690
      %v710 = vunpack.c.l.b16 %v691
      %v711 = vunpack.c.l.b16 %v692
      %v712 = vunpack.c.l.b16 %v693
      %v713 = vunpack.c.l.b16 %v694
      %v714 = vunpack.c.l.b16 %v695
      %v715 = vunpack.c.l.b16 %v696
      %v716 = vunpack.c.l.b16 %v697
      %v717 = vpack.c.b16 %v710, %v709
      %v718 = vpack.c.b16 %v712, %v711
      %v719 = vpack.c.b16 %v714, %v713
      %v720 = vpack.c.b16 %v716, %v715
      %v723 = vunpack.c.l.b16 %v699
      %v724 = vunpack.c.l.b16 %v700
      %v725 = vpack.c.b16 %v724, %v723
      %v728 = vsel %vm271, %v717, 0
      %v731 = vsel %vm271, %v718, 0
      %v734 = vsel %vm271, %v719, 0
      %v737 = vsel %vm271, %v720, 0
      %739 = vmatprep.subr.bf16.mxu0 0
      %740 = vmatpush1.bf16.msra.mxu0 %v725
      %741 = vmatprep.subr.bf16.mxu0 0
      %742 = vmatpush1.bf16.msra.mxu0 0
      %743 = vmatprep.subr.bf16.mxu0 0
      %744 = vmatpush1.bf16.msra.mxu0 0
      %745 = vmatprep.subr.bf16.mxu0 0
      %746 = vmatpush1.bf16.msra.mxu0 0
      %747 = vmatprep.subr.bf16.mxu0 0
      %748 = vmatpush1.bf16.msra.mxu0 0
      %749 = vmatprep.subr.bf16.mxu0 0
      %750 = vmatpush1.bf16.msra.mxu0 0
      %751 = vmatprep.subr.bf16.mxu0 0
      %752 = vmatpush1.bf16.msra.mxu0 0
      %753 = vmatprep.subr.bf16.mxu0 0
      %754 = vmatpush1.bf16.msra.mxu0 0
      %755 = vmatprep.subr.bf16.mxu0 0
      %756 = vmatpush1.bf16.msra.mxu0 0
      %757 = vmatprep.subr.bf16.mxu0 0
      %758 = vmatpush1.bf16.msra.mxu0 0
      %759 = vmatprep.subr.bf16.mxu0 0
      %760 = vmatpush1.bf16.msra.mxu0 0
      %761 = vmatprep.subr.bf16.mxu0 0
      %762 = vmatpush1.bf16.msra.mxu0 0
      %763 = vmatprep.subr.bf16.mxu0 0
      %764 = vmatpush1.bf16.msra.mxu0 0
      %765 = vmatprep.subr.bf16.mxu0 0
      %766 = vmatpush1.bf16.msra.mxu0 0
      %767 = vmatprep.subr.bf16.mxu0 0
      %768 = vmatpush1.bf16.msra.mxu0 0
      %769 = vmatprep.subr.bf16.mxu0 0
      %770 = vmatpush1.bf16.msra.mxu0 0
      %771 = vmatprep.mubr.bf16.mxu0 0
      %772 = vmatmul.mubr.bf16.gmra.mrb[0].mxu0 %v728
      %v773 = vpop.f32.mrb[0].mxu0
      %v774 = vadd.f32 0.0, %v773
      %v775 = vpop.f32.mrb[0].mxu0
      %v776 = vpop.f32.mrb[0].mxu0
      %v777 = vadd.f32 0.0, %v776
      %v778 = vpop.f32.mrb[0].mxu0
      %779 = vmatprep.mubr.bf16.mxu0 0
      %780 = vmatmul.mubr.bf16.gmra.mrb[0].mxu0 %v731
      %v781 = vpop.f32.mrb[0].mxu0
      %v782 = vadd.f32 0.0, %v781
      %v783 = vpop.f32.mrb[0].mxu0
      %v784 = vpop.f32.mrb[0].mxu0
      %v785 = vadd.f32 0.0, %v784
      %v786 = vpop.f32.mrb[0].mxu0
      %787 = vmatprep.mubr.bf16.mxu0 0
      %788 = vmatmul.mubr.bf16.gmra.mrb[0].mxu0 %v734
      %v789 = vpop.f32.mrb[0].mxu0
      %v790 = vadd.f32 0.0, %v789
      %v791 = vpop.f32.mrb[0].mxu0
      %v792 = vpop.f32.mrb[0].mxu0
      %v793 = vadd.f32 0.0, %v792
      %v794 = vpop.f32.mrb[0].mxu0
      %795 = vmatprep.mubr.bf16.mxu0 0
      %796 = vmatmul.mubr.bf16.gmra.mrb[0].mxu0 %v737
      %v797 = vpop.f32.mrb[0].mxu0
      %v798 = vadd.f32 0.0, %v797
      %v799 = vpop.f32.mrb[0].mxu0
      %v800 = vpop.f32.mrb[0].mxu0
      %v801 = vadd.f32 0.0, %v800
      %v802 = vpop.f32.mrb[0].mxu0
      %803 = vdwg.mxu0
      %v804 = vadd.f32 %v681, %v774
      %v805 = vadd.f32 %v682, %v777
      %v806 = vadd.f32 %v683, %v782
      %v807 = vadd.f32 %v684, %v785
      %v808 = vadd.f32 %v685, %v790
      %v809 = vadd.f32 %v686, %v793
      %v810 = vadd.f32 %v687, %v798
      %v811 = vadd.f32 %v688, %v801
      %s812 = scalar_lea.vmem %s206, 216
      %v813 = vld [vmem:[%s812] sm:$0xf]
      %v814 = vld [vmem:[%s812 + $0x8] sm:$0xf]
      %v815 = vld [vmem:[%s812 + $0x10] sm:$0xf]
      %v816 = vld [vmem:[%s812 + $0x18] sm:$0xf]
      %v817 = vld [vmem:[%s812 + $0x20] sm:$0xf]
      %v818 = vld [vmem:[%s812 + $0x28] sm:$0xf]
      %v819 = vld [vmem:[%s812 + $0x30] sm:$0xf]
      %v820 = vld [vmem:[%s812 + $0x38] sm:$0xf]
      %s821 = scalar_lea.vmem %s210, 32
      %v822 = vld [vmem:[%s821] sm:$0xf]
      %v823 = vld [vmem:[%s821 + $0x4] sm:$0xf]
      %v832 = vunpack.c.l.b16 %v813
      %v833 = vunpack.c.l.b16 %v814
      %v834 = vunpack.c.l.b16 %v815
      %v835 = vunpack.c.l.b16 %v816
      %v836 = vunpack.c.l.b16 %v817
      %v837 = vunpack.c.l.b16 %v818
      %v838 = vunpack.c.l.b16 %v819
      %v839 = vunpack.c.l.b16 %v820
      %v840 = vpack.c.b16 %v833, %v832
      %v841 = vpack.c.b16 %v835, %v834
      %v842 = vpack.c.b16 %v837, %v836
      %v843 = vpack.c.b16 %v839, %v838
      %v846 = vunpack.c.l.b16 %v822
      %v847 = vunpack.c.l.b16 %v823
      %v848 = vpack.c.b16 %v847, %v846
      %v851 = vsel %vm271, %v840, 0
      %v854 = vsel %vm271, %v841, 0
      %v857 = vsel %vm271, %v842, 0
      %v860 = vsel %vm271, %v843, 0
      %862 = vmatprep.subr.bf16.mxu0 0
      %863 = vmatpush1.bf16.msra.mxu0 %v848
      %864 = vmatprep.subr.bf16.mxu0 0
      %865 = vmatpush1.bf16.msra.mxu0 0
      %866 = vmatprep.subr.bf16.mxu0 0
      %867 = vmatpush1.bf16.msra.mxu0 0
      %868 = vmatprep.subr.bf16.mxu0 0
      %869 = vmatpush1.bf16.msra.mxu0 0
      %870 = vmatprep.subr.bf16.mxu0 0
      %871 = vmatpush1.bf16.msra.mxu0 0
      %872 = vmatprep.subr.bf16.mxu0 0
      %873 = vmatpush1.bf16.msra.mxu0 0
      %874 = vmatprep.subr.bf16.mxu0 0
      %875 = vmatpush1.bf16.msra.mxu0 0
      %876 = vmatprep.subr.bf16.mxu0 0
      %877 = vmatpush1.bf16.msra.mxu0 0
      %878 = vmatprep.subr.bf16.mxu0 0
      %879 = vmatpush1.bf16.msra.mxu0 0
      %880 = vmatprep.subr.bf16.mxu0 0
      %881 = vmatpush1.bf16.msra.mxu0 0
      %882 = vmatprep.subr.bf16.mxu0 0
      %883 = vmatpush1.bf16.msra.mxu0 0
      %884 = vmatprep.subr.bf16.mxu0 0
      %885 = vmatpush1.bf16.msra.mxu0 0
      %886 = vmatprep.subr.bf16.mxu0 0
      %887 = vmatpush1.bf16.msra.mxu0 0
      %888 = vmatprep.subr.bf16.mxu0 0
      %889 = vmatpush1.bf16.msra.mxu0 0
      %890 = vmatprep.subr.bf16.mxu0 0
      %891 = vmatpush1.bf16.msra.mxu0 0
      %892 = vmatprep.subr.bf16.mxu0 0
      %893 = vmatpush1.bf16.msra.mxu0 0
      %894 = vmatprep.mubr.bf16.mxu0 0
      %895 = vmatmul.mubr.bf16.gmra.mrb[0].mxu0 %v851
      %v896 = vpop.f32.mrb[0].mxu0
      %v897 = vadd.f32 0.0, %v896
      %v898 = vpop.f32.mrb[0].mxu0
      %v899 = vpop.f32.mrb[0].mxu0
      %v900 = vadd.f32 0.0, %v899
      %v901 = vpop.f32.mrb[0].mxu0
      %902 = vmatprep.mubr.bf16.mxu0 0
      %903 = vmatmul.mubr.bf16.gmra.mrb[0].mxu0 %v854
      %v904 = vpop.f32.mrb[0].mxu0
      %v905 = vadd.f32 0.0, %v904
      %v906 = vpop.f32.mrb[0].mxu0
      %v907 = vpop.f32.mrb[0].mxu0
      %v908 = vadd.f32 0.0, %v907
      %v909 = vpop.f32.mrb[0].mxu0
      %910 = vmatprep.mubr.bf16.mxu0 0
      %911 = vmatmul.mubr.bf16.gmra.mrb[0].mxu0 %v857
      %v912 = vpop.f32.mrb[0].mxu0
      %v913 = vadd.f32 0.0, %v912
      %v914 = vpop.f32.mrb[0].mxu0
      %v915 = vpop.f32.mrb[0].mxu0
      %v916 = vadd.f32 0.0, %v915
      %v917 = vpop.f32.mrb[0].mxu0
      %918 = vmatprep.mubr.bf16.mxu0 0
      %919 = vmatmul.mubr.bf16.gmra.mrb[0].mxu0 %v860
      %v920 = vpop.f32.mrb[0].mxu0
      %v921 = vadd.f32 0.0, %v920
      %v922 = vpop.f32.mrb[0].mxu0
      %v923 = vpop.f32.mrb[0].mxu0
      %v924 = vadd.f32 0.0, %v923
      %v925 = vpop.f32.mrb[0].mxu0
      %926 = vdwg.mxu0
      %v927 = vadd.f32 %v804, %v897
      %v928 = vadd.f32 %v805, %v900
      %v929 = vadd.f32 %v806, %v905
      %v930 = vadd.f32 %v807, %v908
      %v931 = vadd.f32 %v808, %v913
      %v932 = vadd.f32 %v809, %v916
      %v933 = vadd.f32 %v810, %v921
      %v934 = vadd.f32 %v811, %v924
      %v935 = vld [vmem:[%s689] sm:$0xf]
      %v936 = vld [vmem:[%s689 + $0x4] sm:$0x1]
      %v937 = vld [vmem:[%s689 + $0x8] sm:$0xf]
      %v938 = vld [vmem:[%s689 + $0xc] sm:$0x1]
      %v939 = vld [vmem:[%s689 + $0x10] sm:$0xf]
      %v940 = vld [vmem:[%s689 + $0x14] sm:$0x1]
      %v941 = vld [vmem:[%s689 + $0x18] sm:$0xf]
      %v942 = vld [vmem:[%s689 + $0x1c] sm:$0x1]
      %v943 = vld [vmem:[%s689 + $0x20] sm:$0xf]
      %v944 = vld [vmem:[%s689 + $0x24] sm:$0x1]
      %v945 = vld [vmem:[%s689 + $0x28] sm:$0xf]
      %v946 = vld [vmem:[%s689 + $0x2c] sm:$0x1]
      %v947 = vld [vmem:[%s689 + $0x30] sm:$0xf]
      %v948 = vld [vmem:[%s689 + $0x34] sm:$0x1]
      %v949 = vld [vmem:[%s689 + $0x38] sm:$0xf]
      %v950 = vld [vmem:[%s689 + $0x3c] sm:$0x1]
      %v952 = vshrl.u32 %v935, 16
      %v954 = vrot.slane %v952, 4
      %v955 = vshll.u32 %v935, 16
      %v957 = vrot.slane %v955, 5
      %v958 = vor.u32 %v954, %v957
      %v959 = vrot.slane %v958, 4
      %v961 = vshll.u32 %v936, 16
      %v963 = vrot.slane %v961, 5
      %v964 = vsel %vm470, %v959, %v963
      %v966 = vshrl.u32 %v937, 16
      %v968 = vrot.slane %v966, 4
      %v969 = vshll.u32 %v937, 16
      %v971 = vrot.slane %v969, 5
      %v972 = vor.u32 %v968, %v971
      %v973 = vrot.slane %v972, 4
      %v975 = vshll.u32 %v938, 16
      %v977 = vrot.slane %v975, 5
      %v978 = vsel %vm470, %v973, %v977
      %v980 = vshrl.u32 %v939, 16
      %v982 = vrot.slane %v980, 4
      %v983 = vshll.u32 %v939, 16
      %v985 = vrot.slane %v983, 5
      %v986 = vor.u32 %v982, %v985
      %v987 = vrot.slane %v986, 4
      %v989 = vshll.u32 %v940, 16
      %v991 = vrot.slane %v989, 5
      %v992 = vsel %vm470, %v987, %v991
      %v994 = vshrl.u32 %v941, 16
      %v996 = vrot.slane %v994, 4
      %v997 = vshll.u32 %v941, 16
      %v999 = vrot.slane %v997, 5
      %v1000 = vor.u32 %v996, %v999
      %v1001 = vrot.slane %v1000, 4
      %v1003 = vshll.u32 %v942, 16
      %v1005 = vrot.slane %v1003, 5
      %v1006 = vsel %vm470, %v1001, %v1005
      %v1008 = vshrl.u32 %v943, 16
      %v1010 = vrot.slane %v1008, 4
      %v1011 = vshll.u32 %v943, 16
      %v1013 = vrot.slane %v1011, 5
      %v1014 = vor.u32 %v1010, %v1013
      %v1015 = vrot.slane %v1014, 4
      %v1017 = vshll.u32 %v944, 16
      %v1019 = vrot.slane %v1017, 5
      %v1020 = vsel %vm470, %v1015, %v1019
      %v1022 = vshrl.u32 %v945, 16
      %v1024 = vrot.slane %v1022, 4
      %v1025 = vshll.u32 %v945, 16
      %v1027 = vrot.slane %v1025, 5
      %v1028 = vor.u32 %v1024, %v1027
      %v1029 = vrot.slane %v1028, 4
      %v1031 = vshll.u32 %v946, 16
      %v1033 = vrot.slane %v1031, 5
      %v1034 = vsel %vm470, %v1029, %v1033
      %v1036 = vshrl.u32 %v947, 16
      %v1038 = vrot.slane %v1036, 4
      %v1039 = vshll.u32 %v947, 16
      %v1041 = vrot.slane %v1039, 5
      %v1042 = vor.u32 %v1038, %v1041
      %v1043 = vrot.slane %v1042, 4
      %v1045 = vshll.u32 %v948, 16
      %v1047 = vrot.slane %v1045, 5
      %v1048 = vsel %vm470, %v1043, %v1047
      %v1050 = vshrl.u32 %v949, 16
      %v1052 = vrot.slane %v1050, 4
      %v1053 = vshll.u32 %v949, 16
      %v1055 = vrot.slane %v1053, 5
      %v1056 = vor.u32 %v1052, %v1055
      %v1057 = vrot.slane %v1056, 4
      %v1059 = vshll.u32 %v950, 16
      %v1061 = vrot.slane %v1059, 5
      %v1062 = vsel %vm470, %v1057, %v1061
      %s1063 = scalar_lea.vmem %s210, 40
      %v1064 = vld [vmem:[%s1063] sm:$0xf]
      %v1065 = vld [vmem:[%s1063 + $0x4] sm:$0xf]
      %v1066 = vunpack.c.l.b16 %v964
      %v1067 = vunpack.c.l.b16 %v978
      %v1068 = vunpack.c.l.b16 %v992
      %v1069 = vunpack.c.l.b16 %v1006
      %v1070 = vunpack.c.l.b16 %v1020
      %v1071 = vunpack.c.l.b16 %v1034
      %v1072 = vunpack.c.l.b16 %v1048
      %v1073 = vunpack.c.l.b16 %v1062
      %v1074 = vpack.c.b16 %v1067, %v1066
      %v1075 = vpack.c.b16 %v1069, %v1068
      %v1076 = vpack.c.b16 %v1071, %v1070
      %v1077 = vpack.c.b16 %v1073, %v1072
      %v1080 = vunpack.c.l.b16 %v1064
      %v1081 = vunpack.c.l.b16 %v1065
      %v1082 = vpack.c.b16 %v1081, %v1080
      %v1085 = vsel %vm271, %v1074, 0
      %v1088 = vsel %vm271, %v1075, 0
      %v1091 = vsel %vm271, %v1076, 0
      %v1094 = vsel %vm271, %v1077, 0
      %1096 = vmatprep.subr.bf16.mxu0 0
      %1097 = vmatpush1.bf16.msra.mxu0 %v1082
      %1098 = vmatprep.subr.bf16.mxu0 0
      %1099 = vmatpush1.bf16.msra.mxu0 0
      %1100 = vmatprep.subr.bf16.mxu0 0
      %1101 = vmatpush1.bf16.msra.mxu0 0
      %1102 = vmatprep.subr.bf16.mxu0 0
      %1103 = vmatpush1.bf16.msra.mxu0 0
      %1104 = vmatprep.subr.bf16.mxu0 0
      %1105 = vmatpush1.bf16.msra.mxu0 0
      %1106 = vmatprep.subr.bf16.mxu0 0
      %1107 = vmatpush1.bf16.msra.mxu0 0
      %1108 = vmatprep.subr.bf16.mxu0 0
      %1109 = vmatpush1.bf16.msra.mxu0 0
      %1110 = vmatprep.subr.bf16.mxu0 0
      %1111 = vmatpush1.bf16.msra.mxu0 0
      %1112 = vmatprep.subr.bf16.mxu0 0
      %1113 = vmatpush1.bf16.msra.mxu0 0
      %1114 = vmatprep.subr.bf16.mxu0 0
      %1115 = vmatpush1.bf16.msra.mxu0 0
      %1116 = vmatprep.subr.bf16.mxu0 0
      %1117 = vmatpush1.bf16.msra.mxu0 0
      %1118 = vmatprep.subr.bf16.mxu0 0
      %1119 = vmatpush1.bf16.msra.mxu0 0
      %1120 = vmatprep.subr.bf16.mxu0 0
      %1121 = vmatpush1.bf16.msra.mxu0 0
      %1122 = vmatprep.subr.bf16.mxu0 0
      %1123 = vmatpush1.bf16.msra.mxu0 0
      %1124 = vmatprep.subr.bf16.mxu0 0
      %1125 = vmatpush1.bf16.msra.mxu0 0
      %1126 = vmatprep.subr.bf16.mxu0 0
      %1127 = vmatpush1.bf16.msra.mxu0 0
      %1128 = vmatprep.mubr.bf16.mxu0 0
      %1129 = vmatmul.mubr.bf16.gmra.mrb[0].mxu0 %v1085
      %v1130 = vpop.f32.mrb[0].mxu0
      %v1131 = vadd.f32 0.0, %v1130
      %v1132 = vpop.f32.mrb[0].mxu0
      %v1133 = vpop.f32.mrb[0].mxu0
      %v1134 = vadd.f32 0.0, %v1133
      %v1135 = vpop.f32.mrb[0].mxu0
      %1136 = vmatprep.mubr.bf16.mxu0 0
      %1137 = vmatmul.mubr.bf16.gmra.mrb[0].mxu0 %v1088
      %v1138 = vpop.f32.mrb[0].mxu0
      %v1139 = vadd.f32 0.0, %v1138
      %v1140 = vpop.f32.mrb[0].mxu0
      %v1141 = vpop.f32.mrb[0].mxu0
      %v1142 = vadd.f32 0.0, %v1141
      %v1143 = vpop.f32.mrb[0].mxu0
      %1144 = vmatprep.mubr.bf16.mxu0 0
      %1145 = vmatmul.mubr.bf16.gmra.mrb[0].mxu0 %v1091
      %v1146 = vpop.f32.mrb[0].mxu0
      %v1147 = vadd.f32 0.0, %v1146
      %v1148 = vpop.f32.mrb[0].mxu0
      %v1149 = vpop.f32.mrb[0].mxu0
      %v1150 = vadd.f32 0.0, %v1149
      %v1151 = vpop.f32.mrb[0].mxu0
      %1152 = vmatprep.mubr.bf16.mxu0 0
      %1153 = vmatmul.mubr.bf16.gmra.mrb[0].mxu0 %v1094
      %v1154 = vpop.f32.mrb[0].mxu0
      %v1155 = vadd.f32 0.0, %v1154
      %v1156 = vpop.f32.mrb[0].mxu0
      %v1157 = vpop.f32.mrb[0].mxu0
      %v1158 = vadd.f32 0.0, %v1157
      %v1159 = vpop.f32.mrb[0].mxu0
      %1160 = vdwg.mxu0
      %v1161 = vadd.f32 %v927, %v1131
      %v1162 = vadd.f32 %v928, %v1134
      %v1163 = vadd.f32 %v929, %v1139
      %v1164 = vadd.f32 %v930, %v1142
      %v1165 = vadd.f32 %v931, %v1147
      %v1166 = vadd.f32 %v932, %v1150
      %v1167 = vadd.f32 %v933, %v1155
      %v1168 = vadd.f32 %v934, %v1158
      %s1169 = scalar_lea.vmem %s206, 8
      %v1170 = vld [vmem:[%s1169] sm:$0xf]
      %v1171 = vld [vmem:[%s1169 + $0x8] sm:$0xf]
      %v1172 = vld [vmem:[%s1169 + $0x10] sm:$0xf]
      %v1173 = vld [vmem:[%s1169 + $0x18] sm:$0xf]
      %v1174 = vld [vmem:[%s1169 + $0x20] sm:$0xf]
      %v1175 = vld [vmem:[%s1169 + $0x28] sm:$0xf]
      %v1176 = vld [vmem:[%s1169 + $0x30] sm:$0xf]
      %v1177 = vld [vmem:[%s1169 + $0x38] sm:$0xf]
      %s1178 = scalar_lea.vmem %s210, 48
      %v1179 = vld [vmem:[%s1178] sm:$0xf]
      %v1180 = vld [vmem:[%s1178 + $0x4] sm:$0xf]
      %v1189 = vunpack.c.l.b16 %v1170
      %v1190 = vunpack.c.l.b16 %v1171
      %v1191 = vunpack.c.l.b16 %v1172
      %v1192 = vunpack.c.l.b16 %v1173
      %v1193 = vunpack.c.l.b16 %v1174
      %v1194 = vunpack.c.l.b16 %v1175
      %v1195 = vunpack.c.l.b16 %v1176
      %v1196 = vunpack.c.l.b16 %v1177
      %v1197 = vpack.c.b16 %v1190, %v1189
      %v1198 = vpack.c.b16 %v1192, %v1191
      %v1199 = vpack.c.b16 %v1194, %v1193
      %v1200 = vpack.c.b16 %v1196, %v1195
      %v1203 = vunpack.c.l.b16 %v1179
      %v1204 = vunpack.c.l.b16 %v1180
      %v1205 = vpack.c.b16 %v1204, %v1203
      %v1208 = vsel %vm271, %v1197, 0
      %v1211 = vsel %vm271, %v1198, 0
      %v1214 = vsel %vm271, %v1199, 0
      %v1217 = vsel %vm271, %v1200, 0
      %1219 = vmatprep.subr.bf16.mxu0 0
      %1220 = vmatpush1.bf16.msra.mxu0 %v1205
      %1221 = vmatprep.subr.bf16.mxu0 0
      %1222 = vmatpush1.bf16.msra.mxu0 0
      %1223 = vmatprep.subr.bf16.mxu0 0
      %1224 = vmatpush1.bf16.msra.mxu0 0
      %1225 = vmatprep.subr.bf16.mxu0 0
      %1226 = vmatpush1.bf16.msra.mxu0 0
      %1227 = vmatprep.subr.bf16.mxu0 0
      %1228 = vmatpush1.bf16.msra.mxu0 0
      %1229 = vmatprep.subr.bf16.mxu0 0
      %1230 = vmatpush1.bf16.msra.mxu0 0
      %1231 = vmatprep.subr.bf16.mxu0 0
      %1232 = vmatpush1.bf16.msra.mxu0 0
      %1233 = vmatprep.subr.bf16.mxu0 0
      %1234 = vmatpush1.bf16.msra.mxu0 0
      %1235 = vmatprep.subr.bf16.mxu0 0
      %1236 = vmatpush1.bf16.msra.mxu0 0
      %1237 = vmatprep.subr.bf16.mxu0 0
      %1238 = vmatpush1.bf16.msra.mxu0 0
      %1239 = vmatprep.subr.bf16.mxu0 0
      %1240 = vmatpush1.bf16.msra.mxu0 0
      %1241 = vmatprep.subr.bf16.mxu0 0
      %1242 = vmatpush1.bf16.msra.mxu0 0
      %1243 = vmatprep.subr.bf16.mxu0 0
      %1244 = vmatpush1.bf16.msra.mxu0 0
      %1245 = vmatprep.subr.bf16.mxu0 0
      %1246 = vmatpush1.bf16.msra.mxu0 0
      %1247 = vmatprep.subr.bf16.mxu0 0
      %1248 = vmatpush1.bf16.msra.mxu0 0
      %1249 = vmatprep.subr.bf16.mxu0 0
      %1250 = vmatpush1.bf16.msra.mxu0 0
      %1251 = vmatprep.mubr.bf16.mxu0 0
      %1252 = vmatmul.mubr.bf16.gmra.mrb[0].mxu0 %v1208
      %v1253 = vpop.f32.mrb[0].mxu0
      %v1254 = vadd.f32 0.0, %v1253
      %v1255 = vpop.f32.mrb[0].mxu0
      %v1256 = vpop.f32.mrb[0].mxu0
      %v1257 = vadd.f32 0.0, %v1256
      %v1258 = vpop.f32.mrb[0].mxu0
      %1259 = vmatprep.mubr.bf16.mxu0 0
      %1260 = vmatmul.mubr.bf16.gmra.mrb[0].mxu0 %v1211
      %v1261 = vpop.f32.mrb[0].mxu0
      %v1262 = vadd.f32 0.0, %v1261
      %v1263 = vpop.f32.mrb[0].mxu0
      %v1264 = vpop.f32.mrb[0].mxu0
      %v1265 = vadd.f32 0.0, %v1264
      %v1266 = vpop.f32.mrb[0].mxu0
      %1267 = vmatprep.mubr.bf16.mxu0 0
      %1268 = vmatmul.mubr.bf16.gmra.mrb[0].mxu0 %v1214
      %v1269 = vpop.f32.mrb[0].mxu0
      %v1270 = vadd.f32 0.0, %v1269
      %v1271 = vpop.f32.mrb[0].mxu0
      %v1272 = vpop.f32.mrb[0].mxu0
      %v1273 = vadd.f32 0.0, %v1272
      %v1274 = vpop.f32.mrb[0].mxu0
      %1275 = vmatprep.mubr.bf16.mxu0 0
      %1276 = vmatmul.mubr.bf16.gmra.mrb[0].mxu0 %v1217
      %v1277 = vpop.f32.mrb[0].mxu0
      %v1278 = vadd.f32 0.0, %v1277
      %v1279 = vpop.f32.mrb[0].mxu0
      %v1280 = vpop.f32.mrb[0].mxu0
      %v1281 = vadd.f32 0.0, %v1280
      %v1282 = vpop.f32.mrb[0].mxu0
      %1283 = vdwg.mxu0
      %v1284 = vadd.f32 %v1161, %v1254
      %v1285 = vadd.f32 %v1162, %v1257
      %v1286 = vadd.f32 %v1163, %v1262
      %v1287 = vadd.f32 %v1164, %v1265
      %v1288 = vadd.f32 %v1165, %v1270
      %v1289 = vadd.f32 %v1166, %v1273
      %v1290 = vadd.f32 %v1167, %v1278
      %v1291 = vadd.f32 %v1168, %v1281
      %s1292 = scalar_lea.vmem %s206, 80
      %v1293 = vld [vmem:[%s1292] sm:$0xf]
      %v1294 = vld [vmem:[%s1292 + $0x8] sm:$0xf]
      %v1295 = vld [vmem:[%s1292 + $0x10] sm:$0xf]
      %v1296 = vld [vmem:[%s1292 + $0x18] sm:$0xf]
      %v1297 = vld [vmem:[%s1292 + $0x20] sm:$0xf]
      %v1298 = vld [vmem:[%s1292 + $0x28] sm:$0xf]
      %v1299 = vld [vmem:[%s1292 + $0x30] sm:$0xf]
      %v1300 = vld [vmem:[%s1292 + $0x38] sm:$0xf]
      %s1301 = scalar_lea.vmem %s210, 56
      %v1302 = vld [vmem:[%s1301] sm:$0xf]
      %v1303 = vld [vmem:[%s1301 + $0x4] sm:$0xf]
      %v1312 = vunpack.c.l.b16 %v1293
      %v1313 = vunpack.c.l.b16 %v1294
      %v1314 = vunpack.c.l.b16 %v1295
      %v1315 = vunpack.c.l.b16 %v1296
      %v1316 = vunpack.c.l.b16 %v1297
      %v1317 = vunpack.c.l.b16 %v1298
      %v1318 = vunpack.c.l.b16 %v1299
      %v1319 = vunpack.c.l.b16 %v1300
      %v1320 = vpack.c.b16 %v1313, %v1312
      %v1321 = vpack.c.b16 %v1315, %v1314
      %v1322 = vpack.c.b16 %v1317, %v1316
      %v1323 = vpack.c.b16 %v1319, %v1318
      %v1326 = vunpack.c.l.b16 %v1302
      %v1327 = vunpack.c.l.b16 %v1303
      %v1328 = vpack.c.b16 %v1327, %v1326
      %v1331 = vsel %vm271, %v1320, 0
      %v1334 = vsel %vm271, %v1321, 0
      %v1337 = vsel %vm271, %v1322, 0
      %v1340 = vsel %vm271, %v1323, 0
      %1342 = vmatprep.subr.bf16.mxu0 0
      %1343 = vmatpush1.bf16.msra.mxu0 %v1328
      %1344 = vmatprep.subr.bf16.mxu0 0
      %1345 = vmatpush1.bf16.msra.mxu0 0
      %1346 = vmatprep.subr.bf16.mxu0 0
      %1347 = vmatpush1.bf16.msra.mxu0 0
      %1348 = vmatprep.subr.bf16.mxu0 0
      %1349 = vmatpush1.bf16.msra.mxu0 0
      %1350 = vmatprep.subr.bf16.mxu0 0
      %1351 = vmatpush1.bf16.msra.mxu0 0
      %1352 = vmatprep.subr.bf16.mxu0 0
      %1353 = vmatpush1.bf16.msra.mxu0 0
      %1354 = vmatprep.subr.bf16.mxu0 0
      %1355 = vmatpush1.bf16.msra.mxu0 0
      %1356 = vmatprep.subr.bf16.mxu0 0
      %1357 = vmatpush1.bf16.msra.mxu0 0
      %1358 = vmatprep.subr.bf16.mxu0 0
      %1359 = vmatpush1.bf16.msra.mxu0 0
      %1360 = vmatprep.subr.bf16.mxu0 0
      %1361 = vmatpush1.bf16.msra.mxu0 0
      %1362 = vmatprep.subr.bf16.mxu0 0
      %1363 = vmatpush1.bf16.msra.mxu0 0
      %1364 = vmatprep.subr.bf16.mxu0 0
      %1365 = vmatpush1.bf16.msra.mxu0 0
      %1366 = vmatprep.subr.bf16.mxu0 0
      %1367 = vmatpush1.bf16.msra.mxu0 0
      %1368 = vmatprep.subr.bf16.mxu0 0
      %1369 = vmatpush1.bf16.msra.mxu0 0
      %1370 = vmatprep.subr.bf16.mxu0 0
      %1371 = vmatpush1.bf16.msra.mxu0 0
      %1372 = vmatprep.subr.bf16.mxu0 0
      %1373 = vmatpush1.bf16.msra.mxu0 0
      %1374 = vmatprep.mubr.bf16.mxu0 0
      %1375 = vmatmul.mubr.bf16.gmra.mrb[0].mxu0 %v1331
      %v1376 = vpop.f32.mrb[0].mxu0
      %v1377 = vadd.f32 0.0, %v1376
      %v1378 = vpop.f32.mrb[0].mxu0
      %v1379 = vpop.f32.mrb[0].mxu0
      %v1380 = vadd.f32 0.0, %v1379
      %v1381 = vpop.f32.mrb[0].mxu0
      %1382 = vmatprep.mubr.bf16.mxu0 0
      %1383 = vmatmul.mubr.bf16.gmra.mrb[0].mxu0 %v1334
      %v1384 = vpop.f32.mrb[0].mxu0
      %v1385 = vadd.f32 0.0, %v1384
      %v1386 = vpop.f32.mrb[0].mxu0
      %v1387 = vpop.f32.mrb[0].mxu0
      %v1388 = vadd.f32 0.0, %v1387
      %v1389 = vpop.f32.mrb[0].mxu0
      %1390 = vmatprep.mubr.bf16.mxu0 0
      %1391 = vmatmul.mubr.bf16.gmra.mrb[0].mxu0 %v1337
      %v1392 = vpop.f32.mrb[0].mxu0
      %v1393 = vadd.f32 0.0, %v1392
      %v1394 = vpop.f32.mrb[0].mxu0
      %v1395 = vpop.f32.mrb[0].mxu0
      %v1396 = vadd.f32 0.0, %v1395
      %v1397 = vpop.f32.mrb[0].mxu0
      %1398 = vmatprep.mubr.bf16.mxu0 0
      %1399 = vmatmul.mubr.bf16.gmra.mrb[0].mxu0 %v1340
      %v1400 = vpop.f32.mrb[0].mxu0
      %v1401 = vadd.f32 0.0, %v1400
      %v1402 = vpop.f32.mrb[0].mxu0
      %v1403 = vpop.f32.mrb[0].mxu0
      %v1404 = vadd.f32 0.0, %v1403
      %v1405 = vpop.f32.mrb[0].mxu0
      %1406 = vdwg.mxu0
      %v1407 = vadd.f32 %v1284, %v1377
      %v1408 = vadd.f32 %v1285, %v1380
      %v1409 = vadd.f32 %v1286, %v1385
      %v1410 = vadd.f32 %v1287, %v1388
      %v1411 = vadd.f32 %v1288, %v1393
      %v1412 = vadd.f32 %v1289, %v1396
      %v1413 = vadd.f32 %v1290, %v1401
      %v1414 = vadd.f32 %v1291, %v1404
      %v1415 = vld [vmem:[%s1169] sm:$0xf]
      %v1416 = vld [vmem:[%s1169 + $0x4] sm:$0x1]
      %v1417 = vld [vmem:[%s1169 + $0x8] sm:$0xf]
      %v1418 = vld [vmem:[%s1169 + $0xc] sm:$0x1]
      %v1419 = vld [vmem:[%s1169 + $0x10] sm:$0xf]
      %v1420 = vld [vmem:[%s1169 + $0x14] sm:$0x1]
      %v1421 = vld [vmem:[%s1169 + $0x18] sm:$0xf]
      %v1422 = vld [vmem:[%s1169 + $0x1c] sm:$0x1]
      %v1423 = vld [vmem:[%s1169 + $0x20] sm:$0xf]
      %v1424 = vld [vmem:[%s1169 + $0x24] sm:$0x1]
      %v1425 = vld [vmem:[%s1169 + $0x28] sm:$0xf]
      %v1426 = vld [vmem:[%s1169 + $0x2c] sm:$0x1]
      %v1427 = vld [vmem:[%s1169 + $0x30] sm:$0xf]
      %v1428 = vld [vmem:[%s1169 + $0x34] sm:$0x1]
      %v1429 = vld [vmem:[%s1169 + $0x38] sm:$0xf]
      %v1430 = vld [vmem:[%s1169 + $0x3c] sm:$0x1]
      %v1432 = vshrl.u32 %v1415, 16
      %v1434 = vrot.slane %v1432, 4
      %v1435 = vshll.u32 %v1415, 16
      %v1437 = vrot.slane %v1435, 5
      %v1438 = vor.u32 %v1434, %v1437
      %v1439 = vrot.slane %v1438, 4
      %v1441 = vshll.u32 %v1416, 16
      %v1443 = vrot.slane %v1441, 5
      %v1444 = vsel %vm470, %v1439, %v1443
      %v1446 = vshrl.u32 %v1417, 16
      %v1448 = vrot.slane %v1446, 4
      %v1449 = vshll.u32 %v1417, 16
      %v1451 = vrot.slane %v1449, 5
      %v1452 = vor.u32 %v1448, %v1451
      %v1453 = vrot.slane %v1452, 4
      %v1455 = vshll.u32 %v1418, 16
      %v1457 = vrot.slane %v1455, 5
      %v1458 = vsel %vm470, %v1453, %v1457
      %v1460 = vshrl.u32 %v1419, 16
      %v1462 = vrot.slane %v1460, 4
      %v1463 = vshll.u32 %v1419, 16
      %v1465 = vrot.slane %v1463, 5
      %v1466 = vor.u32 %v1462, %v1465
      %v1467 = vrot.slane %v1466, 4
      %v1469 = vshll.u32 %v1420, 16
      %v1471 = vrot.slane %v1469, 5
      %v1472 = vsel %vm470, %v1467, %v1471
      %v1474 = vshrl.u32 %v1421, 16
      %v1476 = vrot.slane %v1474, 4
      %v1477 = vshll.u32 %v1421, 16
      %v1479 = vrot.slane %v1477, 5
      %v1480 = vor.u32 %v1476, %v1479
      %v1481 = vrot.slane %v1480, 4
      %v1483 = vshll.u32 %v1422, 16
      %v1485 = vrot.slane %v1483, 5
      %v1486 = vsel %vm470, %v1481, %v1485
      %v1488 = vshrl.u32 %v1423, 16
      %v1490 = vrot.slane %v1488, 4
      %v1491 = vshll.u32 %v1423, 16
      %v1493 = vrot.slane %v1491, 5
      %v1494 = vor.u32 %v1490, %v1493
      %v1495 = vrot.slane %v1494, 4
      %v1497 = vshll.u32 %v1424, 16
      %v1499 = vrot.slane %v1497, 5
      %v1500 = vsel %vm470, %v1495, %v1499
      %v1502 = vshrl.u32 %v1425, 16
      %v1504 = vrot.slane %v1502, 4
      %v1505 = vshll.u32 %v1425, 16
      %v1507 = vrot.slane %v1505, 5
      %v1508 = vor.u32 %v1504, %v1507
      %v1509 = vrot.slane %v1508, 4
      %v1511 = vshll.u32 %v1426, 16
      %v1513 = vrot.slane %v1511, 5
      %v1514 = vsel %vm470, %v1509, %v1513
      %v1516 = vshrl.u32 %v1427, 16
      %v1518 = vrot.slane %v1516, 4
      %v1519 = vshll.u32 %v1427, 16
      %v1521 = vrot.slane %v1519, 5
      %v1522 = vor.u32 %v1518, %v1521
      %v1523 = vrot.slane %v1522, 4
      %v1525 = vshll.u32 %v1428, 16
      %v1527 = vrot.slane %v1525, 5
      %v1528 = vsel %vm470, %v1523, %v1527
      %v1530 = vshrl.u32 %v1429, 16
      %v1532 = vrot.slane %v1530, 4
      %v1533 = vshll.u32 %v1429, 16
      %v1535 = vrot.slane %v1533, 5
      %v1536 = vor.u32 %v1532, %v1535
      %v1537 = vrot.slane %v1536, 4
      %v1539 = vshll.u32 %v1430, 16
      %v1541 = vrot.slane %v1539, 5
      %v1542 = vsel %vm470, %v1537, %v1541
      %s1543 = scalar_lea.vmem %s210, 64
      %v1544 = vld [vmem:[%s1543] sm:$0xf]
      %v1545 = vld [vmem:[%s1543 + $0x4] sm:$0xf]
      %v1546 = vunpack.c.l.b16 %v1444
      %v1547 = vunpack.c.l.b16 %v1458
      %v1548 = vunpack.c.l.b16 %v1472
      %v1549 = vunpack.c.l.b16 %v1486
      %v1550 = vunpack.c.l.b16 %v1500
      %v1551 = vunpack.c.l.b16 %v1514
      %v1552 = vunpack.c.l.b16 %v1528
      %v1553 = vunpack.c.l.b16 %v1542
      %v1554 = vpack.c.b16 %v1547, %v1546
      %v1555 = vpack.c.b16 %v1549, %v1548
      %v1556 = vpack.c.b16 %v1551, %v1550
      %v1557 = vpack.c.b16 %v1553, %v1552
      %v1560 = vunpack.c.l.b16 %v1544
      %v1561 = vunpack.c.l.b16 %v1545
      %v1562 = vpack.c.b16 %v1561, %v1560
      %v1565 = vsel %vm271, %v1554, 0
      %v1568 = vsel %vm271, %v1555, 0
      %v1571 = vsel %vm271, %v1556, 0
      %v1574 = vsel %vm271, %v1557, 0
      %1576 = vmatprep.subr.bf16.mxu0 0
      %1577 = vmatpush1.bf16.msra.mxu0 %v1562
      %1578 = vmatprep.subr.bf16.mxu0 0
      %1579 = vmatpush1.bf16.msra.mxu0 0
      %1580 = vmatprep.subr.bf16.mxu0 0
      %1581 = vmatpush1.bf16.msra.mxu0 0
      %1582 = vmatprep.subr.bf16.mxu0 0
      %1583 = vmatpush1.bf16.msra.mxu0 0
      %1584 = vmatprep.subr.bf16.mxu0 0
      %1585 = vmatpush1.bf16.msra.mxu0 0
      %1586 = vmatprep.subr.bf16.mxu0 0
      %1587 = vmatpush1.bf16.msra.mxu0 0
      %1588 = vmatprep.subr.bf16.mxu0 0
      %1589 = vmatpush1.bf16.msra.mxu0 0
      %1590 = vmatprep.subr.bf16.mxu0 0
      %1591 = vmatpush1.bf16.msra.mxu0 0
      %1592 = vmatprep.subr.bf16.mxu0 0
      %1593 = vmatpush1.bf16.msra.mxu0 0
      %1594 = vmatprep.subr.bf16.mxu0 0
      %1595 = vmatpush1.bf16.msra.mxu0 0
      %1596 = vmatprep.subr.bf16.mxu0 0
      %1597 = vmatpush1.bf16.msra.mxu0 0
      %1598 = vmatprep.subr.bf16.mxu0 0
      %1599 = vmatpush1.bf16.msra.mxu0 0
      %1600 = vmatprep.subr.bf16.mxu0 0
      %1601 = vmatpush1.bf16.msra.mxu0 0
      %1602 = vmatprep.subr.bf16.mxu0 0
      %1603 = vmatpush1.bf16.msra.mxu0 0
      %1604 = vmatprep.subr.bf16.mxu0 0
      %1605 = vmatpush1.bf16.msra.mxu0 0
      %1606 = vmatprep.subr.bf16.mxu0 0
      %1607 = vmatpush1.bf16.msra.mxu0 0
      %1608 = vmatprep.mubr.bf16.mxu0 0
      %1609 = vmatmul.mubr.bf16.gmra.mrb[0].mxu0 %v1565
      %v1610 = vpop.f32.mrb[0].mxu0
      %v1611 = vadd.f32 0.0, %v1610
      %v1612 = vpop.f32.mrb[0].mxu0
      %v1613 = vpop.f32.mrb[0].mxu0
      %v1614 = vadd.f32 0.0, %v1613
      %v1615 = vpop.f32.mrb[0].mxu0
      %1616 = vmatprep.mubr.bf16.mxu0 0
      %1617 = vmatmul.mubr.bf16.gmra.mrb[0].mxu0 %v1568
      %v1618 = vpop.f32.mrb[0].mxu0
      %v1619 = vadd.f32 0.0, %v1618
      %v1620 = vpop.f32.mrb[0].mxu0
      %v1621 = vpop.f32.mrb[0].mxu0
      %v1622 = vadd.f32 0.0, %v1621
      %v1623 = vpop.f32.mrb[0].mxu0
      %1624 = vmatprep.mubr.bf16.mxu0 0
      %1625 = vmatmul.mubr.bf16.gmra.mrb[0].mxu0 %v1571
      %v1626 = vpop.f32.mrb[0].mxu0
      %v1627 = vadd.f32 0.0, %v1626
      %v1628 = vpop.f32.mrb[0].mxu0
      %v1629 = vpop.f32.mrb[0].mxu0
      %v1630 = vadd.f32 0.0, %v1629
      %v1631 = vpop.f32.mrb[0].mxu0
      %1632 = vmatprep.mubr.bf16.mxu0 0
      %1633 = vmatmul.mubr.bf16.gmra.mrb[0].mxu0 %v1574
      %v1634 = vpop.f32.mrb[0].mxu0
      %v1635 = vadd.f32 0.0, %v1634
      %v1636 = vpop.f32.mrb[0].mxu0
      %v1637 = vpop.f32.mrb[0].mxu0
      %v1638 = vadd.f32 0.0, %v1637
      %v1639 = vpop.f32.mrb[0].mxu0
      %1640 = vdwg.mxu0
      %v1641 = vadd.f32 %v1407, %v1611
      %v1642 = vadd.f32 %v1408, %v1614
      %v1643 = vadd.f32 %v1409, %v1619
      %v1644 = vadd.f32 %v1410, %v1622
      %v1645 = vadd.f32 %v1411, %v1627
      %v1646 = vadd.f32 %v1412, %v1630
      %v1647 = vadd.f32 %v1413, %v1635
      %v1648 = vadd.f32 %v1414, %v1638
      %v1649 = vld [vmem:[%s213] sm:$0x1]
      %v1651 = vlaneseq
      %v1652 = vshrl.u32 %v1651, 7
      %v1653 = vsub.s32 0, %v1652
      %v1654 = vrot.slane %v1649, %v1653
      %v1656 = vadd.f32 %v1641, %v1654
      %v1657 = vadd.f32 %v1642, %v1654
      %v1658 = vadd.f32 %v1643, %v1654
      %v1659 = vadd.f32 %v1644, %v1654
      %v1660 = vadd.f32 %v1645, %v1654
      %v1661 = vadd.f32 %v1646, %v1654
      %v1662 = vadd.f32 %v1647, %v1654
      %v1663 = vadd.f32 %v1648, %v1654
      %vm1664 = vcmask 261120
      %1665 = vst.msk [vmem:[%s221] sm:$0xff] %vm1664, %v1656
      %1666 = vst.msk [vmem:[%s221 + $0x8] sm:$0xff] %vm1664, %v1657
      %1667 = vst.msk [vmem:[%s221 + $0x10] sm:$0xff] %vm1664, %v1658
      %1668 = vst.msk [vmem:[%s221 + $0x18] sm:$0xff] %vm1664, %v1659
      %1669 = vst.msk [vmem:[%s221 + $0x20] sm:$0xff] %vm1664, %v1660
      %1670 = vst.msk [vmem:[%s221 + $0x28] sm:$0xff] %vm1664, %v1661
      %1671 = vst.msk [vmem:[%s221 + $0x30] sm:$0xff] %vm1664, %v1662
      %1672 = vst.msk [vmem:[%s221 + $0x38] sm:$0xff] %vm1664, %v1663
      %p1673 = scmp.lt.s32.totalorder %s18, 1
      %s1674 = scalar_select %p1673, %s18, 1
      %p1675 = scmp.lt.s32.totalorder %s19, 0
      %s1676 = scalar_select %p1675, %s19, 0
      %s1677 = smul.addr %s1674, 8
      %s1678 = sadd.s32 %s1676, %s1677
      %s1679 = smul.addr %s1678, 8
      %s1680 = scalar_lea.vmem %s3, %s1679
      // Predicated region
      $region33: #{got_ocr2_multimodal_projector.3} parent=31 // pred_check
        %p1681 = pneg %p124
      $region34: #{got_ocr2_multimodal_projector.3} parent=31 // pred_check_branch
        %1683 = sbr.rel (%p1681) target = $region36
      $region35: #{got_ocr2_multimodal_projector.3} parent=31 // pred_region
        _
      $region36: #{got_ocr2_multimodal_projector.3} parent=31 // pred_fallthru
        _
    $region32: #{got_ocr2_multimodal_projector.3} parent=5 // pred_fallthru
      _
    %p1684 = scmp.le.s32.totalorder 2, %s9
    // Predicated region
    $region37: #{got_ocr2_multimodal_projector.3} parent=5 // pred_check
      %p1685 = pneg %p1684
    $region38: #{got_ocr2_multimodal_projector.3} parent=5 // pred_check_branch
      %1687 = sbr.rel (%p1685) target = $region40
    $region39: #{got_ocr2_multimodal_projector.3} parent=5 // pred_region
      %s1688 = ssub.s32 %s9, 2
      // Predicated region
      $region41: #{got_ocr2_multimodal_projector.3} parent=39 // pred_check
        %p1689 = pneg %p130
      $region42: #{got_ocr2_multimodal_projector.3} parent=39 // pred_check_branch
        %1691 = sbr.rel (%p1689) target = $region44
      $region43: #{got_ocr2_multimodal_projector.3} parent=39 // pred_region
        %p1692 = scmp.lt.s32.totalorder %s20, 1
        %s1693 = scalar_select %p1692, %s20, 1
        %p1694 = scmp.lt.s32.totalorder %s21, 0
        %s1695 = scalar_select %p1694, %s21, 0
        %s1696 = smul.addr %s1693, 8
        %s1697 = sadd.s32 %s1695, %s1696
        %s1698 = smul.addr %s1697, 8
        %s1699 = scalar_lea.vmem %s3, %s1698
      $region44: #{got_ocr2_multimodal_projector.3} parent=39 // pred_fallthru
        _
    $region40: #{got_ocr2_multimodal_projector.3} parent=5 // pred_fallthru
      _
  $region6: #{got_ocr2_multimodal_projector.3} parent=0 // loop_footer
    %s13 = sadd.s32 1, %s9
  $region7: #{got_ocr2_multimodal_projector.3} parent=0 // loop_footer_branch
    %8 = sbr.rel target = $region3
  $region8: #{got_ocr2_multimodal_projector.3} parent=0 // loop_exit
    _

// kernel: got_ocr2_multimodal_projector.2
$region0: #{got_ocr2_multimodal_projector.2}
  #allocation0 [shape = 'u32[]', space=smem, size = 0x4, offset = 0x4, fixed_abs, tag = 'smem constant byte address 0x4 - core index']
  #allocation1 [shape = 'u32[144,128]{1,0:T(1,128)}', space=vmem, size = 0x12000, scoped, tag = 'internal scratch']
  %s0 = inlined_call_operand.vmem [shape: bf16[2,2,2,17,17,8], index: 0, kind: input, shape index: {}]
  %s1 = inlined_call_operand.vmem [shape: bf16[3,3,8,16], index: 1, kind: input, shape index: {}]
  %s2 = inlined_call_operand.vmem [shape: f32[1,16], index: 2, kind: input, shape index: {}]
  %s3 = inlined_call_operand.vmem [shape: bf16[2,256,16], index: 3, kind: output, shape index: {}]
  %s4 = sld [smem:[#allocation0]]
  $region45: #{got_ocr2_multimodal_projector.2} parent=0
    _
  %s6 = ssub.s32 1, %s4
  %s7 = scalar_select 0, %s6, %s4
  loop: start=0, step=1, limit=4
  $region2: #{got_ocr2_multimodal_projector.2} parent=0 // loop_pre_header
    _
  $region3: #{got_ocr2_multimodal_projector.2} parent=0 // loop_header
    %s9 = sphi 0, %s13
    %p10 = scmp.ge.s32.totalorder %s9, 4
    %s16 = sphi 0, %s28
    %s17 = sphi 0, %s24
    %s18 = sphi 0, %s16
    %s19 = sphi 0, %s17
    %s20 = sphi 0, %s18
    %s21 = sphi 0, %s19
    %s31 = sphi 0, %s33
    %s34 = sphi 0, %s31
    %s35 = sphi 0, %s34
    %s51 = sphi 0, %s35
    %s57 = sphi 0, %s59
    %s60 = sphi 0, %s57
    %s61 = sphi 0, %s60
    %s77 = sphi 0, %s61
    %s83 = sphi 0, %s85
    %s86 = sphi 0, %s83
    %s87 = sphi 0, %s86
    %s103 = sphi 0, %s87
    %s111 = sphi 0, %s113
    %s114 = sphi 0, %s111
    %s115 = sphi 0, %s114
    %s131 = sphi 0, %s115
  $region4: #{got_ocr2_multimodal_projector.2} parent=0 // loop_header_branch
    %12 = sbr.rel (%p10) target = $region8
  $region5: #{got_ocr2_multimodal_projector.2} parent=0 // loop_body
    %s14 = ssub.s32 %s9, 1
    %s15 = ssub.s32 %s9, 2
    %s22 = sadd.s32 1, %s17
    %p23 = scmp.ge.s32.totalorder %s22, 1
    %s24 = scalar_select %p23, 0, %s22
    %s25 = sadd.s32 1, %s16
    %s26 = scalar_select %p23, %s25, %s16
    %p27 = scmp.ge.s32.totalorder %s26, 2
    %s28 = scalar_select %p27, 0, %s26
    %s29 = ssub.s32 %s16, %s28
    %p30 = scmp.eq.s32.totalorder %s29, 0
    %s32 = sadd.s32 %s31, 1
    %s33 = scalar_select %p30, %s31, %s32
    %p36 = pneg %p30
    %p37 = scmp.eq.s32.totalorder %s9, 1
    %p38 = por %p36, %p37
    %p39 = scmp.ne.s32.totalorder %s31, %s34
    %p40 = scmp.eq.s32.totalorder %s9, 0
    %p41 = por %p39, %p40
    %p42 = scmp.ne.s32.totalorder %s31, %s34
    %p43 = scmp.eq.s32.totalorder %s14, 1
    %p44 = por %p42, %p43
    %p45 = scmp.ne.s32.totalorder %s34, %s35
    %p46 = scmp.eq.s32.totalorder %s14, 0
    %p47 = por %p45, %p46
    %p48 = scmp.ne.s32.totalorder %s34, %s35
    %p49 = scmp.eq.s32.totalorder %s15, 1
    %p50 = por %p48, %p49
    %p52 = scmp.ne.s32.totalorder %s35, %s51
    %p53 = scmp.eq.s32.totalorder %s15, 0
    %p54 = por %p52, %p53
    %s55 = ssub.s32 %s17, %s24
    %p56 = scmp.eq.s32.totalorder %s55, 0
    %s58 = sadd.s32 %s57, 1
    %s59 = scalar_select %p56, %s57, %s58
    %p62 = pneg %p56
    %p63 = scmp.eq.s32.totalorder %s9, 1
    %p64 = por %p62, %p63
    %p65 = scmp.ne.s32.totalorder %s57, %s60
    %p66 = scmp.eq.s32.totalorder %s9, 0
    %p67 = por %p65, %p66
    %p68 = scmp.ne.s32.totalorder %s57, %s60
    %p69 = scmp.eq.s32.totalorder %s14, 1
    %p70 = por %p68, %p69
    %p71 = scmp.ne.s32.totalorder %s60, %s61
    %p72 = scmp.eq.s32.totalorder %s14, 0
    %p73 = por %p71, %p72
    %p74 = scmp.ne.s32.totalorder %s60, %s61
    %p75 = scmp.eq.s32.totalorder %s15, 1
    %p76 = por %p74, %p75
    %p78 = scmp.ne.s32.totalorder %s61, %s77
    %p79 = scmp.eq.s32.totalorder %s15, 0
    %p80 = por %p78, %p79
    %s81 = ssub.s32 %s17, %s24
    %p82 = scmp.eq.s32.totalorder %s81, 0
    %s84 = sadd.s32 %s83, 1
    %s85 = scalar_select %p82, %s83, %s84
    %p88 = pneg %p82
    %p89 = scmp.eq.s32.totalorder %s9, 1
    %p90 = por %p88, %p89
    %p91 = scmp.ne.s32.totalorder %s83, %s86
    %p92 = scmp.eq.s32.totalorder %s9, 0
    %p93 = por %p91, %p92
    %p94 = scmp.ne.s32.totalorder %s83, %s86
    %p95 = scmp.eq.s32.totalorder %s14, 1
    %p96 = por %p94, %p95
    %p97 = scmp.ne.s32.totalorder %s86, %s87
    %p98 = scmp.eq.s32.totalorder %s14, 0
    %p99 = por %p97, %p98
    %p100 = scmp.ne.s32.totalorder %s86, %s87
    %p101 = scmp.eq.s32.totalorder %s15, 1
    %p102 = por %p100, %p101
    %p104 = scmp.ne.s32.totalorder %s87, %s103
    %p105 = scmp.eq.s32.totalorder %s15, 0
    %p106 = por %p104, %p105
    %s107 = ssub.s32 %s16, %s28
    %s108 = ssub.s32 %s17, %s24
    %s109 = sor.u32 %s107, %s108
    %p110 = scmp.eq.s32.totalorder %s109, 0
    %s112 = sadd.s32 %s111, 1
    %s113 = scalar_select %p110, %s111, %s112
    %p116 = pneg %p110
    %p117 = scmp.eq.s32.totalorder %s9, 1
    %p118 = por %p116, %p117
    %p119 = scmp.ne.s32.totalorder %s111, %s114
    %p120 = scmp.eq.s32.totalorder %s9, 0
    %p121 = por %p119, %p120
    %p122 = scmp.ne.s32.totalorder %s111, %s114
    %p123 = scmp.eq.s32.totalorder %s14, 1
    %p124 = por %p122, %p123
    %p125 = scmp.ne.s32.totalorder %s114, %s115
    %p126 = scmp.eq.s32.totalorder %s14, 0
    %p127 = por %p125, %p126
    %p128 = scmp.ne.s32.totalorder %s114, %s115
    %p129 = scmp.eq.s32.totalorder %s15, 1
    %p130 = por %p128, %p129
    %p132 = scmp.ne.s32.totalorder %s115, %s131
    %p133 = scmp.eq.s32.totalorder %s15, 0
    %p134 = por %p132, %p133
    %p135 = scmp.le.s32.totalorder 1, %s9
    %p136 = scmp.lt.s32.totalorder %s9, 3
    %p137 = pnand %p135, %p136
    %p138 = pneg %p137
    // Predicated region
    $region9: #{got_ocr2_multimodal_projector.2} parent=5 // pred_check
      _
    $region10: #{got_ocr2_multimodal_projector.2} parent=5 // pred_check_branch
      %140 = sbr.rel (%p137) target = $region12
    $region11: #{got_ocr2_multimodal_projector.2} parent=5 // pred_region
      %s141 = ssub.s32 %s9, 1
      // Predicated region
      $region13: #{got_ocr2_multimodal_projector.2} parent=11 // pred_check
        %p142 = pneg %p73
      $region14: #{got_ocr2_multimodal_projector.2} parent=11 // pred_check_branch
        %144 = sbr.rel (%p142) target = $region16
      $region15: #{got_ocr2_multimodal_projector.2} parent=11 // pred_region
        %p145 = scmp.lt.s32.totalorder %s19, 0
        %s146 = scalar_select %p145, %s19, 0
        %s147 = smul.addr %s146, 4
        %s148 = scalar_lea.vmem %s1, %s147
      $region16: #{got_ocr2_multimodal_projector.2} parent=11 // pred_fallthru
        _
      // Predicated region
      $region17: #{got_ocr2_multimodal_projector.2} parent=11 // pred_check
        %p149 = pneg %p99
      $region18: #{got_ocr2_multimodal_projector.2} parent=11 // pred_check_branch
        %151 = sbr.rel (%p149) target = $region20
      $region19: #{got_ocr2_multimodal_projector.2} parent=11 // pred_region
        %p152 = scmp.lt.s32.totalorder %s19, 0
        %s153 = scalar_select %p152, %s19, 0
        %s154 = scalar_lea.vmem %s2, %s153
      $region20: #{got_ocr2_multimodal_projector.2} parent=11 // pred_fallthru
        _
    $region12: #{got_ocr2_multimodal_projector.2} parent=5 // pred_fallthru
      _
    %p155 = scmp.lt.s32.totalorder %s9, 2
    // Predicated region
    $region21: #{got_ocr2_multimodal_projector.2} parent=5 // pred_check
      %p156 = pneg %p155
    $region22: #{got_ocr2_multimodal_projector.2} parent=5 // pred_check_branch
      %158 = sbr.rel (%p156) target = $region24
    $region23: #{got_ocr2_multimodal_projector.2} parent=5 // pred_region
      // Predicated region
      $region25: #{got_ocr2_multimodal_projector.2} parent=23 // pred_check
        %p159 = pneg %p41
      $region26: #{got_ocr2_multimodal_projector.2} parent=23 // pred_check_branch
        %161 = sbr.rel (%p159) target = $region28
      $region27: #{got_ocr2_multimodal_projector.2} parent=23 // pred_region
        %p162 = scmp.lt.s32.totalorder %s16, 1
        %s163 = scalar_select %p162, %s16, 1
        %s164 = smul.addr %s163, 204
        %s165 = smul.addr %s164, 4
        %s166 = scalar_lea.vmem %s0, %s165
      $region28: #{got_ocr2_multimodal_projector.2} parent=23 // pred_fallthru
        _
    $region24: #{got_ocr2_multimodal_projector.2} parent=5 // pred_fallthru
      _
    %p167 = scmp.le.s32.totalorder 1, %s9
    %p168 = scmp.lt.s32.totalorder %s9, 3
    %p169 = pnand %p167, %p168
    %p170 = pneg %p169
    // Predicated region
    $region29: #{got_ocr2_multimodal_projector.2} parent=5 // pred_check
      _
    $region30: #{got_ocr2_multimodal_projector.2} parent=5 // pred_check_branch
      %172 = sbr.rel (%p169) target = $region32
    $region31: #{got_ocr2_multimodal_projector.2} parent=5 // pred_region
      %s173 = ssub.s32 %s9, 1
      %p174 = scmp.lt.s32.totalorder %s18, 1
      %s175 = scalar_select %p174, %s18, 1
      %s176 = smul.addr %s175, 204
      %s177 = smul.addr %s176, 4
      %s178 = scalar_lea.vmem %s0, %s177
      %p179 = pneg %p47
      %p180 = pneg %p44
      %p181 = scmp.lt.s32.totalorder %s19, 0
      %s182 = scalar_select %p181, %s19, 0
      %s183 = smul.addr %s182, 4
      %s184 = scalar_lea.vmem %s1, %s183
      %p185 = pneg %p73
      %p186 = pneg %p70
      %p187 = scmp.lt.s32.totalorder %s19, 0
      %s188 = scalar_select %p187, %s19, 0
      %s189 = scalar_lea.vmem %s2, %s188
      %p190 = pneg %p99
      %p191 = pneg %p96
      %p192 = pneg %p127
      %p193 = pneg %p124
      %p194 = scmp.lt.s32.totalorder %s18, 1
      %s195 = scalar_select %p194, %s18, 1
      %p196 = scmp.lt.s32.totalorder %s19, 0
      %s197 = scalar_select %p196, %s19, 0
      %s198 = smul.addr %s195, 32
      %s199 = sadd.s32 %s197, %s198
      %s200 = smul.addr %s199, 4
      %s201 = scalar_lea.vmem %s3, %s200
      %p202 = scmp.lt.s32.totalorder %s18, 1
      %s203 = scalar_select %p202, %s18, 1
      %s204 = smul.addr %s203, 204
      %s205 = smul.addr %s204, 4
      %s206 = scalar_lea.vmem %s0, %s205
      %p207 = scmp.lt.s32.totalorder %s19, 0
      %s208 = scalar_select %p207, %s19, 0
      %s209 = smul.addr %s208, 4
      %s210 = scalar_lea.vmem %s1, %s209
      %p211 = scmp.lt.s32.totalorder %s19, 0
      %s212 = scalar_select %p211, %s19, 0
      %s213 = scalar_lea.vmem %s2, %s212
      %p214 = scmp.lt.s32.totalorder %s18, 1
      %s215 = scalar_select %p214, %s18, 1
      %p216 = scmp.lt.s32.totalorder %s19, 0
      %s217 = scalar_select %p216, %s19, 0
      %s218 = smul.addr %s215, 32
      %s219 = sadd.s32 %s217, %s218
      %s220 = smul.addr %s219, 4
      %s221 = scalar_lea.vmem %s3, %s220
      %v223 = vld [vmem:[%s206] sm:$0xf]
      %v224 = vld [vmem:[%s206 + $0x4] sm:$0xf]
      %v225 = vld [vmem:[%s206 + $0xc] sm:$0xf]
      %v226 = vld [vmem:[%s206 + $0x10] sm:$0xf]
      %v227 = vld [vmem:[%s206 + $0x18] sm:$0xf]
      %v228 = vld [vmem:[%s206 + $0x1c] sm:$0xf]
      %v229 = vld [vmem:[%s206 + $0x24] sm:$0xf]
      %v230 = vld [vmem:[%s206 + $0x28] sm:$0xf]
      %v231 = vld [vmem:[%s206 + $0x30] sm:$0xf]
      %v232 = vld [vmem:[%s206 + $0x34] sm:$0xf]
      %v233 = vld [vmem:[%s206 + $0x3c] sm:$0xf]
      %v234 = vld [vmem:[%s206 + $0x40] sm:$0xf]
      %v235 = vld [vmem:[%s206 + $0x48] sm:$0xf]
      %v236 = vld [vmem:[%s206 + $0x4c] sm:$0xf]
      %v237 = vld [vmem:[%s206 + $0x54] sm:$0xf]
      %v238 = vld [vmem:[%s206 + $0x58] sm:$0xf]
      %v239 = vld [vmem:[%s206 + $0x60] sm:$0xf]
      %v240 = vld [vmem:[%s206 + $0x64] sm:$0xf]
      %v241 = vld [vmem:[%s206 + $0x6c] sm:$0xf]
      %v242 = vld [vmem:[%s206 + $0x70] sm:$0xf]
      %v243 = vld [vmem:[%s206 + $0x78] sm:$0xf]
      %v244 = vld [vmem:[%s206 + $0x7c] sm:$0xf]
      %v245 = vld [vmem:[%s206 + $0x84] sm:$0xf]
      %v246 = vld [vmem:[%s206 + $0x88] sm:$0xf]
      %v247 = vld [vmem:[%s206 + $0x90] sm:$0xf]
      %v248 = vld [vmem:[%s206 + $0x94] sm:$0xf]
      %v249 = vld [vmem:[%s206 + $0x9c] sm:$0xf]
      %v250 = vld [vmem:[%s206 + $0xa0] sm:$0xf]
      %v251 = vld [vmem:[%s206 + $0xa8] sm:$0xf]
      %v252 = vld [vmem:[%s206 + $0xac] sm:$0xf]
      %v253 = vld [vmem:[%s206 + $0xb4] sm:$0xf]
      %v254 = vld [vmem:[%s206 + $0xb8] sm:$0xf]
      %v255 = vld [vmem:[%s210] sm:$0xf]
      %s256 = scalar_lea.vmem %s206, 204
      %v257 = vld [vmem:[%s256] sm:$0xf]
      %v258 = vld [vmem:[%s256 + $0x4] sm:$0xf]
      %v259 = vld [vmem:[%s256 + $0xc] sm:$0xf]
      %v260 = vld [vmem:[%s256 + $0x10] sm:$0xf]
      %v261 = vld [vmem:[%s256 + $0x18] sm:$0xf]
      %v262 = vld [vmem:[%s256 + $0x1c] sm:$0xf]
      %v263 = vld [vmem:[%s256 + $0x24] sm:$0xf]
      %v264 = vld [vmem:[%s256 + $0x28] sm:$0xf]
      %v265 = vld [vmem:[%s256 + $0x30] sm:$0xf]
      %v266 = vld [vmem:[%s256 + $0x34] sm:$0xf]
      %v267 = vld [vmem:[%s256 + $0x3c] sm:$0xf]
      %v268 = vld [vmem:[%s256 + $0x40] sm:$0xf]
      %v269 = vld [vmem:[%s256 + $0x48] sm:$0xf]
      %v270 = vld [vmem:[%s256 + $0x4c] sm:$0xf]
      %v271 = vld [vmem:[%s256 + $0x54] sm:$0xf]
      %v272 = vld [vmem:[%s256 + $0x58] sm:$0xf]
      %v273 = vld [vmem:[%s256 + $0x60] sm:$0xf]
      %v274 = vld [vmem:[%s256 + $0x64] sm:$0xf]
      %v275 = vld [vmem:[%s256 + $0x6c] sm:$0xf]
      %v276 = vld [vmem:[%s256 + $0x70] sm:$0xf]
      %v277 = vld [vmem:[%s256 + $0x78] sm:$0xf]
      %v278 = vld [vmem:[%s256 + $0x7c] sm:$0xf]
      %v279 = vld [vmem:[%s256 + $0x84] sm:$0xf]
      %v280 = vld [vmem:[%s256 + $0x88] sm:$0xf]
      %v281 = vld [vmem:[%s256 + $0x90] sm:$0xf]
      %v282 = vld [vmem:[%s256 + $0x94] sm:$0xf]
      %v283 = vld [vmem:[%s256 + $0x9c] sm:$0xf]
      %v284 = vld [vmem:[%s256 + $0xa0] sm:$0xf]
      %v285 = vld [vmem:[%s256 + $0xa8] sm:$0xf]
      %v286 = vld [vmem:[%s256 + $0xac] sm:$0xf]
      %v287 = vld [vmem:[%s256 + $0xb4] sm:$0xf]
      %v288 = vld [vmem:[%s256 + $0xb8] sm:$0xf]
      %s289 = scalar_lea.vmem %s210, 4
      %v290 = vld [vmem:[%s289] sm:$0xf]
      %v323 = vunpack.c.l.b16 %v257
      %v324 = vunpack.c.l.b16 %v258
      %v325 = vunpack.c.l.b16 %v259
      %v326 = vunpack.c.l.b16 %v260
      %v327 = vunpack.c.l.b16 %v261
      %v328 = vunpack.c.l.b16 %v262
      %v329 = vunpack.c.l.b16 %v263
      %v330 = vunpack.c.l.b16 %v264
      %v331 = vunpack.c.l.b16 %v265
      %v332 = vunpack.c.l.b16 %v266
      %v333 = vunpack.c.l.b16 %v267
      %v334 = vunpack.c.l.b16 %v268
      %v335 = vunpack.c.l.b16 %v269
      %v336 = vunpack.c.l.b16 %v270
      %v337 = vunpack.c.l.b16 %v271
      %v338 = vunpack.c.l.b16 %v272
      %v339 = vunpack.c.l.b16 %v273
      %v340 = vunpack.c.l.b16 %v274
      %v341 = vunpack.c.l.b16 %v275
      %v342 = vunpack.c.l.b16 %v276
      %v343 = vunpack.c.l.b16 %v277
      %v344 = vunpack.c.l.b16 %v278
      %v345 = vunpack.c.l.b16 %v279
      %v346 = vunpack.c.l.b16 %v280
      %v347 = vunpack.c.l.b16 %v281
      %v348 = vunpack.c.l.b16 %v282
      %v349 = vunpack.c.l.b16 %v283
      %v350 = vunpack.c.l.b16 %v284
      %v351 = vunpack.c.l.b16 %v285
      %v352 = vunpack.c.l.b16 %v286
      %v353 = vunpack.c.l.b16 %v287
      %v354 = vunpack.c.l.b16 %v288
      %v355 = vpack.c.b16 %v324, %v323
      %v356 = vpack.c.b16 %v326, %v325
      %v357 = vpack.c.b16 %v328, %v327
      %v358 = vpack.c.b16 %v330, %v329
      %v359 = vpack.c.b16 %v332, %v331
      %v360 = vpack.c.b16 %v334, %v333
      %v361 = vpack.c.b16 %v336, %v335
      %v362 = vpack.c.b16 %v338, %v337
      %v363 = vpack.c.b16 %v340, %v339
      %v364 = vpack.c.b16 %v342, %v341
      %v365 = vpack.c.b16 %v344, %v343
      %v366 = vpack.c.b16 %v346, %v345
      %v367 = vpack.c.b16 %v348, %v347
      %v368 = vpack.c.b16 %v350, %v349
      %v369 = vpack.c.b16 %v352, %v351
      %v370 = vpack.c.b16 %v354, %v353
      %vm371 = vcmask 64512
      %v373 = vsel %vm371, %v355, 0
      %v376 = vsel %vm371, %v356, 0
      %v379 = vsel %vm371, %v357, 0
      %v382 = vsel %vm371, %v358, 0
      %v385 = vsel %vm371, %v359, 0
      %v388 = vsel %vm371, %v360, 0
      %v391 = vsel %vm371, %v361, 0
      %v394 = vsel %vm371, %v362, 0
      %v397 = vsel %vm371, %v363, 0
      %v400 = vsel %vm371, %v364, 0
      %v403 = vsel %vm371, %v365, 0
      %v406 = vsel %vm371, %v366, 0
      %v409 = vsel %vm371, %v367, 0
      %v412 = vsel %vm371, %v368, 0
      %v415 = vsel %vm371, %v369, 0
      %v418 = vsel %vm371, %v370, 0
      %vm420 = vcmask 1043456
      %v422 = vsel %vm420, %v290, 0
      %424 = vmatprep.subr.bf16.mxu0 0
      %425 = vmatpush1.bf16.msra.mxu0 %v422
      %426 = vmatprep.subr.bf16.mxu0 0
      %427 = vmatpush1.bf16.msra.mxu0 0
      %428 = vmatprep.subr.bf16.mxu0 0
      %429 = vmatpush1.bf16.msra.mxu0 0
      %430 = vmatprep.subr.bf16.mxu0 0
      %431 = vmatpush1.bf16.msra.mxu0 0
      %432 = vmatprep.subr.bf16.mxu0 0
      %433 = vmatpush1.bf16.msra.mxu0 0
      %434 = vmatprep.subr.bf16.mxu0 0
      %435 = vmatpush1.bf16.msra.mxu0 0
      %436 = vmatprep.subr.bf16.mxu0 0
      %437 = vmatpush1.bf16.msra.mxu0 0
      %438 = vmatprep.subr.bf16.mxu0 0
      %439 = vmatpush1.bf16.msra.mxu0 0
      %440 = vmatprep.subr.bf16.mxu0 0
      %441 = vmatpush1.bf16.msra.mxu0 0
      %442 = vmatprep.subr.bf16.mxu0 0
      %443 = vmatpush1.bf16.msra.mxu0 0
      %444 = vmatprep.subr.bf16.mxu0 0
      %445 = vmatpush1.bf16.msra.mxu0 0
      %446 = vmatprep.subr.bf16.mxu0 0
      %447 = vmatpush1.bf16.msra.mxu0 0
      %448 = vmatprep.subr.bf16.mxu0 0
      %449 = vmatpush1.bf16.msra.mxu0 0
      %450 = vmatprep.subr.bf16.mxu0 0
      %451 = vmatpush1.bf16.msra.mxu0 0
      %452 = vmatprep.subr.bf16.mxu0 0
      %453 = vmatpush1.bf16.msra.mxu0 0
      %454 = vmatprep.subr.bf16.mxu0 0
      %455 = vmatpush1.bf16.msra.mxu0 0
      %456 = vmatprep.mubr.bf16.mxu0 0
      %457 = vmatmul.mubr.bf16.gmra.mrb[0].mxu0 %v373
      %v458 = vpop.f32.mrb[0].mxu0
      %v459 = vadd.f32 0.0, %v458
      %v460 = vpop.f32.mrb[0].mxu0
      %v461 = vpop.f32.mrb[0].mxu0
      %v462 = vadd.f32 0.0, %v461
      %v463 = vpop.f32.mrb[0].mxu0
      %464 = vmatprep.mubr.bf16.mxu0 0
      %465 = vmatmul.mubr.bf16.gmra.mrb[0].mxu0 %v376
      %v466 = vpop.f32.mrb[0].mxu0
      %v467 = vadd.f32 0.0, %v466
      %v468 = vpop.f32.mrb[0].mxu0
      %v469 = vpop.f32.mrb[0].mxu0
      %v470 = vadd.f32 0.0, %v469
      %v471 = vpop.f32.mrb[0].mxu0
      %472 = vmatprep.mubr.bf16.mxu0 0
      %473 = vmatmul.mubr.bf16.gmra.mrb[0].mxu0 %v379
      %v474 = vpop.f32.mrb[0].mxu0
      %v475 = vadd.f32 0.0, %v474
      %v476 = vpop.f32.mrb[0].mxu0
      %v477 = vpop.f32.mrb[0].mxu0
      %v478 = vadd.f32 0.0, %v477
      %v479 = vpop.f32.mrb[0].mxu0
      %480 = vmatprep.mubr.bf16.mxu0 0
      %481 = vmatmul.mubr.bf16.gmra.mrb[0].mxu0 %v382
      %v482 = vpop.f32.mrb[0].mxu0
      %v483 = vadd.f32 0.0, %v482
      %v484 = vpop.f32.mrb[0].mxu0
      %v485 = vpop.f32.mrb[0].mxu0
      %v486 = vadd.f32 0.0, %v485
      %v487 = vpop.f32.mrb[0].mxu0
      %488 = vmatprep.mubr.bf16.mxu0 0
      %489 = vmatmul.mubr.bf16.gmra.mrb[0].mxu0 %v385
      %v490 = vpop.f32.mrb[0].mxu0
      %v491 = vadd.f32 0.0, %v490
      %v492 = vpop.f32.mrb[0].mxu0
      %v493 = vpop.f32.mrb[0].mxu0
      %v494 = vadd.f32 0.0, %v493
      %v495 = vpop.f32.mrb[0].mxu0
      %496 = vmatprep.mubr.bf16.mxu0 0
      %497 = vmatmul.mubr.bf16.gmra.mrb[0].mxu0 %v388
      %v498 = vpop.f32.mrb[0].mxu0
      %v499 = vadd.f32 0.0, %v498
      %v500 = vpop.f32.mrb[0].mxu0
      %v501 = vpop.f32.mrb[0].mxu0
      %v502 = vadd.f32 0.0, %v501
      %v503 = vpop.f32.mrb[0].mxu0
      %504 = vmatprep.mubr.bf16.mxu0 0
      %505 = vmatmul.mubr.bf16.gmra.mrb[0].mxu0 %v391
      %v506 = vpop.f32.mrb[0].mxu0
      %v507 = vadd.f32 0.0, %v506
      %v508 = vpop.f32.mrb[0].mxu0
      %v509 = vpop.f32.mrb[0].mxu0
      %v510 = vadd.f32 0.0, %v509
      %v511 = vpop.f32.mrb[0].mxu0
      %512 = vmatprep.mubr.bf16.mxu0 0
      %513 = vmatmul.mubr.bf16.gmra.mrb[0].mxu0 %v394
      %v514 = vpop.f32.mrb[0].mxu0
      %v515 = vadd.f32 0.0, %v514
      %v516 = vpop.f32.mrb[0].mxu0
      %v517 = vpop.f32.mrb[0].mxu0
      %v518 = vadd.f32 0.0, %v517
      %v519 = vpop.f32.mrb[0].mxu0
      %520 = vmatprep.mubr.bf16.mxu0 0
      %521 = vmatmul.mubr.bf16.gmra.mrb[0].mxu0 %v397
      %v522 = vpop.f32.mrb[0].mxu0
      %v523 = vadd.f32 0.0, %v522
      %v524 = vpop.f32.mrb[0].mxu0
      %v525 = vpop.f32.mrb[0].mxu0
      %v526 = vadd.f32 0.0, %v525
      %v527 = vpop.f32.mrb[0].mxu0
      %528 = vmatprep.mubr.bf16.mxu0 0
      %529 = vmatmul.mubr.bf16.gmra.mrb[0].mxu0 %v400
      %v530 = vpop.f32.mrb[0].mxu0
      %v531 = vadd.f32 0.0, %v530
      %v532 = vpop.f32.mrb[0].mxu0
      %v533 = vpop.f32.mrb[0].mxu0
      %v534 = vadd.f32 0.0, %v533
      %v535 = vpop.f32.mrb[0].mxu0
      %536 = vmatprep.mubr.bf16.mxu0 0
      %537 = vmatmul.mubr.bf16.gmra.mrb[0].mxu0 %v403
      %v538 = vpop.f32.mrb[0].mxu0
      %v539 = vadd.f32 0.0, %v538
      %v540 = vpop.f32.mrb[0].mxu0
      %v541 = vpop.f32.mrb[0].mxu0
      %v542 = vadd.f32 0.0, %v541
      %v543 = vpop.f32.mrb[0].mxu0
      %544 = vmatprep.mubr.bf16.mxu0 0
      %545 = vmatmul.mubr.bf16.gmra.mrb[0].mxu0 %v406
      %v546 = vpop.f32.mrb[0].mxu0
      %v547 = vadd.f32 0.0, %v546
      %v548 = vpop.f32.mrb[0].mxu0
      %v549 = vpop.f32.mrb[0].mxu0
      %v550 = vadd.f32 0.0, %v549
      %v551 = vpop.f32.mrb[0].mxu0
      %552 = vmatprep.mubr.bf16.mxu0 0
      %553 = vmatmul.mubr.bf16.gmra.mrb[0].mxu0 %v409
      %v554 = vpop.f32.mrb[0].mxu0
      %v555 = vadd.f32 0.0, %v554
      %v556 = vpop.f32.mrb[0].mxu0
      %v557 = vpop.f32.mrb[0].mxu0
      %v558 = vadd.f32 0.0, %v557
      %v559 = vpop.f32.mrb[0].mxu0
      %560 = vmatprep.mubr.bf16.mxu0 0
      %561 = vmatmul.mubr.bf16.gmra.mrb[0].mxu0 %v412
      %v562 = vpop.f32.mrb[0].mxu0
      %v563 = vadd.f32 0.0, %v562
      %v564 = vpop.f32.mrb[0].mxu0
      %v565 = vpop.f32.mrb[0].mxu0
      %v566 = vadd.f32 0.0, %v565
      %v567 = vpop.f32.mrb[0].mxu0
      %568 = vmatprep.mubr.bf16.mxu0 0
      %569 = vmatmul.mubr.bf16.gmra.mrb[0].mxu0 %v415
      %v570 = vpop.f32.mrb[0].mxu0
      %v571 = vadd.f32 0.0, %v570
      %v572 = vpop.f32.mrb[0].mxu0
      %v573 = vpop.f32.mrb[0].mxu0
      %v574 = vadd.f32 0.0, %v573
      %v575 = vpop.f32.mrb[0].mxu0
      %576 = vmatprep.mubr.bf16.mxu0 0
      %577 = vmatmul.mubr.bf16.gmra.mrb[0].mxu0 %v418
      %v578 = vpop.f32.mrb[0].mxu0
      %v579 = vadd.f32 0.0, %v578
      %v580 = vpop.f32.mrb[0].mxu0
      %v581 = vpop.f32.mrb[0].mxu0
      %v582 = vadd.f32 0.0, %v581
      %v583 = vpop.f32.mrb[0].mxu0
      %584 = vdwg.mxu0
      %v617 = vunpack.c.l.b16 %v223
      %v618 = vunpack.c.l.b16 %v224
      %v619 = vunpack.c.l.b16 %v225
      %v620 = vunpack.c.l.b16 %v226
      %v621 = vunpack.c.l.b16 %v227
      %v622 = vunpack.c.l.b16 %v228
      %v623 = vunpack.c.l.b16 %v229
      %v624 = vunpack.c.l.b16 %v230
      %v625 = vunpack.c.l.b16 %v231
      %v626 = vunpack.c.l.b16 %v232
      %v627 = vunpack.c.l.b16 %v233
      %v628 = vunpack.c.l.b16 %v234
      %v629 = vunpack.c.l.b16 %v235
      %v630 = vunpack.c.l.b16 %v236
      %v631 = vunpack.c.l.b16 %v237
      %v632 = vunpack.c.l.b16 %v238
      %v633 = vunpack.c.l.b16 %v239
      %v634 = vunpack.c.l.b16 %v240
      %v635 = vunpack.c.l.b16 %v241
      %v636 = vunpack.c.l.b16 %v242
      %v637 = vunpack.c.l.b16 %v243
      %v638 = vunpack.c.l.b16 %v244
      %v639 = vunpack.c.l.b16 %v245
      %v640 = vunpack.c.l.b16 %v246
      %v641 = vunpack.c.l.b16 %v247
      %v642 = vunpack.c.l.b16 %v248
      %v643 = vunpack.c.l.b16 %v249
      %v644 = vunpack.c.l.b16 %v250
      %v645 = vunpack.c.l.b16 %v251
      %v646 = vunpack.c.l.b16 %v252
      %v647 = vunpack.c.l.b16 %v253
      %v648 = vunpack.c.l.b16 %v254
      %v649 = vpack.c.b16 %v618, %v617
      %v650 = vpack.c.b16 %v620, %v619
      %v651 = vpack.c.b16 %v622, %v621
      %v652 = vpack.c.b16 %v624, %v623
      %v653 = vpack.c.b16 %v626, %v625
      %v654 = vpack.c.b16 %v628, %v627
      %v655 = vpack.c.b16 %v630, %v629
      %v656 = vpack.c.b16 %v632, %v631
      %v657 = vpack.c.b16 %v634, %v633
      %v658 = vpack.c.b16 %v636, %v635
      %v659 = vpack.c.b16 %v638, %v637
      %v660 = vpack.c.b16 %v640, %v639
      %v661 = vpack.c.b16 %v642, %v641
      %v662 = vpack.c.b16 %v644, %v643
      %v663 = vpack.c.b16 %v646, %v645
      %v664 = vpack.c.b16 %v648, %v647
      %v666 = vsel %vm371, %v649, 0
      %v669 = vsel %vm371, %v650, 0
      %v672 = vsel %vm371, %v651, 0
      %v675 = vsel %vm371, %v652, 0
      %v678 = vsel %vm371, %v653, 0
      %v681 = vsel %vm371, %v654, 0
      %v684 = vsel %vm371, %v655, 0
      %v687 = vsel %vm371, %v656, 0
      %v690 = vsel %vm371, %v657, 0
      %v693 = vsel %vm371, %v658, 0
      %v696 = vsel %vm371, %v659, 0
      %v699 = vsel %vm371, %v660, 0
      %v702 = vsel %vm371, %v661, 0
      %v705 = vsel %vm371, %v662, 0
      %v708 = vsel %vm371, %v663, 0
      %v711 = vsel %vm371, %v664, 0
      %v714 = vsel %vm420, %v255, 0
      %716 = vmatprep.subr.bf16.mxu0 0
      %717 = vmatpush1.bf16.msra.mxu0 %v714
      %718 = vmatprep.subr.bf16.mxu0 0
      %719 = vmatpush1.bf16.msra.mxu0 0
      %720 = vmatprep.subr.bf16.mxu0 0
      %721 = vmatpush1.bf16.msra.mxu0 0
      %722 = vmatprep.subr.bf16.mxu0 0
      %723 = vmatpush1.bf16.msra.mxu0 0
      %724 = vmatprep.subr.bf16.mxu0 0
      %725 = vmatpush1.bf16.msra.mxu0 0
      %726 = vmatprep.subr.bf16.mxu0 0
      %727 = vmatpush1.bf16.msra.mxu0 0
      %728 = vmatprep.subr.bf16.mxu0 0
      %729 = vmatpush1.bf16.msra.mxu0 0
      %730 = vmatprep.subr.bf16.mxu0 0
      %731 = vmatpush1.bf16.msra.mxu0 0
      %732 = vmatprep.subr.bf16.mxu0 0
      %733 = vmatpush1.bf16.msra.mxu0 0
      %734 = vmatprep.subr.bf16.mxu0 0
      %735 = vmatpush1.bf16.msra.mxu0 0
      %736 = vmatprep.subr.bf16.mxu0 0
      %737 = vmatpush1.bf16.msra.mxu0 0
      %738 = vmatprep.subr.bf16.mxu0 0
      %739 = vmatpush1.bf16.msra.mxu0 0
      %740 = vmatprep.subr.bf16.mxu0 0
      %741 = vmatpush1.bf16.msra.mxu0 0
      %742 = vmatprep.subr.bf16.mxu0 0
      %743 = vmatpush1.bf16.msra.mxu0 0
      %744 = vmatprep.subr.bf16.mxu0 0
      %745 = vmatpush1.bf16.msra.mxu0 0
      %746 = vmatprep.subr.bf16.mxu0 0
      %747 = vmatpush1.bf16.msra.mxu0 0
      %748 = vmatprep.mubr.bf16.mxu0 0
      %749 = vmatmul.mubr.bf16.gmra.mrb[0].mxu0 %v666
      %v750 = vpop.f32.mrb[0].mxu0
      %v751 = vadd.f32 %v459, %v750
      %v752 = vpop.f32.mrb[0].mxu0
      %v753 = vpop.f32.mrb[0].mxu0
      %v754 = vadd.f32 %v462, %v753
      %v755 = vpop.f32.mrb[0].mxu0
      %756 = vmatprep.mubr.bf16.mxu0 0
      %757 = vmatmul.mubr.bf16.gmra.mrb[0].mxu0 %v669
      %v758 = vpop.f32.mrb[0].mxu0
      %v759 = vadd.f32 %v467, %v758
      %v760 = vpop.f32.mrb[0].mxu0
      %v761 = vpop.f32.mrb[0].mxu0
      %v762 = vadd.f32 %v470, %v761
      %v763 = vpop.f32.mrb[0].mxu0
      %764 = vmatprep.mubr.bf16.mxu0 0
      %765 = vmatmul.mubr.bf16.gmra.mrb[0].mxu0 %v672
      %v766 = vpop.f32.mrb[0].mxu0
      %v767 = vadd.f32 %v475, %v766
      %v768 = vpop.f32.mrb[0].mxu0
      %v769 = vpop.f32.mrb[0].mxu0
      %v770 = vadd.f32 %v478, %v769
      %v771 = vpop.f32.mrb[0].mxu0
      %772 = vmatprep.mubr.bf16.mxu0 0
      %773 = vmatmul.mubr.bf16.gmra.mrb[0].mxu0 %v675
      %v774 = vpop.f32.mrb[0].mxu0
      %v775 = vadd.f32 %v483, %v774
      %v776 = vpop.f32.mrb[0].mxu0
      %v777 = vpop.f32.mrb[0].mxu0
      %v778 = vadd.f32 %v486, %v777
      %v779 = vpop.f32.mrb[0].mxu0
      %780 = vmatprep.mubr.bf16.mxu0 0
      %781 = vmatmul.mubr.bf16.gmra.mrb[0].mxu0 %v678
      %v782 = vpop.f32.mrb[0].mxu0
      %v783 = vadd.f32 %v491, %v782
      %v784 = vpop.f32.mrb[0].mxu0
      %v785 = vpop.f32.mrb[0].mxu0
      %v786 = vadd.f32 %v494, %v785
      %v787 = vpop.f32.mrb[0].mxu0
      %788 = vmatprep.mubr.bf16.mxu0 0
      %789 = vmatmul.mubr.bf16.gmra.mrb[0].mxu0 %v681
      %v790 = vpop.f32.mrb[0].mxu0
      %v791 = vadd.f32 %v499, %v790
      %v792 = vpop.f32.mrb[0].mxu0
      %v793 = vpop.f32.mrb[0].mxu0
      %v794 = vadd.f32 %v502, %v793
      %v795 = vpop.f32.mrb[0].mxu0
      %796 = vmatprep.mubr.bf16.mxu0 0
      %797 = vmatmul.mubr.bf16.gmra.mrb[0].mxu0 %v684
      %v798 = vpop.f32.mrb[0].mxu0
      %v799 = vadd.f32 %v507, %v798
      %v800 = vpop.f32.mrb[0].mxu0
      %v801 = vpop.f32.mrb[0].mxu0
      %v802 = vadd.f32 %v510, %v801
      %v803 = vpop.f32.mrb[0].mxu0
      %804 = vmatprep.mubr.bf16.mxu0 0
      %805 = vmatmul.mubr.bf16.gmra.mrb[0].mxu0 %v687
      %v806 = vpop.f32.mrb[0].mxu0
      %v807 = vadd.f32 %v515, %v806
      %v808 = vpop.f32.mrb[0].mxu0
      %v809 = vpop.f32.mrb[0].mxu0
      %v810 = vadd.f32 %v518, %v809
      %v811 = vpop.f32.mrb[0].mxu0
      %812 = vmatprep.mubr.bf16.mxu0 0
      %813 = vmatmul.mubr.bf16.gmra.mrb[0].mxu0 %v690
      %v814 = vpop.f32.mrb[0].mxu0
      %v815 = vadd.f32 %v523, %v814
      %v816 = vpop.f32.mrb[0].mxu0
      %v817 = vpop.f32.mrb[0].mxu0
      %v818 = vadd.f32 %v526, %v817
      %v819 = vpop.f32.mrb[0].mxu0
      %820 = vmatprep.mubr.bf16.mxu0 0
      %821 = vmatmul.mubr.bf16.gmra.mrb[0].mxu0 %v693
      %v822 = vpop.f32.mrb[0].mxu0
      %v823 = vadd.f32 %v531, %v822
      %v824 = vpop.f32.mrb[0].mxu0
      %v825 = vpop.f32.mrb[0].mxu0
      %v826 = vadd.f32 %v534, %v825
      %v827 = vpop.f32.mrb[0].mxu0
      %828 = vmatprep.mubr.bf16.mxu0 0
      %829 = vmatmul.mubr.bf16.gmra.mrb[0].mxu0 %v696
      %v830 = vpop.f32.mrb[0].mxu0
      %v831 = vadd.f32 %v539, %v830
      %v832 = vpop.f32.mrb[0].mxu0
      %v833 = vpop.f32.mrb[0].mxu0
      %v834 = vadd.f32 %v542, %v833
      %v835 = vpop.f32.mrb[0].mxu0
      %836 = vmatprep.mubr.bf16.mxu0 0
      %837 = vmatmul.mubr.bf16.gmra.mrb[0].mxu0 %v699
      %v838 = vpop.f32.mrb[0].mxu0
      %v839 = vadd.f32 %v547, %v838
      %v840 = vpop.f32.mrb[0].mxu0
      %v841 = vpop.f32.mrb[0].mxu0
      %v842 = vadd.f32 %v550, %v841
      %v843 = vpop.f32.mrb[0].mxu0
      %844 = vmatprep.mubr.bf16.mxu0 0
      %845 = vmatmul.mubr.bf16.gmra.mrb[0].mxu0 %v702
      %v846 = vpop.f32.mrb[0].mxu0
      %v847 = vadd.f32 %v555, %v846
      %v848 = vpop.f32.mrb[0].mxu0
      %v849 = vpop.f32.mrb[0].mxu0
      %v850 = vadd.f32 %v558, %v849
      %v851 = vpop.f32.mrb[0].mxu0
      %852 = vmatprep.mubr.bf16.mxu0 0
      %853 = vmatmul.mubr.bf16.gmra.mrb[0].mxu0 %v705
      %v854 = vpop.f32.mrb[0].mxu0
      %v855 = vadd.f32 %v563, %v854
      %v856 = vpop.f32.mrb[0].mxu0
      %v857 = vpop.f32.mrb[0].mxu0
      %v858 = vadd.f32 %v566, %v857
      %v859 = vpop.f32.mrb[0].mxu0
      %860 = vmatprep.mubr.bf16.mxu0 0
      %861 = vmatmul.mubr.bf16.gmra.mrb[0].mxu0 %v708
      %v862 = vpop.f32.mrb[0].mxu0
      %v863 = vadd.f32 %v571, %v862
      %v864 = vpop.f32.mrb[0].mxu0
      %v865 = vpop.f32.mrb[0].mxu0
      %v866 = vadd.f32 %v574, %v865
      %v867 = vpop.f32.mrb[0].mxu0
      %868 = vmatprep.mubr.bf16.mxu0 0
      %869 = vmatmul.mubr.bf16.gmra.mrb[0].mxu0 %v711
      %v870 = vpop.f32.mrb[0].mxu0
      %v871 = vadd.f32 %v579, %v870
      %v872 = vpop.f32.mrb[0].mxu0
      %v873 = vpop.f32.mrb[0].mxu0
      %v874 = vadd.f32 %v582, %v873
      %v875 = vpop.f32.mrb[0].mxu0
      %876 = vdwg.mxu0
      %v877 = vld [vmem:[%s206] sm:$0xf]
      %v878 = vld [vmem:[%s206 + $0x4] sm:$0xf]
      %v879 = vld [vmem:[%s206 + $0x8] sm:$0x1]
      %v880 = vld [vmem:[%s206 + $0xc] sm:$0xf]
      %v881 = vld [vmem:[%s206 + $0x10] sm:$0xf]
      %v882 = vld [vmem:[%s206 + $0x14] sm:$0x1]
      %v883 = vld [vmem:[%s206 + $0x18] sm:$0xf]
      %v884 = vld [vmem:[%s206 + $0x1c] sm:$0xf]
      %v885 = vld [vmem:[%s206 + $0x20] sm:$0x1]
      %v886 = vld [vmem:[%s206 + $0x24] sm:$0xf]
      %v887 = vld [vmem:[%s206 + $0x28] sm:$0xf]
      %v888 = vld [vmem:[%s206 + $0x2c] sm:$0x1]
      %v889 = vld [vmem:[%s206 + $0x30] sm:$0xf]
      %v890 = vld [vmem:[%s206 + $0x34] sm:$0xf]
      %v891 = vld [vmem:[%s206 + $0x38] sm:$0x1]
      %v892 = vld [vmem:[%s206 + $0x3c] sm:$0xf]
      %v893 = vld [vmem:[%s206 + $0x40] sm:$0xf]
      %v894 = vld [vmem:[%s206 + $0x44] sm:$0x1]
      %v895 = vld [vmem:[%s206 + $0x48] sm:$0xf]
      %v896 = vld [vmem:[%s206 + $0x4c] sm:$0xf]
      %v897 = vld [vmem:[%s206 + $0x50] sm:$0x1]
      %v898 = vld [vmem:[%s206 + $0x54] sm:$0xf]
      %v899 = vld [vmem:[%s206 + $0x58] sm:$0xf]
      %v900 = vld [vmem:[%s206 + $0x5c] sm:$0x1]
      %v901 = vld [vmem:[%s206 + $0x60] sm:$0xf]
      %v902 = vld [vmem:[%s206 + $0x64] sm:$0xf]
      %v903 = vld [vmem:[%s206 + $0x68] sm:$0x1]
      %v904 = vld [vmem:[%s206 + $0x6c] sm:$0xf]
      %v905 = vld [vmem:[%s206 + $0x70] sm:$0xf]
      %v906 = vld [vmem:[%s206 + $0x74] sm:$0x1]
      %v907 = vld [vmem:[%s206 + $0x78] sm:$0xf]
      %v908 = vld [vmem:[%s206 + $0x7c] sm:$0xf]
      %v909 = vld [vmem:[%s206 + $0x80] sm:$0x1]
      %v910 = vld [vmem:[%s206 + $0x84] sm:$0xf]
      %v911 = vld [vmem:[%s206 + $0x88] sm:$0xf]
      %v912 = vld [vmem:[%s206 + $0x8c] sm:$0x1]
      %v913 = vld [vmem:[%s206 + $0x90] sm:$0xf]
      %v914 = vld [vmem:[%s206 + $0x94] sm:$0xf]
      %v915 = vld [vmem:[%s206 + $0x98] sm:$0x1]
      %v916 = vld [vmem:[%s206 + $0x9c] sm:$0xf]
      %v917 = vld [vmem:[%s206 + $0xa0] sm:$0xf]
      %v918 = vld [vmem:[%s206 + $0xa4] sm:$0x1]
      %v919 = vld [vmem:[%s206 + $0xa8] sm:$0xf]
      %v920 = vld [vmem:[%s206 + $0xac] sm:$0xf]
      %v921 = vld [vmem:[%s206 + $0xb0] sm:$0x1]
      %v922 = vld [vmem:[%s206 + $0xb4] sm:$0xf]
      %v923 = vld [vmem:[%s206 + $0xb8] sm:$0xf]
      %v924 = vld [vmem:[%s206 + $0xbc] sm:$0x1]
      %vm925 = vsmask.f32 3328
      %vm926 = vsmask.f32 7440
      %vm927 = vmor %vm925, %vm926
      %v929 = vshrl.u32 %v877, 16
      %v931 = vrot.slane %v929, 4
      %v932 = vshll.u32 %v877, 16
      %v934 = vrot.slane %v932, 5
      %v935 = vor.u32 %v931, %v934
      %v936 = vrot.slane %v935, 4
      %v938 = vshll.u32 %v878, 16
      %v940 = vrot.slane %v938, 5
      %v941 = vsel %vm927, %v936, %v940
      %v942 = vshrl.u32 %v878, 16
      %v944 = vrot.slane %v942, 4
      %v945 = vor.u32 %v944, %v940
      %v946 = vrot.slane %v945, 4
      %v948 = vshll.u32 %v879, 16
      %v950 = vrot.slane %v948, 5
      %v951 = vsel %vm927, %v946, %v950
      %v953 = vshrl.u32 %v880, 16
      %v955 = vrot.slane %v953, 4
      %v956 = vshll.u32 %v880, 16
      %v958 = vrot.slane %v956, 5
      %v959 = vor.u32 %v955, %v958
      %v960 = vrot.slane %v959, 4
      %v962 = vshll.u32 %v881, 16
      %v964 = vrot.slane %v962, 5
      %v965 = vsel %vm927, %v960, %v964
      %v966 = vshrl.u32 %v881, 16
      %v968 = vrot.slane %v966, 4
      %v969 = vor.u32 %v968, %v964
      %v970 = vrot.slane %v969, 4
      %v972 = vshll.u32 %v882, 16
      %v974 = vrot.slane %v972, 5
      %v975 = vsel %vm927, %v970, %v974
      %v977 = vshrl.u32 %v883, 16
      %v979 = vrot.slane %v977, 4
      %v980 = vshll.u32 %v883, 16
      %v982 = vrot.slane %v980, 5
      %v983 = vor.u32 %v979, %v982
      %v984 = vrot.slane %v983, 4
      %v986 = vshll.u32 %v884, 16
      %v988 = vrot.slane %v986, 5
      %v989 = vsel %vm927, %v984, %v988
      %v990 = vshrl.u32 %v884, 16
      %v992 = vrot.slane %v990, 4
      %v993 = vor.u32 %v992, %v988
      %v994 = vrot.slane %v993, 4
      %v996 = vshll.u32 %v885, 16
      %v998 = vrot.slane %v996, 5
      %v999 = vsel %vm927, %v994, %v998
      %v1001 = vshrl.u32 %v886, 16
      %v1003 = vrot.slane %v1001, 4
      %v1004 = vshll.u32 %v886, 16
      %v1006 = vrot.slane %v1004, 5
      %v1007 = vor.u32 %v1003, %v1006
      %v1008 = vrot.slane %v1007, 4
      %v1010 = vshll.u32 %v887, 16
      %v1012 = vrot.slane %v1010, 5
      %v1013 = vsel %vm927, %v1008, %v1012
      %v1014 = vshrl.u32 %v887, 16
      %v1016 = vrot.slane %v1014, 4
      %v1017 = vor.u32 %v1016, %v1012
      %v1018 = vrot.slane %v1017, 4
      %v1020 = vshll.u32 %v888, 16
      %v1022 = vrot.slane %v1020, 5
      %v1023 = vsel %vm927, %v1018, %v1022
      %v1025 = vshrl.u32 %v889, 16
      %v1027 = vrot.slane %v1025, 4
      %v1028 = vshll.u32 %v889, 16
      %v1030 = vrot.slane %v1028, 5
      %v1031 = vor.u32 %v1027, %v1030
      %v1032 = vrot.slane %v1031, 4
      %v1034 = vshll.u32 %v890, 16
      %v1036 = vrot.slane %v1034, 5
      %v1037 = vsel %vm927, %v1032, %v1036
      %v1038 = vshrl.u32 %v890, 16
      %v1040 = vrot.slane %v1038, 4
      %v1041 = vor.u32 %v1040, %v1036
      %v1042 = vrot.slane %v1041, 4
      %v1044 = vshll.u32 %v891, 16
      %v1046 = vrot.slane %v1044, 5
      %v1047 = vsel %vm927, %v1042, %v1046
      %v1049 = vshrl.u32 %v892, 16
      %v1051 = vrot.slane %v1049, 4
      %v1052 = vshll.u32 %v892, 16
      %v1054 = vrot.slane %v1052, 5
      %v1055 = vor.u32 %v1051, %v1054
      %v1056 = vrot.slane %v1055, 4
      %v1058 = vshll.u32 %v893, 16
      %v1060 = vrot.slane %v1058, 5
      %v1061 = vsel %vm927, %v1056, %v1060
      %v1062 = vshrl.u32 %v893, 16
      %v1064 = vrot.slane %v1062, 4
      %v1065 = vor.u32 %v1064, %v1060
      %v1066 = vrot.slane %v1065, 4
      %v1068 = vshll.u32 %v894, 16
      %v1070 = vrot.slane %v1068, 5
      %v1071 = vsel %vm927, %v1066, %v1070
      %v1073 = vshrl.u32 %v895, 16
      %v1075 = vrot.slane %v1073, 4
      %v1076 = vshll.u32 %v895, 16
      %v1078 = vrot.slane %v1076, 5
      %v1079 = vor.u32 %v1075, %v1078
      %v1080 = vrot.slane %v1079, 4
      %v1082 = vshll.u32 %v896, 16
      %v1084 = vrot.slane %v1082, 5
      %v1085 = vsel %vm927, %v1080, %v1084
      %v1086 = vshrl.u32 %v896, 16
      %v1088 = vrot.slane %v1086, 4
      %v1089 = vor.u32 %v1088, %v1084
      %v1090 = vrot.slane %v1089, 4
      %v1092 = vshll.u32 %v897, 16
      %v1094 = vrot.slane %v1092, 5
      %v1095 = vsel %vm927, %v1090, %v1094
      %v1097 = vshrl.u32 %v898, 16
      %v1099 = vrot.slane %v1097, 4
      %v1100 = vshll.u32 %v898, 16
      %v1102 = vrot.slane %v1100, 5
      %v1103 = vor.u32 %v1099, %v1102
      %v1104 = vrot.slane %v1103, 4
      %v1106 = vshll.u32 %v899, 16
      %v1108 = vrot.slane %v1106, 5
      %v1109 = vsel %vm927, %v1104, %v1108
      %v1110 = vshrl.u32 %v899, 16
      %v1112 = vrot.slane %v1110, 4
      %v1113 = vor.u32 %v1112, %v1108
      %v1114 = vrot.slane %v1113, 4
      %v1116 = vshll.u32 %v900, 16
      %v1118 = vrot.slane %v1116, 5
      %v1119 = vsel %vm927, %v1114, %v1118
      %v1121 = vshrl.u32 %v901, 16
      %v1123 = vrot.slane %v1121, 4
      %v1124 = vshll.u32 %v901, 16
      %v1126 = vrot.slane %v1124, 5
      %v1127 = vor.u32 %v1123, %v1126
      %v1128 = vrot.slane %v1127, 4
      %v1130 = vshll.u32 %v902, 16
      %v1132 = vrot.slane %v1130, 5
      %v1133 = vsel %vm927, %v1128, %v1132
      %v1134 = vshrl.u32 %v902, 16
      %v1136 = vrot.slane %v1134, 4
      %v1137 = vor.u32 %v1136, %v1132
      %v1138 = vrot.slane %v1137, 4
      %v1140 = vshll.u32 %v903, 16
      %v1142 = vrot.slane %v1140, 5
      %v1143 = vsel %vm927, %v1138, %v1142
      %v1145 = vshrl.u32 %v904, 16
      %v1147 = vrot.slane %v1145, 4
      %v1148 = vshll.u32 %v904, 16
      %v1150 = vrot.slane %v1148, 5
      %v1151 = vor.u32 %v1147, %v1150
      %v1152 = vrot.slane %v1151, 4
      %v1154 = vshll.u32 %v905, 16
      %v1156 = vrot.slane %v1154, 5
      %v1157 = vsel %vm927, %v1152, %v1156
      %v1158 = vshrl.u32 %v905, 16
      %v1160 = vrot.slane %v1158, 4
      %v1161 = vor.u32 %v1160, %v1156
      %v1162 = vrot.slane %v1161, 4
      %v1164 = vshll.u32 %v906, 16
      %v1166 = vrot.slane %v1164, 5
      %v1167 = vsel %vm927, %v1162, %v1166
      %v1169 = vshrl.u32 %v907, 16
      %v1171 = vrot.slane %v1169, 4
      %v1172 = vshll.u32 %v907, 16
      %v1174 = vrot.slane %v1172, 5
      %v1175 = vor.u32 %v1171, %v1174
      %v1176 = vrot.slane %v1175, 4
      %v1178 = vshll.u32 %v908, 16
      %v1180 = vrot.slane %v1178, 5
      %v1181 = vsel %vm927, %v1176, %v1180
      %v1182 = vshrl.u32 %v908, 16
      %v1184 = vrot.slane %v1182, 4
      %v1185 = vor.u32 %v1184, %v1180
      %v1186 = vrot.slane %v1185, 4
      %v1188 = vshll.u32 %v909, 16
      %v1190 = vrot.slane %v1188, 5
      %v1191 = vsel %vm927, %v1186, %v1190
      %v1193 = vshrl.u32 %v910, 16
      %v1195 = vrot.slane %v1193, 4
      %v1196 = vshll.u32 %v910, 16
      %v1198 = vrot.slane %v1196, 5
      %v1199 = vor.u32 %v1195, %v1198
      %v1200 = vrot.slane %v1199, 4
      %v1202 = vshll.u32 %v911, 16
      %v1204 = vrot.slane %v1202, 5
      %v1205 = vsel %vm927, %v1200, %v1204
      %v1206 = vshrl.u32 %v911, 16
      %v1208 = vrot.slane %v1206, 4
      %v1209 = vor.u32 %v1208, %v1204
      %v1210 = vrot.slane %v1209, 4
      %v1212 = vshll.u32 %v912, 16
      %v1214 = vrot.slane %v1212, 5
      %v1215 = vsel %vm927, %v1210, %v1214
      %v1217 = vshrl.u32 %v913, 16
      %v1219 = vrot.slane %v1217, 4
      %v1220 = vshll.u32 %v913, 16
      %v1222 = vrot.slane %v1220, 5
      %v1223 = vor.u32 %v1219, %v1222
      %v1224 = vrot.slane %v1223, 4
      %v1226 = vshll.u32 %v914, 16
      %v1228 = vrot.slane %v1226, 5
      %v1229 = vsel %vm927, %v1224, %v1228
      %v1230 = vshrl.u32 %v914, 16
      %v1232 = vrot.slane %v1230, 4
      %v1233 = vor.u32 %v1232, %v1228
      %v1234 = vrot.slane %v1233, 4
      %v1236 = vshll.u32 %v915, 16
      %v1238 = vrot.slane %v1236, 5
      %v1239 = vsel %vm927, %v1234, %v1238
      %v1241 = vshrl.u32 %v916, 16
      %v1243 = vrot.slane %v1241, 4
      %v1244 = vshll.u32 %v916, 16
      %v1246 = vrot.slane %v1244, 5
      %v1247 = vor.u32 %v1243, %v1246
      %v1248 = vrot.slane %v1247, 4
      %v1250 = vshll.u32 %v917, 16
      %v1252 = vrot.slane %v1250, 5
      %v1253 = vsel %vm927, %v1248, %v1252
      %v1254 = vshrl.u32 %v917, 16
      %v1256 = vrot.slane %v1254, 4
      %v1257 = vor.u32 %v1256, %v1252
      %v1258 = vrot.slane %v1257, 4
      %v1260 = vshll.u32 %v918, 16
      %v1262 = vrot.slane %v1260, 5
      %v1263 = vsel %vm927, %v1258, %v1262
      %v1265 = vshrl.u32 %v919, 16
      %v1267 = vrot.slane %v1265, 4
      %v1268 = vshll.u32 %v919, 16
      %v1270 = vrot.slane %v1268, 5
      %v1271 = vor.u32 %v1267, %v1270
      %v1272 = vrot.slane %v1271, 4
      %v1274 = vshll.u32 %v920, 16
      %v1276 = vrot.slane %v1274, 5
      %v1277 = vsel %vm927, %v1272, %v1276
      %v1278 = vshrl.u32 %v920, 16
      %v1280 = vrot.slane %v1278, 4
      %v1281 = vor.u32 %v1280, %v1276
      %v1282 = vrot.slane %v1281, 4
      %v1284 = vshll.u32 %v921, 16
      %v1286 = vrot.slane %v1284, 5
      %v1287 = vsel %vm927, %v1282, %v1286
      %v1289 = vshrl.u32 %v922, 16
      %v1291 = vrot.slane %v1289, 4
      %v1292 = vshll.u32 %v922, 16
      %v1294 = vrot.slane %v1292, 5
      %v1295 = vor.u32 %v1291, %v1294
      %v1296 = vrot.slane %v1295, 4
      %v1298 = vshll.u32 %v923, 16
      %v1300 = vrot.slane %v1298, 5
      %v1301 = vsel %vm927, %v1296, %v1300
      %v1302 = vshrl.u32 %v923, 16
      %v1304 = vrot.slane %v1302, 4
      %v1305 = vor.u32 %v1304, %v1300
      %v1306 = vrot.slane %v1305, 4
      %v1308 = vshll.u32 %v924, 16
      %v1310 = vrot.slane %v1308, 5
      %v1311 = vsel %vm927, %v1306, %v1310
      %s1312 = scalar_lea.vmem %s210, 8
      %v1313 = vld [vmem:[%s1312] sm:$0xf]
      %v1314 = vunpack.c.l.b16 %v941
      %v1315 = vunpack.c.l.b16 %v951
      %v1316 = vunpack.c.l.b16 %v965
      %v1317 = vunpack.c.l.b16 %v975
      %v1318 = vunpack.c.l.b16 %v989
      %v1319 = vunpack.c.l.b16 %v999
      %v1320 = vunpack.c.l.b16 %v1013
      %v1321 = vunpack.c.l.b16 %v1023
      %v1322 = vunpack.c.l.b16 %v1037
      %v1323 = vunpack.c.l.b16 %v1047
      %v1324 = vunpack.c.l.b16 %v1061
      %v1325 = vunpack.c.l.b16 %v1071
      %v1326 = vunpack.c.l.b16 %v1085
      %v1327 = vunpack.c.l.b16 %v1095
      %v1328 = vunpack.c.l.b16 %v1109
      %v1329 = vunpack.c.l.b16 %v1119
      %v1330 = vunpack.c.l.b16 %v1133
      %v1331 = vunpack.c.l.b16 %v1143
      %v1332 = vunpack.c.l.b16 %v1157
      %v1333 = vunpack.c.l.b16 %v1167
      %v1334 = vunpack.c.l.b16 %v1181
      %v1335 = vunpack.c.l.b16 %v1191
      %v1336 = vunpack.c.l.b16 %v1205
      %v1337 = vunpack.c.l.b16 %v1215
      %v1338 = vunpack.c.l.b16 %v1229
      %v1339 = vunpack.c.l.b16 %v1239
      %v1340 = vunpack.c.l.b16 %v1253
      %v1341 = vunpack.c.l.b16 %v1263
      %v1342 = vunpack.c.l.b16 %v1277
      %v1343 = vunpack.c.l.b16 %v1287
      %v1344 = vunpack.c.l.b16 %v1301
      %v1345 = vunpack.c.l.b16 %v1311
      %v1346 = vpack.c.b16 %v1315, %v1314
      %v1347 = vpack.c.b16 %v1317, %v1316
      %v1348 = vpack.c.b16 %v1319, %v1318
      %v1349 = vpack.c.b16 %v1321, %v1320
      %v1350 = vpack.c.b16 %v1323, %v1322
      %v1351 = vpack.c.b16 %v1325, %v1324
      %v1352 = vpack.c.b16 %v1327, %v1326
      %v1353 = vpack.c.b16 %v1329, %v1328
      %v1354 = vpack.c.b16 %v1331, %v1330
      %v1355 = vpack.c.b16 %v1333, %v1332
      %v1356 = vpack.c.b16 %v1335, %v1334
      %v1357 = vpack.c.b16 %v1337, %v1336
      %v1358 = vpack.c.b16 %v1339, %v1338
      %v1359 = vpack.c.b16 %v1341, %v1340
      %v1360 = vpack.c.b16 %v1343, %v1342
      %v1361 = vpack.c.b16 %v1345, %v1344
      %v1363 = vsel %vm371, %v1346, 0
      %v1366 = vsel %vm371, %v1347, 0
      %v1369 = vsel %vm371, %v1348, 0
      %v1372 = vsel %vm371, %v1349, 0
      %v1375 = vsel %vm371, %v1350, 0
      %v1378 = vsel %vm371, %v1351, 0
      %v1381 = vsel %vm371, %v1352, 0
      %v1384 = vsel %vm371, %v1353, 0
      %v1387 = vsel %vm371, %v1354, 0
      %v1390 = vsel %vm371, %v1355, 0
      %v1393 = vsel %vm371, %v1356, 0
      %v1396 = vsel %vm371, %v1357, 0
      %v1399 = vsel %vm371, %v1358, 0
      %v1402 = vsel %vm371, %v1359, 0
      %v1405 = vsel %vm371, %v1360, 0
      %v1408 = vsel %vm371, %v1361, 0
      %v1411 = vsel %vm420, %v1313, 0
      %1413 = vmatprep.subr.bf16.mxu0 0
      %1414 = vmatpush1.bf16.msra.mxu0 %v1411
      %1415 = vmatprep.subr.bf16.mxu0 0
      %1416 = vmatpush1.bf16.msra.mxu0 0
      %1417 = vmatprep.subr.bf16.mxu0 0
      %1418 = vmatpush1.bf16.msra.mxu0 0
      %1419 = vmatprep.subr.bf16.mxu0 0
      %1420 = vmatpush1.bf16.msra.mxu0 0
      %1421 = vmatprep.subr.bf16.mxu0 0
      %1422 = vmatpush1.bf16.msra.mxu0 0
      %1423 = vmatprep.subr.bf16.mxu0 0
      %1424 = vmatpush1.bf16.msra.mxu0 0
      %1425 = vmatprep.subr.bf16.mxu0 0
      %1426 = vmatpush1.bf16.msra.mxu0 0
      %1427 = vmatprep.subr.bf16.mxu0 0
      %1428 = vmatpush1.bf16.msra.mxu0 0
      %1429 = vmatprep.subr.bf16.mxu0 0
      %1430 = vmatpush1.bf16.msra.mxu0 0
      %1431 = vmatprep.subr.bf16.mxu0 0
      %1432 = vmatpush1.bf16.msra.mxu0 0
      %1433 = vmatprep.subr.bf16.mxu0 0
      %1434 = vmatpush1.bf16.msra.mxu0 0
      %1435 = vmatprep.subr.bf16.mxu0 0
      %1436 = vmatpush1.bf16.msra.mxu0 0
      %1437 = vmatprep.subr.bf16.mxu0 0
      %1438 = vmatpush1.bf16.msra.mxu0 0
      %1439 = vmatprep.subr.bf16.mxu0 0
      %1440 = vmatpush1.bf16.msra.mxu0 0
      %1441 = vmatprep.subr.bf16.mxu0 0
      %1442 = vmatpush1.bf16.msra.mxu0 0
      %1443 = vmatprep.subr.bf16.mxu0 0
      %1444 = vmatpush1.bf16.msra.mxu0 0
      %1445 = vmatprep.mubr.bf16.mxu0 0
      %1446 = vmatmul.mubr.bf16.gmra.mrb[0].mxu0 %v1363
      %v1447 = vpop.f32.mrb[0].mxu0
      %v1448 = vadd.f32 0.0, %v1447
      %v1449 = vpop.f32.mrb[0].mxu0
      %v1450 = vpop.f32.mrb[0].mxu0
      %v1451 = vadd.f32 0.0, %v1450
      %v1452 = vpop.f32.mrb[0].mxu0
      %1453 = vmatprep.mubr.bf16.mxu0 0
      %1454 = vmatmul.mubr.bf16.gmra.mrb[0].mxu0 %v1366
      %v1455 = vpop.f32.mrb[0].mxu0
      %v1456 = vadd.f32 0.0, %v1455
      %v1457 = vpop.f32.mrb[0].mxu0
      %v1458 = vpop.f32.mrb[0].mxu0
      %v1459 = vadd.f32 0.0, %v1458
      %v1460 = vpop.f32.mrb[0].mxu0
      %1461 = vmatprep.mubr.bf16.mxu0 0
      %1462 = vmatmul.mubr.bf16.gmra.mrb[0].mxu0 %v1369
      %v1463 = vpop.f32.mrb[0].mxu0
      %v1464 = vadd.f32 0.0, %v1463
      %v1465 = vpop.f32.mrb[0].mxu0
      %v1466 = vpop.f32.mrb[0].mxu0
      %v1467 = vadd.f32 0.0, %v1466
      %v1468 = vpop.f32.mrb[0].mxu0
      %1469 = vmatprep.mubr.bf16.mxu0 0
      %1470 = vmatmul.mubr.bf16.gmra.mrb[0].mxu0 %v1372
      %v1471 = vpop.f32.mrb[0].mxu0
      %v1472 = vadd.f32 0.0, %v1471
      %v1473 = vpop.f32.mrb[0].mxu0
      %v1474 = vpop.f32.mrb[0].mxu0
      %v1475 = vadd.f32 0.0, %v1474
      %v1476 = vpop.f32.mrb[0].mxu0
      %1477 = vmatprep.mubr.bf16.mxu0 0
      %1478 = vmatmul.mubr.bf16.gmra.mrb[0].mxu0 %v1375
      %v1479 = vpop.f32.mrb[0].mxu0
      %v1480 = vadd.f32 0.0, %v1479
      %v1481 = vpop.f32.mrb[0].mxu0
      %v1482 = vpop.f32.mrb[0].mxu0
      %v1483 = vadd.f32 0.0, %v1482
      %v1484 = vpop.f32.mrb[0].mxu0
      %1485 = vmatprep.mubr.bf16.mxu0 0
      %1486 = vmatmul.mubr.bf16.gmra.mrb[0].mxu0 %v1378
      %v1487 = vpop.f32.mrb[0].mxu0
      %v1488 = vadd.f32 0.0, %v1487
      %v1489 = vpop.f32.mrb[0].mxu0
      %v1490 = vpop.f32.mrb[0].mxu0
      %v1491 = vadd.f32 0.0, %v1490
      %v1492 = vpop.f32.mrb[0].mxu0
      %1493 = vmatprep.mubr.bf16.mxu0 0
      %1494 = vmatmul.mubr.bf16.gmra.mrb[0].mxu0 %v1381
      %v1495 = vpop.f32.mrb[0].mxu0
      %v1496 = vadd.f32 0.0, %v1495
      %v1497 = vpop.f32.mrb[0].mxu0
      %v1498 = vpop.f32.mrb[0].mxu0
      %v1499 = vadd.f32 0.0, %v1498
      %v1500 = vpop.f32.mrb[0].mxu0
      %1501 = vmatprep.mubr.bf16.mxu0 0
      %1502 = vmatmul.mubr.bf16.gmra.mrb[0].mxu0 %v1384
      %v1503 = vpop.f32.mrb[0].mxu0
      %v1504 = vadd.f32 0.0, %v1503
      %v1505 = vpop.f32.mrb[0].mxu0
      %v1506 = vpop.f32.mrb[0].mxu0
      %v1507 = vadd.f32 0.0, %v1506
      %v1508 = vpop.f32.mrb[0].mxu0
      %1509 = vmatprep.mubr.bf16.mxu0 0
      %1510 = vmatmul.mubr.bf16.gmra.mrb[0].mxu0 %v1387
      %v1511 = vpop.f32.mrb[0].mxu0
      %v1512 = vadd.f32 0.0, %v1511
      %v1513 = vpop.f32.mrb[0].mxu0
      %v1514 = vpop.f32.mrb[0].mxu0
      %v1515 = vadd.f32 0.0, %v1514
      %v1516 = vpop.f32.mrb[0].mxu0
      %1517 = vmatprep.mubr.bf16.mxu0 0
      %1518 = vmatmul.mubr.bf16.gmra.mrb[0].mxu0 %v1390
      %v1519 = vpop.f32.mrb[0].mxu0
      %v1520 = vadd.f32 0.0, %v1519
      %v1521 = vpop.f32.mrb[0].mxu0
      %v1522 = vpop.f32.mrb[0].mxu0
      %v1523 = vadd.f32 0.0, %v1522
      %v1524 = vpop.f32.mrb[0].mxu0
      %1525 = vmatprep.mubr.bf16.mxu0 0
      %1526 = vmatmul.mubr.bf16.gmra.mrb[0].mxu0 %v1393
      %v1527 = vpop.f32.mrb[0].mxu0
      %v1528 = vadd.f32 0.0, %v1527
      %v1529 = vpop.f32.mrb[0].mxu0
      %v1530 = vpop.f32.mrb[0].mxu0
      %v1531 = vadd.f32 0.0, %v1530
      %v1532 = vpop.f32.mrb[0].mxu0
      %1533 = vmatprep.mubr.bf16.mxu0 0
      %1534 = vmatmul.mubr.bf16.gmra.mrb[0].mxu0 %v1396
      %v1535 = vpop.f32.mrb[0].mxu0
      %v1536 = vadd.f32 0.0, %v1535
      %v1537 = vpop.f32.mrb[0].mxu0
      %v1538 = vpop.f32.mrb[0].mxu0
      %v1539 = vadd.f32 0.0, %v1538
      %v1540 = vpop.f32.mrb[0].mxu0
      %1541 = vmatprep.mubr.bf16.mxu0 0
      %1542 = vmatmul.mubr.bf16.gmra.mrb[0].mxu0 %v1399
      %v1543 = vpop.f32.mrb[0].mxu0
      %v1544 = vadd.f32 0.0, %v1543
      %v1545 = vpop.f32.mrb[0].mxu0
      %v1546 = vpop.f32.mrb[0].mxu0
      %v1547 = vadd.f32 0.0, %v1546
      %v1548 = vpop.f32.mrb[0].mxu0
      %1549 = vmatprep.mubr.bf16.mxu0 0
      %1550 = vmatmul.mubr.bf16.gmra.mrb[0].mxu0 %v1402
      %v1551 = vpop.f32.mrb[0].mxu0
      %v1552 = vadd.f32 0.0, %v1551
      %v1553 = vpop.f32.mrb[0].mxu0
      %v1554 = vpop.f32.mrb[0].mxu0
      %v1555 = vadd.f32 0.0, %v1554
      %v1556 = vpop.f32.mrb[0].mxu0
      %1557 = vmatprep.mubr.bf16.mxu0 0
      %1558 = vmatmul.mubr.bf16.gmra.mrb[0].mxu0 %v1405
      %v1559 = vpop.f32.mrb[0].mxu0
      %v1560 = vadd.f32 0.0, %v1559
      %v1561 = vpop.f32.mrb[0].mxu0
      %v1562 = vpop.f32.mrb[0].mxu0
      %v1563 = vadd.f32 0.0, %v1562
      %v1564 = vpop.f32.mrb[0].mxu0
      %1565 = vmatprep.mubr.bf16.mxu0 0
      %1566 = vmatmul.mubr.bf16.gmra.mrb[0].mxu0 %v1408
      %v1567 = vpop.f32.mrb[0].mxu0
      %v1568 = vadd.f32 0.0, %v1567
      %v1569 = vpop.f32.mrb[0].mxu0
      %v1570 = vpop.f32.mrb[0].mxu0
      %v1571 = vadd.f32 0.0, %v1570
      %v1572 = vpop.f32.mrb[0].mxu0
      %1573 = vdwg.mxu0
      %v1574 = vadd.f32 %v751, %v1448
      %v1575 = vadd.f32 %v754, %v1451
      %v1576 = vadd.f32 %v759, %v1456
      %v1577 = vadd.f32 %v762, %v1459
      %v1578 = vadd.f32 %v767, %v1464
      %v1579 = vadd.f32 %v770, %v1467
      %v1580 = vadd.f32 %v775, %v1472
      %v1581 = vadd.f32 %v778, %v1475
      %v1582 = vadd.f32 %v783, %v1480
      %v1583 = vadd.f32 %v786, %v1483
      %v1584 = vadd.f32 %v791, %v1488
      %v1585 = vadd.f32 %v794, %v1491
      %v1586 = vadd.f32 %v799, %v1496
      %v1587 = vadd.f32 %v802, %v1499
      %v1588 = vadd.f32 %v807, %v1504
      %v1589 = vadd.f32 %v810, %v1507
      %v1590 = vadd.f32 %v815, %v1512
      %v1591 = vadd.f32 %v818, %v1515
      %v1592 = vadd.f32 %v823, %v1520
      %v1593 = vadd.f32 %v826, %v1523
      %v1594 = vadd.f32 %v831, %v1528
      %v1595 = vadd.f32 %v834, %v1531
      %v1596 = vadd.f32 %v839, %v1536
      %v1597 = vadd.f32 %v842, %v1539
      %v1598 = vadd.f32 %v847, %v1544
      %v1599 = vadd.f32 %v850, %v1547
      %v1600 = vadd.f32 %v855, %v1552
      %v1601 = vadd.f32 %v858, %v1555
      %v1602 = vadd.f32 %v863, %v1560
      %v1603 = vadd.f32 %v866, %v1563
      %v1604 = vadd.f32 %v871, %v1568
      %v1605 = vadd.f32 %v874, %v1571
      %s1606 = scalar_lea.vmem %s206, 408
      %v1607 = vld [vmem:[%s1606] sm:$0xf]
      %v1608 = vld [vmem:[%s1606 + $0x4] sm:$0xf]
      %v1609 = vld [vmem:[%s1606 + $0xc] sm:$0xf]
      %v1610 = vld [vmem:[%s1606 + $0x10] sm:$0xf]
      %v1611 = vld [vmem:[%s1606 + $0x18] sm:$0xf]
      %v1612 = vld [vmem:[%s1606 + $0x1c] sm:$0xf]
      %v1613 = vld [vmem:[%s1606 + $0x24] sm:$0xf]
      %v1614 = vld [vmem:[%s1606 + $0x28] sm:$0xf]
      %v1615 = vld [vmem:[%s1606 + $0x30] sm:$0xf]
      %v1616 = vld [vmem:[%s1606 + $0x34] sm:$0xf]
      %v1617 = vld [vmem:[%s1606 + $0x3c] sm:$0xf]
      %v1618 = vld [vmem:[%s1606 + $0x40] sm:$0xf]
      %v1619 = vld [vmem:[%s1606 + $0x48] sm:$0xf]
      %v1620 = vld [vmem:[%s1606 + $0x4c] sm:$0xf]
      %v1621 = vld [vmem:[%s1606 + $0x54] sm:$0xf]
      %v1622 = vld [vmem:[%s1606 + $0x58] sm:$0xf]
      %v1623 = vld [vmem:[%s1606 + $0x60] sm:$0xf]
      %v1624 = vld [vmem:[%s1606 + $0x64] sm:$0xf]
      %v1625 = vld [vmem:[%s1606 + $0x6c] sm:$0xf]
      %v1626 = vld [vmem:[%s1606 + $0x70] sm:$0xf]
      %v1627 = vld [vmem:[%s1606 + $0x78] sm:$0xf]
      %v1628 = vld [vmem:[%s1606 + $0x7c] sm:$0xf]
      %v1629 = vld [vmem:[%s1606 + $0x84] sm:$0xf]
      %v1630 = vld [vmem:[%s1606 + $0x88] sm:$0xf]
      %v1631 = vld [vmem:[%s1606 + $0x90] sm:$0xf]
      %v1632 = vld [vmem:[%s1606 + $0x94] sm:$0xf]
      %v1633 = vld [vmem:[%s1606 + $0x9c] sm:$0xf]
      %v1634 = vld [vmem:[%s1606 + $0xa0] sm:$0xf]
      %v1635 = vld [vmem:[%s1606 + $0xa8] sm:$0xf]
      %v1636 = vld [vmem:[%s1606 + $0xac] sm:$0xf]
      %v1637 = vld [vmem:[%s1606 + $0xb4] sm:$0xf]
      %v1638 = vld [vmem:[%s1606 + $0xb8] sm:$0xf]
      %s1639 = scalar_lea.vmem %s210, 12
      %v1640 = vld [vmem:[%s1639] sm:$0xf]
      %v1673 = vunpack.c.l.b16 %v1607
      %v1674 = vunpack.c.l.b16 %v1608
      %v1675 = vunpack.c.l.b16 %v1609
      %v1676 = vunpack.c.l.b16 %v1610
      %v1677 = vunpack.c.l.b16 %v1611
      %v1678 = vunpack.c.l.b16 %v1612
      %v1679 = vunpack.c.l.b16 %v1613
      %v1680 = vunpack.c.l.b16 %v1614
      %v1681 = vunpack.c.l.b16 %v1615
      %v1682 = vunpack.c.l.b16 %v1616
      %v1683 = vunpack.c.l.b16 %v1617
      %v1684 = vunpack.c.l.b16 %v1618
      %v1685 = vunpack.c.l.b16 %v1619
      %v1686 = vunpack.c.l.b16 %v1620
      %v1687 = vunpack.c.l.b16 %v1621
      %v1688 = vunpack.c.l.b16 %v1622
      %v1689 = vunpack.c.l.b16 %v1623
      %v1690 = vunpack.c.l.b16 %v1624
      %v1691 = vunpack.c.l.b16 %v1625
      %v1692 = vunpack.c.l.b16 %v1626
      %v1693 = vunpack.c.l.b16 %v1627
      %v1694 = vunpack.c.l.b16 %v1628
      %v1695 = vunpack.c.l.b16 %v1629
      %v1696 = vunpack.c.l.b16 %v1630
      %v1697 = vunpack.c.l.b16 %v1631
      %v1698 = vunpack.c.l.b16 %v1632
      %v1699 = vunpack.c.l.b16 %v1633
      %v1700 = vunpack.c.l.b16 %v1634
      %v1701 = vunpack.c.l.b16 %v1635
      %v1702 = vunpack.c.l.b16 %v1636
      %v1703 = vunpack.c.l.b16 %v1637
      %v1704 = vunpack.c.l.b16 %v1638
      %v1705 = vpack.c.b16 %v1674, %v1673
      %v1706 = vpack.c.b16 %v1676, %v1675
      %v1707 = vpack.c.b16 %v1678, %v1677
      %v1708 = vpack.c.b16 %v1680, %v1679
      %v1709 = vpack.c.b16 %v1682, %v1681
      %v1710 = vpack.c.b16 %v1684, %v1683
      %v1711 = vpack.c.b16 %v1686, %v1685
      %v1712 = vpack.c.b16 %v1688, %v1687
      %v1713 = vpack.c.b16 %v1690, %v1689
      %v1714 = vpack.c.b16 %v1692, %v1691
      %v1715 = vpack.c.b16 %v1694, %v1693
      %v1716 = vpack.c.b16 %v1696, %v1695
      %v1717 = vpack.c.b16 %v1698, %v1697
      %v1718 = vpack.c.b16 %v1700, %v1699
      %v1719 = vpack.c.b16 %v1702, %v1701
      %v1720 = vpack.c.b16 %v1704, %v1703
      %v1722 = vsel %vm371, %v1705, 0
      %v1725 = vsel %vm371, %v1706, 0
      %v1728 = vsel %vm371, %v1707, 0
      %v1731 = vsel %vm371, %v1708, 0
      %v1734 = vsel %vm371, %v1709, 0
      %v1737 = vsel %vm371, %v1710, 0
      %v1740 = vsel %vm371, %v1711, 0
      %v1743 = vsel %vm371, %v1712, 0
      %v1746 = vsel %vm371, %v1713, 0
      %v1749 = vsel %vm371, %v1714, 0
      %v1752 = vsel %vm371, %v1715, 0
      %v1755 = vsel %vm371, %v1716, 0
      %v1758 = vsel %vm371, %v1717, 0
      %v1761 = vsel %vm371, %v1718, 0
      %v1764 = vsel %vm371, %v1719, 0
      %v1767 = vsel %vm371, %v1720, 0
      %v1770 = vsel %vm420, %v1640, 0
      %1772 = vmatprep.subr.bf16.mxu0 0
      %1773 = vmatpush1.bf16.msra.mxu0 %v1770
      %1774 = vmatprep.subr.bf16.mxu0 0
      %1775 = vmatpush1.bf16.msra.mxu0 0
      %1776 = vmatprep.subr.bf16.mxu0 0
      %1777 = vmatpush1.bf16.msra.mxu0 0
      %1778 = vmatprep.subr.bf16.mxu0 0
      %1779 = vmatpush1.bf16.msra.mxu0 0
      %1780 = vmatprep.subr.bf16.mxu0 0
      %1781 = vmatpush1.bf16.msra.mxu0 0
      %1782 = vmatprep.subr.bf16.mxu0 0
      %1783 = vmatpush1.bf16.msra.mxu0 0
      %1784 = vmatprep.subr.bf16.mxu0 0
      %1785 = vmatpush1.bf16.msra.mxu0 0
      %1786 = vmatprep.subr.bf16.mxu0 0
      %1787 = vmatpush1.bf16.msra.mxu0 0
      %1788 = vmatprep.subr.bf16.mxu0 0
      %1789 = vmatpush1.bf16.msra.mxu0 0
      %1790 = vmatprep.subr.bf16.mxu0 0
      %1791 = vmatpush1.bf16.msra.mxu0 0
      %1792 = vmatprep.subr.bf16.mxu0 0
      %1793 = vmatpush1.bf16.msra.mxu0 0
      %1794 = vmatprep.subr.bf16.mxu0 0
      %1795 = vmatpush1.bf16.msra.mxu0 0
      %1796 = vmatprep.subr.bf16.mxu0 0
      %1797 = vmatpush1.bf16.msra.mxu0 0
      %1798 = vmatprep.subr.bf16.mxu0 0
      %1799 = vmatpush1.bf16.msra.mxu0 0
      %1800 = vmatprep.subr.bf16.mxu0 0
      %1801 = vmatpush1.bf16.msra.mxu0 0
      %1802 = vmatprep.subr.bf16.mxu0 0
      %1803 = vmatpush1.bf16.msra.mxu0 0
      %1804 = vmatprep.mubr.bf16.mxu0 0
      %1805 = vmatmul.mubr.bf16.gmra.mrb[0].mxu0 %v1722
      %v1806 = vpop.f32.mrb[0].mxu0
      %v1807 = vadd.f32 0.0, %v1806
      %v1808 = vpop.f32.mrb[0].mxu0
      %v1809 = vpop.f32.mrb[0].mxu0
      %v1810 = vadd.f32 0.0, %v1809
      %v1811 = vpop.f32.mrb[0].mxu0
      %1812 = vmatprep.mubr.bf16.mxu0 0
      %1813 = vmatmul.mubr.bf16.gmra.mrb[0].mxu0 %v1725
      %v1814 = vpop.f32.mrb[0].mxu0
      %v1815 = vadd.f32 0.0, %v1814
      %v1816 = vpop.f32.mrb[0].mxu0
      %v1817 = vpop.f32.mrb[0].mxu0
      %v1818 = vadd.f32 0.0, %v1817
      %v1819 = vpop.f32.mrb[0].mxu0
      %1820 = vmatprep.mubr.bf16.mxu0 0
      %1821 = vmatmul.mubr.bf16.gmra.mrb[0].mxu0 %v1728
      %v1822 = vpop.f32.mrb[0].mxu0
      %v1823 = vadd.f32 0.0, %v1822
      %v1824 = vpop.f32.mrb[0].mxu0
      %v1825 = vpop.f32.mrb[0].mxu0
      %v1826 = vadd.f32 0.0, %v1825
      %v1827 = vpop.f32.mrb[0].mxu0
      %1828 = vmatprep.mubr.bf16.mxu0 0
      %1829 = vmatmul.mubr.bf16.gmra.mrb[0].mxu0 %v1731
      %v1830 = vpop.f32.mrb[0].mxu0
      %v1831 = vadd.f32 0.0, %v1830
      %v1832 = vpop.f32.mrb[0].mxu0
      %v1833 = vpop.f32.mrb[0].mxu0
      %v1834 = vadd.f32 0.0, %v1833
      %v1835 = vpop.f32.mrb[0].mxu0
      %1836 = vmatprep.mubr.bf16.mxu0 0
      %1837 = vmatmul.mubr.bf16.gmra.mrb[0].mxu0 %v1734
      %v1838 = vpop.f32.mrb[0].mxu0
      %v1839 = vadd.f32 0.0, %v1838
      %v1840 = vpop.f32.mrb[0].mxu0
      %v1841 = vpop.f32.mrb[0].mxu0
      %v1842 = vadd.f32 0.0, %v1841
      %v1843 = vpop.f32.mrb[0].mxu0
      %1844 = vmatprep.mubr.bf16.mxu0 0
      %1845 = vmatmul.mubr.bf16.gmra.mrb[0].mxu0 %v1737
      %v1846 = vpop.f32.mrb[0].mxu0
      %v1847 = vadd.f32 0.0, %v1846
      %v1848 = vpop.f32.mrb[0].mxu0
      %v1849 = vpop.f32.mrb[0].mxu0
      %v1850 = vadd.f32 0.0, %v1849
      %v1851 = vpop.f32.mrb[0].mxu0
      %1852 = vmatprep.mubr.bf16.mxu0 0
      %1853 = vmatmul.mubr.bf16.gmra.mrb[0].mxu0 %v1740
      %v1854 = vpop.f32.mrb[0].mxu0
      %v1855 = vadd.f32 0.0, %v1854
      %v1856 = vpop.f32.mrb[0].mxu0
      %v1857 = vpop.f32.mrb[0].mxu0
      %v1858 = vadd.f32 0.0, %v1857
      %v1859 = vpop.f32.mrb[0].mxu0
      %1860 = vmatprep.mubr.bf16.mxu0 0
      %1861 = vmatmul.mubr.bf16.gmra.mrb[0].mxu0 %v1743
      %v1862 = vpop.f32.mrb[0].mxu0
      %v1863 = vadd.f32 0.0, %v1862
      %v1864 = vpop.f32.mrb[0].mxu0
      %v1865 = vpop.f32.mrb[0].mxu0
      %v1866 = vadd.f32 0.0, %v1865
      %v1867 = vpop.f32.mrb[0].mxu0
      %1868 = vmatprep.mubr.bf16.mxu0 0
      %1869 = vmatmul.mubr.bf16.gmra.mrb[0].mxu0 %v1746
      %v1870 = vpop.f32.mrb[0].mxu0
      %v1871 = vadd.f32 0.0, %v1870
      %v1872 = vpop.f32.mrb[0].mxu0
      %v1873 = vpop.f32.mrb[0].mxu0
      %v1874 = vadd.f32 0.0, %v1873
      %v1875 = vpop.f32.mrb[0].mxu0
      %1876 = vmatprep.mubr.bf16.mxu0 0
      %1877 = vmatmul.mubr.bf16.gmra.mrb[0].mxu0 %v1749
      %v1878 = vpop.f32.mrb[0].mxu0
      %v1879 = vadd.f32 0.0, %v1878
      %v1880 = vpop.f32.mrb[0].mxu0
      %v1881 = vpop.f32.mrb[0].mxu0
      %v1882 = vadd.f32 0.0, %v1881
      %v1883 = vpop.f32.mrb[0].mxu0
      %1884 = vmatprep.mubr.bf16.mxu0 0
      %1885 = vmatmul.mubr.bf16.gmra.mrb[0].mxu0 %v1752
      %v1886 = vpop.f32.mrb[0].mxu0
      %v1887 = vadd.f32 0.0, %v1886
      %v1888 = vpop.f32.mrb[0].mxu0
      %v1889 = vpop.f32.mrb[0].mxu0
      %v1890 = vadd.f32 0.0, %v1889
      %v1891 = vpop.f32.mrb[0].mxu0
      %1892 = vmatprep.mubr.bf16.mxu0 0
      %1893 = vmatmul.mubr.bf16.gmra.mrb[0].mxu0 %v1755
      %v1894 = vpop.f32.mrb[0].mxu0
      %v1895 = vadd.f32 0.0, %v1894
      %v1896 = vpop.f32.mrb[0].mxu0
      %v1897 = vpop.f32.mrb[0].mxu0
      %v1898 = vadd.f32 0.0, %v1897
      %v1899 = vpop.f32.mrb[0].mxu0
      %1900 = vmatprep.mubr.bf16.mxu0 0
      %1901 = vmatmul.mubr.bf16.gmra.mrb[0].mxu0 %v1758
      %v1902 = vpop.f32.mrb[0].mxu0
      %v1903 = vadd.f32 0.0, %v1902
      %v1904 = vpop.f32.mrb[0].mxu0
      %v1905 = vpop.f32.mrb[0].mxu0
      %v1906 = vadd.f32 0.0, %v1905
      %v1907 = vpop.f32.mrb[0].mxu0
      %1908 = vmatprep.mubr.bf16.mxu0 0
      %1909 = vmatmul.mubr.bf16.gmra.mrb[0].mxu0 %v1761
      %v1910 = vpop.f32.mrb[0].mxu0
      %v1911 = vadd.f32 0.0, %v1910
      %v1912 = vpop.f32.mrb[0].mxu0
      %v1913 = vpop.f32.mrb[0].mxu0
      %v1914 = vadd.f32 0.0, %v1913
      %v1915 = vpop.f32.mrb[0].mxu0
      %1916 = vmatprep.mubr.bf16.mxu0 0
      %1917 = vmatmul.mubr.bf16.gmra.mrb[0].mxu0 %v1764
      %v1918 = vpop.f32.mrb[0].mxu0
      %v1919 = vadd.f32 0.0, %v1918
      %v1920 = vpop.f32.mrb[0].mxu0
      %v1921 = vpop.f32.mrb[0].mxu0
      %v1922 = vadd.f32 0.0, %v1921
      %v1923 = vpop.f32.mrb[0].mxu0
      %1924 = vmatprep.mubr.bf16.mxu0 0
      %1925 = vmatmul.mubr.bf16.gmra.mrb[0].mxu0 %v1767
      %v1926 = vpop.f32.mrb[0].mxu0
      %v1927 = vadd.f32 0.0, %v1926
      %v1928 = vpop.f32.mrb[0].mxu0
      %v1929 = vpop.f32.mrb[0].mxu0
      %v1930 = vadd.f32 0.0, %v1929
      %v1931 = vpop.f32.mrb[0].mxu0
      %1932 = vdwg.mxu0
      %v1933 = vadd.f32 %v1574, %v1807
      %v1934 = vadd.f32 %v1575, %v1810
      %v1935 = vadd.f32 %v1576, %v1815
      %v1936 = vadd.f32 %v1577, %v1818
      %v1937 = vadd.f32 %v1578, %v1823
      %v1938 = vadd.f32 %v1579, %v1826
      %v1939 = vadd.f32 %v1580, %v1831
      %v1940 = vadd.f32 %v1581, %v1834
      %v1941 = vadd.f32 %v1582, %v1839
      %v1942 = vadd.f32 %v1583, %v1842
      %v1943 = vadd.f32 %v1584, %v1847
      %v1944 = vadd.f32 %v1585, %v1850
      %v1945 = vadd.f32 %v1586, %v1855
      %v1946 = vadd.f32 %v1587, %v1858
      %v1947 = vadd.f32 %v1588, %v1863
      %v1948 = vadd.f32 %v1589, %v1866
      %v1949 = vadd.f32 %v1590, %v1871
      %v1950 = vadd.f32 %v1591, %v1874
      %v1951 = vadd.f32 %v1592, %v1879
      %v1952 = vadd.f32 %v1593, %v1882
      %v1953 = vadd.f32 %v1594, %v1887
      %v1954 = vadd.f32 %v1595, %v1890
      %v1955 = vadd.f32 %v1596, %v1895
      %v1956 = vadd.f32 %v1597, %v1898
      %v1957 = vadd.f32 %v1598, %v1903
      %v1958 = vadd.f32 %v1599, %v1906
      %v1959 = vadd.f32 %v1600, %v1911
      %v1960 = vadd.f32 %v1601, %v1914
      %v1961 = vadd.f32 %v1602, %v1919
      %v1962 = vadd.f32 %v1603, %v1922
      %v1963 = vadd.f32 %v1604, %v1927
      %v1964 = vadd.f32 %v1605, %v1930
      %s1965 = scalar_lea.vmem %s206, 612
      %v1966 = vld [vmem:[%s1965] sm:$0xf]
      %v1967 = vld [vmem:[%s1965 + $0x4] sm:$0xf]
      %v1968 = vld [vmem:[%s1965 + $0xc] sm:$0xf]
      %v1969 = vld [vmem:[%s1965 + $0x10] sm:$0xf]
      %v1970 = vld [vmem:[%s1965 + $0x18] sm:$0xf]
      %v1971 = vld [vmem:[%s1965 + $0x1c] sm:$0xf]
      %v1972 = vld [vmem:[%s1965 + $0x24] sm:$0xf]
      %v1973 = vld [vmem:[%s1965 + $0x28] sm:$0xf]
      %v1974 = vld [vmem:[%s1965 + $0x30] sm:$0xf]
      %v1975 = vld [vmem:[%s1965 + $0x34] sm:$0xf]
      %v1976 = vld [vmem:[%s1965 + $0x3c] sm:$0xf]
      %v1977 = vld [vmem:[%s1965 + $0x40] sm:$0xf]
      %v1978 = vld [vmem:[%s1965 + $0x48] sm:$0xf]
      %v1979 = vld [vmem:[%s1965 + $0x4c] sm:$0xf]
      %v1980 = vld [vmem:[%s1965 + $0x54] sm:$0xf]
      %v1981 = vld [vmem:[%s1965 + $0x58] sm:$0xf]
      %v1982 = vld [vmem:[%s1965 + $0x60] sm:$0xf]
      %v1983 = vld [vmem:[%s1965 + $0x64] sm:$0xf]
      %v1984 = vld [vmem:[%s1965 + $0x6c] sm:$0xf]
      %v1985 = vld [vmem:[%s1965 + $0x70] sm:$0xf]
      %v1986 = vld [vmem:[%s1965 + $0x78] sm:$0xf]
      %v1987 = vld [vmem:[%s1965 + $0x7c] sm:$0xf]
      %v1988 = vld [vmem:[%s1965 + $0x84] sm:$0xf]
      %v1989 = vld [vmem:[%s1965 + $0x88] sm:$0xf]
      %v1990 = vld [vmem:[%s1965 + $0x90] sm:$0xf]
      %v1991 = vld [vmem:[%s1965 + $0x94] sm:$0xf]
      %v1992 = vld [vmem:[%s1965 + $0x9c] sm:$0xf]
      %v1993 = vld [vmem:[%s1965 + $0xa0] sm:$0xf]
      %v1994 = vld [vmem:[%s1965 + $0xa8] sm:$0xf]
      %v1995 = vld [vmem:[%s1965 + $0xac] sm:$0xf]
      %v1996 = vld [vmem:[%s1965 + $0xb4] sm:$0xf]
      %v1997 = vld [vmem:[%s1965 + $0xb8] sm:$0xf]
      %s1998 = scalar_lea.vmem %s210, 16
      %v1999 = vld [vmem:[%s1998] sm:$0xf]
      %v2032 = vunpack.c.l.b16 %v1966
      %v2033 = vunpack.c.l.b16 %v1967
      %v2034 = vunpack.c.l.b16 %v1968
      %v2035 = vunpack.c.l.b16 %v1969
      %v2036 = vunpack.c.l.b16 %v1970
      %v2037 = vunpack.c.l.b16 %v1971
      %v2038 = vunpack.c.l.b16 %v1972
      %v2039 = vunpack.c.l.b16 %v1973
      %v2040 = vunpack.c.l.b16 %v1974
      %v2041 = vunpack.c.l.b16 %v1975
      %v2042 = vunpack.c.l.b16 %v1976
      %v2043 = vunpack.c.l.b16 %v1977
      %v2044 = vunpack.c.l.b16 %v1978
      %v2045 = vunpack.c.l.b16 %v1979
      %v2046 = vunpack.c.l.b16 %v1980
      %v2047 = vunpack.c.l.b16 %v1981
      %v2048 = vunpack.c.l.b16 %v1982
      %v2049 = vunpack.c.l.b16 %v1983
      %v2050 = vunpack.c.l.b16 %v1984
      %v2051 = vunpack.c.l.b16 %v1985
      %v2052 = vunpack.c.l.b16 %v1986
      %v2053 = vunpack.c.l.b16 %v1987
      %v2054 = vunpack.c.l.b16 %v1988
      %v2055 = vunpack.c.l.b16 %v1989
      %v2056 = vunpack.c.l.b16 %v1990
      %v2057 = vunpack.c.l.b16 %v1991
      %v2058 = vunpack.c.l.b16 %v1992
      %v2059 = vunpack.c.l.b16 %v1993
      %v2060 = vunpack.c.l.b16 %v1994
      %v2061 = vunpack.c.l.b16 %v1995
      %v2062 = vunpack.c.l.b16 %v1996
      %v2063 = vunpack.c.l.b16 %v1997
      %v2064 = vpack.c.b16 %v2033, %v2032
      %v2065 = vpack.c.b16 %v2035, %v2034
      %v2066 = vpack.c.b16 %v2037, %v2036
      %v2067 = vpack.c.b16 %v2039, %v2038
      %v2068 = vpack.c.b16 %v2041, %v2040
      %v2069 = vpack.c.b16 %v2043, %v2042
      %v2070 = vpack.c.b16 %v2045, %v2044
      %v2071 = vpack.c.b16 %v2047, %v2046
      %v2072 = vpack.c.b16 %v2049, %v2048
      %v2073 = vpack.c.b16 %v2051, %v2050
      %v2074 = vpack.c.b16 %v2053, %v2052
      %v2075 = vpack.c.b16 %v2055, %v2054
      %v2076 = vpack.c.b16 %v2057, %v2056
      %v2077 = vpack.c.b16 %v2059, %v2058
      %v2078 = vpack.c.b16 %v2061, %v2060
      %v2079 = vpack.c.b16 %v2063, %v2062
      %v2081 = vsel %vm371, %v2064, 0
      %v2084 = vsel %vm371, %v2065, 0
      %v2087 = vsel %vm371, %v2066, 0
      %v2090 = vsel %vm371, %v2067, 0
      %v2093 = vsel %vm371, %v2068, 0
      %v2096 = vsel %vm371, %v2069, 0
      %v2099 = vsel %vm371, %v2070, 0
      %v2102 = vsel %vm371, %v2071, 0
      %v2105 = vsel %vm371, %v2072, 0
      %v2108 = vsel %vm371, %v2073, 0
      %v2111 = vsel %vm371, %v2074, 0
      %v2114 = vsel %vm371, %v2075, 0
      %v2117 = vsel %vm371, %v2076, 0
      %v2120 = vsel %vm371, %v2077, 0
      %v2123 = vsel %vm371, %v2078, 0
      %v2126 = vsel %vm371, %v2079, 0
      %v2129 = vsel %vm420, %v1999, 0
      %2131 = vmatprep.subr.bf16.mxu0 0
      %2132 = vmatpush1.bf16.msra.mxu0 %v2129
      %2133 = vmatprep.subr.bf16.mxu0 0
      %2134 = vmatpush1.bf16.msra.mxu0 0
      %2135 = vmatprep.subr.bf16.mxu0 0
      %2136 = vmatpush1.bf16.msra.mxu0 0
      %2137 = vmatprep.subr.bf16.mxu0 0
      %2138 = vmatpush1.bf16.msra.mxu0 0
      %2139 = vmatprep.subr.bf16.mxu0 0
      %2140 = vmatpush1.bf16.msra.mxu0 0
      %2141 = vmatprep.subr.bf16.mxu0 0
      %2142 = vmatpush1.bf16.msra.mxu0 0
      %2143 = vmatprep.subr.bf16.mxu0 0
      %2144 = vmatpush1.bf16.msra.mxu0 0
      %2145 = vmatprep.subr.bf16.mxu0 0
      %2146 = vmatpush1.bf16.msra.mxu0 0
      %2147 = vmatprep.subr.bf16.mxu0 0
      %2148 = vmatpush1.bf16.msra.mxu0 0
      %2149 = vmatprep.subr.bf16.mxu0 0
      %2150 = vmatpush1.bf16.msra.mxu0 0
      %2151 = vmatprep.subr.bf16.mxu0 0
      %2152 = vmatpush1.bf16.msra.mxu0 0
      %2153 = vmatprep.subr.bf16.mxu0 0
      %2154 = vmatpush1.bf16.msra.mxu0 0
      %2155 = vmatprep.subr.bf16.mxu0 0
      %2156 = vmatpush1.bf16.msra.mxu0 0
      %2157 = vmatprep.subr.bf16.mxu0 0
      %2158 = vmatpush1.bf16.msra.mxu0 0
      %2159 = vmatprep.subr.bf16.mxu0 0
      %2160 = vmatpush1.bf16.msra.mxu0 0
      %2161 = vmatprep.subr.bf16.mxu0 0
      %2162 = vmatpush1.bf16.msra.mxu0 0
      %2163 = vmatprep.mubr.bf16.mxu0 0
      %2164 = vmatmul.mubr.bf16.gmra.mrb[0].mxu0 %v2081
      %v2165 = vpop.f32.mrb[0].mxu0
      %v2166 = vadd.f32 0.0, %v2165
      %v2167 = vpop.f32.mrb[0].mxu0
      %v2168 = vpop.f32.mrb[0].mxu0
      %v2169 = vadd.f32 0.0, %v2168
      %v2170 = vpop.f32.mrb[0].mxu0
      %2171 = vmatprep.mubr.bf16.mxu0 0
      %2172 = vmatmul.mubr.bf16.gmra.mrb[0].mxu0 %v2084
      %v2173 = vpop.f32.mrb[0].mxu0
      %v2174 = vadd.f32 0.0, %v2173
      %v2175 = vpop.f32.mrb[0].mxu0
      %v2176 = vpop.f32.mrb[0].mxu0
      %v2177 = vadd.f32 0.0, %v2176
      %v2178 = vpop.f32.mrb[0].mxu0
      %2179 = vmatprep.mubr.bf16.mxu0 0
      %2180 = vmatmul.mubr.bf16.gmra.mrb[0].mxu0 %v2087
      %v2181 = vpop.f32.mrb[0].mxu0
      %v2182 = vadd.f32 0.0, %v2181
      %v2183 = vpop.f32.mrb[0].mxu0
      %v2184 = vpop.f32.mrb[0].mxu0
      %v2185 = vadd.f32 0.0, %v2184
      %v2186 = vpop.f32.mrb[0].mxu0
      %2187 = vmatprep.mubr.bf16.mxu0 0
      %2188 = vmatmul.mubr.bf16.gmra.mrb[0].mxu0 %v2090
      %v2189 = vpop.f32.mrb[0].mxu0
      %v2190 = vadd.f32 0.0, %v2189
      %v2191 = vpop.f32.mrb[0].mxu0
      %v2192 = vpop.f32.mrb[0].mxu0
      %v2193 = vadd.f32 0.0, %v2192
      %v2194 = vpop.f32.mrb[0].mxu0
      %2195 = vmatprep.mubr.bf16.mxu0 0
      %2196 = vmatmul.mubr.bf16.gmra.mrb[0].mxu0 %v2093
      %v2197 = vpop.f32.mrb[0].mxu0
      %v2198 = vadd.f32 0.0, %v2197
      %v2199 = vpop.f32.mrb[0].mxu0
      %v2200 = vpop.f32.mrb[0].mxu0
      %v2201 = vadd.f32 0.0, %v2200
      %v2202 = vpop.f32.mrb[0].mxu0
      %2203 = vmatprep.mubr.bf16.mxu0 0
      %2204 = vmatmul.mubr.bf16.gmra.mrb[0].mxu0 %v2096
      %v2205 = vpop.f32.mrb[0].mxu0
      %v2206 = vadd.f32 0.0, %v2205
      %v2207 = vpop.f32.mrb[0].mxu0
      %v2208 = vpop.f32.mrb[0].mxu0
      %v2209 = vadd.f32 0.0, %v2208
      %v2210 = vpop.f32.mrb[0].mxu0
      %2211 = vmatprep.mubr.bf16.mxu0 0
      %2212 = vmatmul.mubr.bf16.gmra.mrb[0].mxu0 %v2099
      %v2213 = vpop.f32.mrb[0].mxu0
      %v2214 = vadd.f32 0.0, %v2213
      %v2215 = vpop.f32.mrb[0].mxu0
      %v2216 = vpop.f32.mrb[0].mxu0
      %v2217 = vadd.f32 0.0, %v2216
      %v2218 = vpop.f32.mrb[0].mxu0
      %2219 = vmatprep.mubr.bf16.mxu0 0
      %2220 = vmatmul.mubr.bf16.gmra.mrb[0].mxu0 %v2102
      %v2221 = vpop.f32.mrb[0].mxu0
      %v2222 = vadd.f32 0.0, %v2221
      %v2223 = vpop.f32.mrb[0].mxu0
      %v2224 = vpop.f32.mrb[0].mxu0
      %v2225 = vadd.f32 0.0, %v2224
      %v2226 = vpop.f32.mrb[0].mxu0
      %2227 = vmatprep.mubr.bf16.mxu0 0
      %2228 = vmatmul.mubr.bf16.gmra.mrb[0].mxu0 %v2105
      %v2229 = vpop.f32.mrb[0].mxu0
      %v2230 = vadd.f32 0.0, %v2229
      %v2231 = vpop.f32.mrb[0].mxu0
      %v2232 = vpop.f32.mrb[0].mxu0
      %v2233 = vadd.f32 0.0, %v2232
      %v2234 = vpop.f32.mrb[0].mxu0
      %2235 = vmatprep.mubr.bf16.mxu0 0
      %2236 = vmatmul.mubr.bf16.gmra.mrb[0].mxu0 %v2108
      %v2237 = vpop.f32.mrb[0].mxu0
      %v2238 = vadd.f32 0.0, %v2237
      %v2239 = vpop.f32.mrb[0].mxu0
      %v2240 = vpop.f32.mrb[0].mxu0
      %v2241 = vadd.f32 0.0, %v2240
      %v2242 = vpop.f32.mrb[0].mxu0
      %2243 = vmatprep.mubr.bf16.mxu0 0
      %2244 = vmatmul.mubr.bf16.gmra.mrb[0].mxu0 %v2111
      %v2245 = vpop.f32.mrb[0].mxu0
      %v2246 = vadd.f32 0.0, %v2245
      %v2247 = vpop.f32.mrb[0].mxu0
      %v2248 = vpop.f32.mrb[0].mxu0
      %v2249 = vadd.f32 0.0, %v2248
      %v2250 = vpop.f32.mrb[0].mxu0
      %2251 = vmatprep.mubr.bf16.mxu0 0
      %2252 = vmatmul.mubr.bf16.gmra.mrb[0].mxu0 %v2114
      %v2253 = vpop.f32.mrb[0].mxu0
      %v2254 = vadd.f32 0.0, %v2253
      %v2255 = vpop.f32.mrb[0].mxu0
      %v2256 = vpop.f32.mrb[0].mxu0
      %v2257 = vadd.f32 0.0, %v2256
      %v2258 = vpop.f32.mrb[0].mxu0
      %2259 = vmatprep.mubr.bf16.mxu0 0
      %2260 = vmatmul.mubr.bf16.gmra.mrb[0].mxu0 %v2117
      %v2261 = vpop.f32.mrb[0].mxu0
      %v2262 = vadd.f32 0.0, %v2261
      %v2263 = vpop.f32.mrb[0].mxu0
      %v2264 = vpop.f32.mrb[0].mxu0
      %v2265 = vadd.f32 0.0, %v2264
      %v2266 = vpop.f32.mrb[0].mxu0
      %2267 = vmatprep.mubr.bf16.mxu0 0
      %2268 = vmatmul.mubr.bf16.gmra.mrb[0].mxu0 %v2120
      %v2269 = vpop.f32.mrb[0].mxu0
      %v2270 = vadd.f32 0.0, %v2269
      %v2271 = vpop.f32.mrb[0].mxu0
      %v2272 = vpop.f32.mrb[0].mxu0
      %v2273 = vadd.f32 0.0, %v2272
      %v2274 = vpop.f32.mrb[0].mxu0
      %2275 = vmatprep.mubr.bf16.mxu0 0
      %2276 = vmatmul.mubr.bf16.gmra.mrb[0].mxu0 %v2123
      %v2277 = vpop.f32.mrb[0].mxu0
      %v2278 = vadd.f32 0.0, %v2277
      %v2279 = vpop.f32.mrb[0].mxu0
      %v2280 = vpop.f32.mrb[0].mxu0
      %v2281 = vadd.f32 0.0, %v2280
      %v2282 = vpop.f32.mrb[0].mxu0
      %2283 = vmatprep.mubr.bf16.mxu0 0
      %2284 = vmatmul.mubr.bf16.gmra.mrb[0].mxu0 %v2126
      %v2285 = vpop.f32.mrb[0].mxu0
      %v2286 = vadd.f32 0.0, %v2285
      %v2287 = vpop.f32.mrb[0].mxu0
      %v2288 = vpop.f32.mrb[0].mxu0
      %v2289 = vadd.f32 0.0, %v2288
      %v2290 = vpop.f32.mrb[0].mxu0
      %2291 = vdwg.mxu0
      %v2292 = vadd.f32 %v1933, %v2166
      %v2293 = vadd.f32 %v1934, %v2169
      %v2294 = vadd.f32 %v1935, %v2174
      %v2295 = vadd.f32 %v1936, %v2177
      %v2296 = vadd.f32 %v1937, %v2182
      %v2297 = vadd.f32 %v1938, %v2185
      %v2298 = vadd.f32 %v1939, %v2190
      %v2299 = vadd.f32 %v1940, %v2193
      %v2300 = vadd.f32 %v1941, %v2198
      %v2301 = vadd.f32 %v1942, %v2201
      %v2302 = vadd.f32 %v1943, %v2206
      %v2303 = vadd.f32 %v1944, %v2209
      %v2304 = vadd.f32 %v1945, %v2214
      %v2305 = vadd.f32 %v1946, %v2217
      %v2306 = vadd.f32 %v1947, %v2222
      %v2307 = vadd.f32 %v1948, %v2225
      %v2308 = vadd.f32 %v1949, %v2230
      %v2309 = vadd.f32 %v1950, %v2233
      %v2310 = vadd.f32 %v1951, %v2238
      %v2311 = vadd.f32 %v1952, %v2241
      %v2312 = vadd.f32 %v1953, %v2246
      %v2313 = vadd.f32 %v1954, %v2249
      %v2314 = vadd.f32 %v1955, %v2254
      %v2315 = vadd.f32 %v1956, %v2257
      %v2316 = vadd.f32 %v1957, %v2262
      %v2317 = vadd.f32 %v1958, %v2265
      %v2318 = vadd.f32 %v1959, %v2270
      %v2319 = vadd.f32 %v1960, %v2273
      %v2320 = vadd.f32 %v1961, %v2278
      %v2321 = vadd.f32 %v1962, %v2281
      %v2322 = vadd.f32 %v1963, %v2286
      %v2323 = vadd.f32 %v1964, %v2289
      %v2324 = vld [vmem:[%s1606] sm:$0xf]
      %v2325 = vld [vmem:[%s1606 + $0x4] sm:$0xf]
      %v2326 = vld [vmem:[%s1606 + $0x8] sm:$0x1]
      %v2327 = vld [vmem:[%s1606 + $0xc] sm:$0xf]
      %v2328 = vld [vmem:[%s1606 + $0x10] sm:$0xf]
      %v2329 = vld [vmem:[%s1606 + $0x14] sm:$0x1]
      %v2330 = vld [vmem:[%s1606 + $0x18] sm:$0xf]
      %v2331 = vld [vmem:[%s1606 + $0x1c] sm:$0xf]
      %v2332 = vld [vmem:[%s1606 + $0x20] sm:$0x1]
      %v2333 = vld [vmem:[%s1606 + $0x24] sm:$0xf]
      %v2334 = vld [vmem:[%s1606 + $0x28] sm:$0xf]
      %v2335 = vld [vmem:[%s1606 + $0x2c] sm:$0x1]
      %v2336 = vld [vmem:[%s1606 + $0x30] sm:$0xf]
      %v2337 = vld [vmem:[%s1606 + $0x34] sm:$0xf]
      %v2338 = vld [vmem:[%s1606 + $0x38] sm:$0x1]
      %v2339 = vld [vmem:[%s1606 + $0x3c] sm:$0xf]
      %v2340 = vld [vmem:[%s1606 + $0x40] sm:$0xf]
      %v2341 = vld [vmem:[%s1606 + $0x44] sm:$0x1]
      %v2342 = vld [vmem:[%s1606 + $0x48] sm:$0xf]
      %v2343 = vld [vmem:[%s1606 + $0x4c] sm:$0xf]
      %v2344 = vld [vmem:[%s1606 + $0x50] sm:$0x1]
      %v2345 = vld [vmem:[%s1606 + $0x54] sm:$0xf]
      %v2346 = vld [vmem:[%s1606 + $0x58] sm:$0xf]
      %v2347 = vld [vmem:[%s1606 + $0x5c] sm:$0x1]
      %v2348 = vld [vmem:[%s1606 + $0x60] sm:$0xf]
      %v2349 = vld [vmem:[%s1606 + $0x64] sm:$0xf]
      %v2350 = vld [vmem:[%s1606 + $0x68] sm:$0x1]
      %v2351 = vld [vmem:[%s1606 + $0x6c] sm:$0xf]
      %v2352 = vld [vmem:[%s1606 + $0x70] sm:$0xf]
      %v2353 = vld [vmem:[%s1606 + $0x74] sm:$0x1]
      %v2354 = vld [vmem:[%s1606 + $0x78] sm:$0xf]
      %v2355 = vld [vmem:[%s1606 + $0x7c] sm:$0xf]
      %v2356 = vld [vmem:[%s1606 + $0x80] sm:$0x1]
      %v2357 = vld [vmem:[%s1606 + $0x84] sm:$0xf]
      %v2358 = vld [vmem:[%s1606 + $0x88] sm:$0xf]
      %v2359 = vld [vmem:[%s1606 + $0x8c] sm:$0x1]
      %v2360 = vld [vmem:[%s1606 + $0x90] sm:$0xf]
      %v2361 = vld [vmem:[%s1606 + $0x94] sm:$0xf]
      %v2362 = vld [vmem:[%s1606 + $0x98] sm:$0x1]
      %v2363 = vld [vmem:[%s1606 + $0x9c] sm:$0xf]
      %v2364 = vld [vmem:[%s1606 + $0xa0] sm:$0xf]
      %v2365 = vld [vmem:[%s1606 + $0xa4] sm:$0x1]
      %v2366 = vld [vmem:[%s1606 + $0xa8] sm:$0xf]
      %v2367 = vld [vmem:[%s1606 + $0xac] sm:$0xf]
      %v2368 = vld [vmem:[%s1606 + $0xb0] sm:$0x1]
      %v2369 = vld [vmem:[%s1606 + $0xb4] sm:$0xf]
      %v2370 = vld [vmem:[%s1606 + $0xb8] sm:$0xf]
      %v2371 = vld [vmem:[%s1606 + $0xbc] sm:$0x1]
      %v2373 = vshrl.u32 %v2324, 16
      %v2375 = vrot.slane %v2373, 4
      %v2376 = vshll.u32 %v2324, 16
      %v2378 = vrot.slane %v2376, 5
      %v2379 = vor.u32 %v2375, %v2378
      %v2380 = vrot.slane %v2379, 4
      %v2382 = vshll.u32 %v2325, 16
      %v2384 = vrot.slane %v2382, 5
      %v2385 = vsel %vm927, %v2380, %v2384
      %v2386 = vshrl.u32 %v2325, 16
      %v2388 = vrot.slane %v2386, 4
      %v2389 = vor.u32 %v2388, %v2384
      %v2390 = vrot.slane %v2389, 4
      %v2392 = vshll.u32 %v2326, 16
      %v2394 = vrot.slane %v2392, 5
      %v2395 = vsel %vm927, %v2390, %v2394
      %v2397 = vshrl.u32 %v2327, 16
      %v2399 = vrot.slane %v2397, 4
      %v2400 = vshll.u32 %v2327, 16
      %v2402 = vrot.slane %v2400, 5
      %v2403 = vor.u32 %v2399, %v2402
      %v2404 = vrot.slane %v2403, 4
      %v2406 = vshll.u32 %v2328, 16
      %v2408 = vrot.slane %v2406, 5
      %v2409 = vsel %vm927, %v2404, %v2408
      %v2410 = vshrl.u32 %v2328, 16
      %v2412 = vrot.slane %v2410, 4
      %v2413 = vor.u32 %v2412, %v2408
      %v2414 = vrot.slane %v2413, 4
      %v2416 = vshll.u32 %v2329, 16
      %v2418 = vrot.slane %v2416, 5
      %v2419 = vsel %vm927, %v2414, %v2418
      %v2421 = vshrl.u32 %v2330, 16
      %v2423 = vrot.slane %v2421, 4
      %v2424 = vshll.u32 %v2330, 16
      %v2426 = vrot.slane %v2424, 5
      %v2427 = vor.u32 %v2423, %v2426
      %v2428 = vrot.slane %v2427, 4
      %v2430 = vshll.u32 %v2331, 16
      %v2432 = vrot.slane %v2430, 5
      %v2433 = vsel %vm927, %v2428, %v2432
      %v2434 = vshrl.u32 %v2331, 16
      %v2436 = vrot.slane %v2434, 4
      %v2437 = vor.u32 %v2436, %v2432
      %v2438 = vrot.slane %v2437, 4
      %v2440 = vshll.u32 %v2332, 16
      %v2442 = vrot.slane %v2440, 5
      %v2443 = vsel %vm927, %v2438, %v2442
      %v2445 = vshrl.u32 %v2333, 16
      %v2447 = vrot.slane %v2445, 4
      %v2448 = vshll.u32 %v2333, 16
      %v2450 = vrot.slane %v2448, 5
      %v2451 = vor.u32 %v2447, %v2450
      %v2452 = vrot.slane %v2451, 4
      %v2454 = vshll.u32 %v2334, 16
      %v2456 = vrot.slane %v2454, 5
      %v2457 = vsel %vm927, %v2452, %v2456
      %v2458 = vshrl.u32 %v2334, 16
      %v2460 = vrot.slane %v2458, 4
      %v2461 = vor.u32 %v2460, %v2456
      %v2462 = vrot.slane %v2461, 4
      %v2464 = vshll.u32 %v2335, 16
      %v2466 = vrot.slane %v2464, 5
      %v2467 = vsel %vm927, %v2462, %v2466
      %v2469 = vshrl.u32 %v2336, 16
      %v2471 = vrot.slane %v2469, 4
      %v2472 = vshll.u32 %v2336, 16
      %v2474 = vrot.slane %v2472, 5
      %v2475 = vor.u32 %v2471, %v2474
      %v2476 = vrot.slane %v2475, 4
      %v2478 = vshll.u32 %v2337, 16
      %v2480 = vrot.slane %v2478, 5
      %v2481 = vsel %vm927, %v2476, %v2480
      %v2482 = vshrl.u32 %v2337, 16
      %v2484 = vrot.slane %v2482, 4
      %v2485 = vor.u32 %v2484, %v2480
      %v2486 = vrot.slane %v2485, 4
      %v2488 = vshll.u32 %v2338, 16
      %v2490 = vrot.slane %v2488, 5
      %v2491 = vsel %vm927, %v2486, %v2490
      %v2493 = vshrl.u32 %v2339, 16
      %v2495 = vrot.slane %v2493, 4
      %v2496 = vshll.u32 %v2339, 16
      %v2498 = vrot.slane %v2496, 5
      %v2499 = vor.u32 %v2495, %v2498
      %v2500 = vrot.slane %v2499, 4
      %v2502 = vshll.u32 %v2340, 16
      %v2504 = vrot.slane %v2502, 5
      %v2505 = vsel %vm927, %v2500, %v2504
      %v2506 = vshrl.u32 %v2340, 16
      %v2508 = vrot.slane %v2506, 4
      %v2509 = vor.u32 %v2508, %v2504
      %v2510 = vrot.slane %v2509, 4
      %v2512 = vshll.u32 %v2341, 16
      %v2514 = vrot.slane %v2512, 5
      %v2515 = vsel %vm927, %v2510, %v2514
      %v2517 = vshrl.u32 %v2342, 16
      %v2519 = vrot.slane %v2517, 4
      %v2520 = vshll.u32 %v2342, 16
      %v2522 = vrot.slane %v2520, 5
      %v2523 = vor.u32 %v2519, %v2522
      %v2524 = vrot.slane %v2523, 4
      %v2526 = vshll.u32 %v2343, 16
      %v2528 = vrot.slane %v2526, 5
      %v2529 = vsel %vm927, %v2524, %v2528
      %v2530 = vshrl.u32 %v2343, 16
      %v2532 = vrot.slane %v2530, 4
      %v2533 = vor.u32 %v2532, %v2528
      %v2534 = vrot.slane %v2533, 4
      %v2536 = vshll.u32 %v2344, 16
      %v2538 = vrot.slane %v2536, 5
      %v2539 = vsel %vm927, %v2534, %v2538
      %v2541 = vshrl.u32 %v2345, 16
      %v2543 = vrot.slane %v2541, 4
      %v2544 = vshll.u32 %v2345, 16
      %v2546 = vrot.slane %v2544, 5
      %v2547 = vor.u32 %v2543, %v2546
      %v2548 = vrot.slane %v2547, 4
      %v2550 = vshll.u32 %v2346, 16
      %v2552 = vrot.slane %v2550, 5
      %v2553 = vsel %vm927, %v2548, %v2552
      %v2554 = vshrl.u32 %v2346, 16
      %v2556 = vrot.slane %v2554, 4
      %v2557 = vor.u32 %v2556, %v2552
      %v2558 = vrot.slane %v2557, 4
      %v2560 = vshll.u32 %v2347, 16
      %v2562 = vrot.slane %v2560, 5
      %v2563 = vsel %vm927, %v2558, %v2562
      %v2565 = vshrl.u32 %v2348, 16
      %v2567 = vrot.slane %v2565, 4
      %v2568 = vshll.u32 %v2348, 16
      %v2570 = vrot.slane %v2568, 5
      %v2571 = vor.u32 %v2567, %v2570
      %v2572 = vrot.slane %v2571, 4
      %v2574 = vshll.u32 %v2349, 16
      %v2576 = vrot.slane %v2574, 5
      %v2577 = vsel %vm927, %v2572, %v2576
      %v2578 = vshrl.u32 %v2349, 16
      %v2580 = vrot.slane %v2578, 4
      %v2581 = vor.u32 %v2580, %v2576
      %v2582 = vrot.slane %v2581, 4
      %v2584 = vshll.u32 %v2350, 16
      %v2586 = vrot.slane %v2584, 5
      %v2587 = vsel %vm927, %v2582, %v2586
      %v2589 = vshrl.u32 %v2351, 16
      %v2591 = vrot.slane %v2589, 4
      %v2592 = vshll.u32 %v2351, 16
      %v2594 = vrot.slane %v2592, 5
      %v2595 = vor.u32 %v2591, %v2594
      %v2596 = vrot.slane %v2595, 4
      %v2598 = vshll.u32 %v2352, 16
      %v2600 = vrot.slane %v2598, 5
      %v2601 = vsel %vm927, %v2596, %v2600
      %v2602 = vshrl.u32 %v2352, 16
      %v2604 = vrot.slane %v2602, 4
      %v2605 = vor.u32 %v2604, %v2600
      %v2606 = vrot.slane %v2605, 4
      %v2608 = vshll.u32 %v2353, 16
      %v2610 = vrot.slane %v2608, 5
      %v2611 = vsel %vm927, %v2606, %v2610
      %v2613 = vshrl.u32 %v2354, 16
      %v2615 = vrot.slane %v2613, 4
      %v2616 = vshll.u32 %v2354, 16
      %v2618 = vrot.slane %v2616, 5
      %v2619 = vor.u32 %v2615, %v2618
      %v2620 = vrot.slane %v2619, 4
      %v2622 = vshll.u32 %v2355, 16
      %v2624 = vrot.slane %v2622, 5
      %v2625 = vsel %vm927, %v2620, %v2624
      %v2626 = vshrl.u32 %v2355, 16
      %v2628 = vrot.slane %v2626, 4
      %v2629 = vor.u32 %v2628, %v2624
      %v2630 = vrot.slane %v2629, 4
      %v2632 = vshll.u32 %v2356, 16
      %v2634 = vrot.slane %v2632, 5
      %v2635 = vsel %vm927, %v2630, %v2634
      %v2637 = vshrl.u32 %v2357, 16
      %v2639 = vrot.slane %v2637, 4
      %v2640 = vshll.u32 %v2357, 16
      %v2642 = vrot.slane %v2640, 5
      %v2643 = vor.u32 %v2639, %v2642
      %v2644 = vrot.slane %v2643, 4
      %v2646 = vshll.u32 %v2358, 16
      %v2648 = vrot.slane %v2646, 5
      %v2649 = vsel %vm927, %v2644, %v2648
      %v2650 = vshrl.u32 %v2358, 16
      %v2652 = vrot.slane %v2650, 4
      %v2653 = vor.u32 %v2652, %v2648
      %v2654 = vrot.slane %v2653, 4
      %v2656 = vshll.u32 %v2359, 16
      %v2658 = vrot.slane %v2656, 5
      %v2659 = vsel %vm927, %v2654, %v2658
      %v2661 = vshrl.u32 %v2360, 16
      %v2663 = vrot.slane %v2661, 4
      %v2664 = vshll.u32 %v2360, 16
      %v2666 = vrot.slane %v2664, 5
      %v2667 = vor.u32 %v2663, %v2666
      %v2668 = vrot.slane %v2667, 4
      %v2670 = vshll.u32 %v2361, 16
      %v2672 = vrot.slane %v2670, 5
      %v2673 = vsel %vm927, %v2668, %v2672
      %v2674 = vshrl.u32 %v2361, 16
      %v2676 = vrot.slane %v2674, 4
      %v2677 = vor.u32 %v2676, %v2672
      %v2678 = vrot.slane %v2677, 4
      %v2680 = vshll.u32 %v2362, 16
      %v2682 = vrot.slane %v2680, 5
      %v2683 = vsel %vm927, %v2678, %v2682
      %v2685 = vshrl.u32 %v2363, 16
      %v2687 = vrot.slane %v2685, 4
      %v2688 = vshll.u32 %v2363, 16
      %v2690 = vrot.slane %v2688, 5
      %v2691 = vor.u32 %v2687, %v2690
      %v2692 = vrot.slane %v2691, 4
      %v2694 = vshll.u32 %v2364, 16
      %v2696 = vrot.slane %v2694, 5
      %v2697 = vsel %vm927, %v2692, %v2696
      %v2698 = vshrl.u32 %v2364, 16
      %v2700 = vrot.slane %v2698, 4
      %v2701 = vor.u32 %v2700, %v2696
      %v2702 = vrot.slane %v2701, 4
      %v2704 = vshll.u32 %v2365, 16
      %v2706 = vrot.slane %v2704, 5
      %v2707 = vsel %vm927, %v2702, %v2706
      %v2709 = vshrl.u32 %v2366, 16
      %v2711 = vrot.slane %v2709, 4
      %v2712 = vshll.u32 %v2366, 16
      %v2714 = vrot.slane %v2712, 5
      %v2715 = vor.u32 %v2711, %v2714
      %v2716 = vrot.slane %v2715, 4
      %v2718 = vshll.u32 %v2367, 16
      %v2720 = vrot.slane %v2718, 5
      %v2721 = vsel %vm927, %v2716, %v2720
      %v2722 = vshrl.u32 %v2367, 16
      %v2724 = vrot.slane %v2722, 4
      %v2725 = vor.u32 %v2724, %v2720
      %v2726 = vrot.slane %v2725, 4
      %v2728 = vshll.u32 %v2368, 16
      %v2730 = vrot.slane %v2728, 5
      %v2731 = vsel %vm927, %v2726, %v2730
      %v2733 = vshrl.u32 %v2369, 16
      %v2735 = vrot.slane %v2733, 4
      %v2736 = vshll.u32 %v2369, 16
      %v2738 = vrot.slane %v2736, 5
      %v2739 = vor.u32 %v2735, %v2738
      %v2740 = vrot.slane %v2739, 4
      %v2742 = vshll.u32 %v2370, 16
      %v2744 = vrot.slane %v2742, 5
      %v2745 = vsel %vm927, %v2740, %v2744
      %v2746 = vshrl.u32 %v2370, 16
      %v2748 = vrot.slane %v2746, 4
      %v2749 = vor.u32 %v2748, %v2744
      %v2750 = vrot.slane %v2749, 4
      %v2752 = vshll.u32 %v2371, 16
      %v2754 = vrot.slane %v2752, 5
      %v2755 = vsel %vm927, %v2750, %v2754
      %s2756 = scalar_lea.vmem %s210, 20
      %v2757 = vld [vmem:[%s2756] sm:$0xf]
      %v2758 = vunpack.c.l.b16 %v2385
      %v2759 = vunpack.c.l.b16 %v2395
      %v2760 = vunpack.c.l.b16 %v2409
      %v2761 = vunpack.c.l.b16 %v2419
      %v2762 = vunpack.c.l.b16 %v2433
      %v2763 = vunpack.c.l.b16 %v2443
      %v2764 = vunpack.c.l.b16 %v2457
      %v2765 = vunpack.c.l.b16 %v2467
      %v2766 = vunpack.c.l.b16 %v2481
      %v2767 = vunpack.c.l.b16 %v2491
      %v2768 = vunpack.c.l.b16 %v2505
      %v2769 = vunpack.c.l.b16 %v2515
      %v2770 = vunpack.c.l.b16 %v2529
      %v2771 = vunpack.c.l.b16 %v2539
      %v2772 = vunpack.c.l.b16 %v2553
      %v2773 = vunpack.c.l.b16 %v2563
      %v2774 = vunpack.c.l.b16 %v2577
      %v2775 = vunpack.c.l.b16 %v2587
      %v2776 = vunpack.c.l.b16 %v2601
      %v2777 = vunpack.c.l.b16 %v2611
      %v2778 = vunpack.c.l.b16 %v2625
      %v2779 = vunpack.c.l.b16 %v2635
      %v2780 = vunpack.c.l.b16 %v2649
      %v2781 = vunpack.c.l.b16 %v2659
      %v2782 = vunpack.c.l.b16 %v2673
      %v2783 = vunpack.c.l.b16 %v2683
      %v2784 = vunpack.c.l.b16 %v2697
      %v2785 = vunpack.c.l.b16 %v2707
      %v2786 = vunpack.c.l.b16 %v2721
      %v2787 = vunpack.c.l.b16 %v2731
      %v2788 = vunpack.c.l.b16 %v2745
      %v2789 = vunpack.c.l.b16 %v2755
      %v2790 = vpack.c.b16 %v2759, %v2758
      %v2791 = vpack.c.b16 %v2761, %v2760
      %v2792 = vpack.c.b16 %v2763, %v2762
      %v2793 = vpack.c.b16 %v2765, %v2764
      %v2794 = vpack.c.b16 %v2767, %v2766
      %v2795 = vpack.c.b16 %v2769, %v2768
      %v2796 = vpack.c.b16 %v2771, %v2770
      %v2797 = vpack.c.b16 %v2773, %v2772
      %v2798 = vpack.c.b16 %v2775, %v2774
      %v2799 = vpack.c.b16 %v2777, %v2776
      %v2800 = vpack.c.b16 %v2779, %v2778
      %v2801 = vpack.c.b16 %v2781, %v2780
      %v2802 = vpack.c.b16 %v2783, %v2782
      %v2803 = vpack.c.b16 %v2785, %v2784
      %v2804 = vpack.c.b16 %v2787, %v2786
      %v2805 = vpack.c.b16 %v2789, %v2788
      %v2807 = vsel %vm371, %v2790, 0
      %v2810 = vsel %vm371, %v2791, 0
      %v2813 = vsel %vm371, %v2792, 0
      %v2816 = vsel %vm371, %v2793, 0
      %v2819 = vsel %vm371, %v2794, 0
      %v2822 = vsel %vm371, %v2795, 0
      %v2825 = vsel %vm371, %v2796, 0
      %v2828 = vsel %vm371, %v2797, 0
      %v2831 = vsel %vm371, %v2798, 0
      %v2834 = vsel %vm371, %v2799, 0
      %v2837 = vsel %vm371, %v2800, 0
      %v2840 = vsel %vm371, %v2801, 0
      %v2843 = vsel %vm371, %v2802, 0
      %v2846 = vsel %vm371, %v2803, 0
      %v2849 = vsel %vm371, %v2804, 0
      %v2852 = vsel %vm371, %v2805, 0
      %v2855 = vsel %vm420, %v2757, 0
      %2857 = vmatprep.subr.bf16.mxu0 0
      %2858 = vmatpush1.bf16.msra.mxu0 %v2855
      %2859 = vmatprep.subr.bf16.mxu0 0
      %2860 = vmatpush1.bf16.msra.mxu0 0
      %2861 = vmatprep.subr.bf16.mxu0 0
      %2862 = vmatpush1.bf16.msra.mxu0 0
      %2863 = vmatprep.subr.bf16.mxu0 0
      %2864 = vmatpush1.bf16.msra.mxu0 0
      %2865 = vmatprep.subr.bf16.mxu0 0
      %2866 = vmatpush1.bf16.msra.mxu0 0
      %2867 = vmatprep.subr.bf16.mxu0 0
      %2868 = vmatpush1.bf16.msra.mxu0 0
      %2869 = vmatprep.subr.bf16.mxu0 0
      %2870 = vmatpush1.bf16.msra.mxu0 0
      %2871 = vmatprep.subr.bf16.mxu0 0
      %2872 = vmatpush1.bf16.msra.mxu0 0
      %2873 = vmatprep.subr.bf16.mxu0 0
      %2874 = vmatpush1.bf16.msra.mxu0 0
      %2875 = vmatprep.subr.bf16.mxu0 0
      %2876 = vmatpush1.bf16.msra.mxu0 0
      %2877 = vmatprep.subr.bf16.mxu0 0
      %2878 = vmatpush1.bf16.msra.mxu0 0
      %2879 = vmatprep.subr.bf16.mxu0 0
      %2880 = vmatpush1.bf16.msra.mxu0 0
      %2881 = vmatprep.subr.bf16.mxu0 0
      %2882 = vmatpush1.bf16.msra.mxu0 0
      %2883 = vmatprep.subr.bf16.mxu0 0
      %2884 = vmatpush1.bf16.msra.mxu0 0
      %2885 = vmatprep.subr.bf16.mxu0 0
      %2886 = vmatpush1.bf16.msra.mxu0 0
      %2887 = vmatprep.subr.bf16.mxu0 0
      %2888 = vmatpush1.bf16.msra.mxu0 0
      %2889 = vmatprep.mubr.bf16.mxu0 0
      %2890 = vmatmul.mubr.bf16.gmra.mrb[0].mxu0 %v2807
      %v2891 = vpop.f32.mrb[0].mxu0
      %v2892 = vadd.f32 0.0, %v2891
      %v2893 = vpop.f32.mrb[0].mxu0
      %v2894 = vpop.f32.mrb[0].mxu0
      %v2895 = vadd.f32 0.0, %v2894
      %v2896 = vpop.f32.mrb[0].mxu0
      %2897 = vmatprep.mubr.bf16.mxu0 0
      %2898 = vmatmul.mubr.bf16.gmra.mrb[0].mxu0 %v2810
      %v2899 = vpop.f32.mrb[0].mxu0
      %v2900 = vadd.f32 0.0, %v2899
      %v2901 = vpop.f32.mrb[0].mxu0
      %v2902 = vpop.f32.mrb[0].mxu0
      %v2903 = vadd.f32 0.0, %v2902
      %v2904 = vpop.f32.mrb[0].mxu0
      %2905 = vmatprep.mubr.bf16.mxu0 0
      %2906 = vmatmul.mubr.bf16.gmra.mrb[0].mxu0 %v2813
      %v2907 = vpop.f32.mrb[0].mxu0
      %v2908 = vadd.f32 0.0, %v2907
      %v2909 = vpop.f32.mrb[0].mxu0
      %v2910 = vpop.f32.mrb[0].mxu0
      %v2911 = vadd.f32 0.0, %v2910
      %v2912 = vpop.f32.mrb[0].mxu0
      %2913 = vmatprep.mubr.bf16.mxu0 0
      %2914 = vmatmul.mubr.bf16.gmra.mrb[0].mxu0 %v2816
      %v2915 = vpop.f32.mrb[0].mxu0
      %v2916 = vadd.f32 0.0, %v2915
      %v2917 = vpop.f32.mrb[0].mxu0
      %v2918 = vpop.f32.mrb[0].mxu0
      %v2919 = vadd.f32 0.0, %v2918
      %v2920 = vpop.f32.mrb[0].mxu0
      %2921 = vmatprep.mubr.bf16.mxu0 0
      %2922 = vmatmul.mubr.bf16.gmra.mrb[0].mxu0 %v2819
      %v2923 = vpop.f32.mrb[0].mxu0
      %v2924 = vadd.f32 0.0, %v2923
      %v2925 = vpop.f32.mrb[0].mxu0
      %v2926 = vpop.f32.mrb[0].mxu0
      %v2927 = vadd.f32 0.0, %v2926
      %v2928 = vpop.f32.mrb[0].mxu0
      %2929 = vmatprep.mubr.bf16.mxu0 0
      %2930 = vmatmul.mubr.bf16.gmra.mrb[0].mxu0 %v2822
      %v2931 = vpop.f32.mrb[0].mxu0
      %v2932 = vadd.f32 0.0, %v2931
      %v2933 = vpop.f32.mrb[0].mxu0
      %v2934 = vpop.f32.mrb[0].mxu0
      %v2935 = vadd.f32 0.0, %v2934
      %v2936 = vpop.f32.mrb[0].mxu0
      %2937 = vmatprep.mubr.bf16.mxu0 0
      %2938 = vmatmul.mubr.bf16.gmra.mrb[0].mxu0 %v2825
      %v2939 = vpop.f32.mrb[0].mxu0
      %v2940 = vadd.f32 0.0, %v2939
      %v2941 = vpop.f32.mrb[0].mxu0
      %v2942 = vpop.f32.mrb[0].mxu0
      %v2943 = vadd.f32 0.0, %v2942
      %v2944 = vpop.f32.mrb[0].mxu0
      %2945 = vmatprep.mubr.bf16.mxu0 0
      %2946 = vmatmul.mubr.bf16.gmra.mrb[0].mxu0 %v2828
      %v2947 = vpop.f32.mrb[0].mxu0
      %v2948 = vadd.f32 0.0, %v2947
      %v2949 = vpop.f32.mrb[0].mxu0
      %v2950 = vpop.f32.mrb[0].mxu0
      %v2951 = vadd.f32 0.0, %v2950
      %v2952 = vpop.f32.mrb[0].mxu0
      %2953 = vmatprep.mubr.bf16.mxu0 0
      %2954 = vmatmul.mubr.bf16.gmra.mrb[0].mxu0 %v2831
      %v2955 = vpop.f32.mrb[0].mxu0
      %v2956 = vadd.f32 0.0, %v2955
      %v2957 = vpop.f32.mrb[0].mxu0
      %v2958 = vpop.f32.mrb[0].mxu0
      %v2959 = vadd.f32 0.0, %v2958
      %v2960 = vpop.f32.mrb[0].mxu0
      %2961 = vmatprep.mubr.bf16.mxu0 0
      %2962 = vmatmul.mubr.bf16.gmra.mrb[0].mxu0 %v2834
      %v2963 = vpop.f32.mrb[0].mxu0
      %v2964 = vadd.f32 0.0, %v2963
      %v2965 = vpop.f32.mrb[0].mxu0
      %v2966 = vpop.f32.mrb[0].mxu0
      %v2967 = vadd.f32 0.0, %v2966
      %v2968 = vpop.f32.mrb[0].mxu0
      %2969 = vmatprep.mubr.bf16.mxu0 0
      %2970 = vmatmul.mubr.bf16.gmra.mrb[0].mxu0 %v2837
      %v2971 = vpop.f32.mrb[0].mxu0
      %v2972 = vadd.f32 0.0, %v2971
      %v2973 = vpop.f32.mrb[0].mxu0
      %v2974 = vpop.f32.mrb[0].mxu0
      %v2975 = vadd.f32 0.0, %v2974
      %v2976 = vpop.f32.mrb[0].mxu0
      %2977 = vmatprep.mubr.bf16.mxu0 0
      %2978 = vmatmul.mubr.bf16.gmra.mrb[0].mxu0 %v2840
      %v2979 = vpop.f32.mrb[0].mxu0
      %v2980 = vadd.f32 0.0, %v2979
      %v2981 = vpop.f32.mrb[0].mxu0
      %v2982 = vpop.f32.mrb[0].mxu0
      %v2983 = vadd.f32 0.0, %v2982
      %v2984 = vpop.f32.mrb[0].mxu0
      %2985 = vmatprep.mubr.bf16.mxu0 0
      %2986 = vmatmul.mubr.bf16.gmra.mrb[0].mxu0 %v2843
      %v2987 = vpop.f32.mrb[0].mxu0
      %v2988 = vadd.f32 0.0, %v2987
      %v2989 = vpop.f32.mrb[0].mxu0
      %v2990 = vpop.f32.mrb[0].mxu0
      %v2991 = vadd.f32 0.0, %v2990
      %v2992 = vpop.f32.mrb[0].mxu0
      %2993 = vmatprep.mubr.bf16.mxu0 0
      %2994 = vmatmul.mubr.bf16.gmra.mrb[0].mxu0 %v2846
      %v2995 = vpop.f32.mrb[0].mxu0
      %v2996 = vadd.f32 0.0, %v2995
      %v2997 = vpop.f32.mrb[0].mxu0
      %v2998 = vpop.f32.mrb[0].mxu0
      %v2999 = vadd.f32 0.0, %v2998
      %v3000 = vpop.f32.mrb[0].mxu0
      %3001 = vmatprep.mubr.bf16.mxu0 0
      %3002 = vmatmul.mubr.bf16.gmra.mrb[0].mxu0 %v2849
      %v3003 = vpop.f32.mrb[0].mxu0
      %v3004 = vadd.f32 0.0, %v3003
      %v3005 = vpop.f32.mrb[0].mxu0
      %v3006 = vpop.f32.mrb[0].mxu0
      %v3007 = vadd.f32 0.0, %v3006
      %v3008 = vpop.f32.mrb[0].mxu0
      %3009 = vmatprep.mubr.bf16.mxu0 0
      %3010 = vmatmul.mubr.bf16.gmra.mrb[0].mxu0 %v2852
      %v3011 = vpop.f32.mrb[0].mxu0
      %v3012 = vadd.f32 0.0, %v3011
      %v3013 = vpop.f32.mrb[0].mxu0
      %v3014 = vpop.f32.mrb[0].mxu0
      %v3015 = vadd.f32 0.0, %v3014
      %v3016 = vpop.f32.mrb[0].mxu0
      %3017 = vdwg.mxu0
      %v3018 = vadd.f32 %v2292, %v2892
      %v3019 = vadd.f32 %v2293, %v2895
      %v3020 = vadd.f32 %v2294, %v2900
      %v3021 = vadd.f32 %v2295, %v2903
      %v3022 = vadd.f32 %v2296, %v2908
      %v3023 = vadd.f32 %v2297, %v2911
      %v3024 = vadd.f32 %v2298, %v2916
      %v3025 = vadd.f32 %v2299, %v2919
      %v3026 = vadd.f32 %v2300, %v2924
      %v3027 = vadd.f32 %v2301, %v2927
      %v3028 = vadd.f32 %v2302, %v2932
      %v3029 = vadd.f32 %v2303, %v2935
      %v3030 = vadd.f32 %v2304, %v2940
      %v3031 = vadd.f32 %v2305, %v2943
      %v3032 = vadd.f32 %v2306, %v2948
      %v3033 = vadd.f32 %v2307, %v2951
      %v3034 = vadd.f32 %v2308, %v2956
      %v3035 = vadd.f32 %v2309, %v2959
      %v3036 = vadd.f32 %v2310, %v2964
      %v3037 = vadd.f32 %v2311, %v2967
      %v3038 = vadd.f32 %v2312, %v2972
      %v3039 = vadd.f32 %v2313, %v2975
      %v3040 = vadd.f32 %v2314, %v2980
      %v3041 = vadd.f32 %v2315, %v2983
      %v3042 = vadd.f32 %v2316, %v2988
      %v3043 = vadd.f32 %v2317, %v2991
      %v3044 = vadd.f32 %v2318, %v2996
      %v3045 = vadd.f32 %v2319, %v2999
      %v3046 = vadd.f32 %v2320, %v3004
      %v3047 = vadd.f32 %v2321, %v3007
      %v3048 = vadd.f32 %v2322, %v3012
      %v3049 = vadd.f32 %v2323, %v3015
      %s3050 = scalar_lea.vmem %s206, 12
      %v3051 = vld [vmem:[%s3050] sm:$0xf]
      %v3052 = vld [vmem:[%s3050 + $0x4] sm:$0xf]
      %v3053 = vld [vmem:[%s3050 + $0xc] sm:$0xf]
      %v3054 = vld [vmem:[%s3050 + $0x10] sm:$0xf]
      %v3055 = vld [vmem:[%s3050 + $0x18] sm:$0xf]
      %v3056 = vld [vmem:[%s3050 + $0x1c] sm:$0xf]
      %v3057 = vld [vmem:[%s3050 + $0x24] sm:$0xf]
      %v3058 = vld [vmem:[%s3050 + $0x28] sm:$0xf]
      %v3059 = vld [vmem:[%s3050 + $0x30] sm:$0xf]
      %v3060 = vld [vmem:[%s3050 + $0x34] sm:$0xf]
      %v3061 = vld [vmem:[%s3050 + $0x3c] sm:$0xf]
      %v3062 = vld [vmem:[%s3050 + $0x40] sm:$0xf]
      %v3063 = vld [vmem:[%s3050 + $0x48] sm:$0xf]
      %v3064 = vld [vmem:[%s3050 + $0x4c] sm:$0xf]
      %v3065 = vld [vmem:[%s3050 + $0x54] sm:$0xf]
      %v3066 = vld [vmem:[%s3050 + $0x58] sm:$0xf]
      %v3067 = vld [vmem:[%s3050 + $0x60] sm:$0xf]
      %v3068 = vld [vmem:[%s3050 + $0x64] sm:$0xf]
      %v3069 = vld [vmem:[%s3050 + $0x6c] sm:$0xf]
      %v3070 = vld [vmem:[%s3050 + $0x70] sm:$0xf]
      %v3071 = vld [vmem:[%s3050 + $0x78] sm:$0xf]
      %v3072 = vld [vmem:[%s3050 + $0x7c] sm:$0xf]
      %v3073 = vld [vmem:[%s3050 + $0x84] sm:$0xf]
      %v3074 = vld [vmem:[%s3050 + $0x88] sm:$0xf]
      %v3075 = vld [vmem:[%s3050 + $0x90] sm:$0xf]
      %v3076 = vld [vmem:[%s3050 + $0x94] sm:$0xf]
      %v3077 = vld [vmem:[%s3050 + $0x9c] sm:$0xf]
      %v3078 = vld [vmem:[%s3050 + $0xa0] sm:$0xf]
      %v3079 = vld [vmem:[%s3050 + $0xa8] sm:$0xf]
      %v3080 = vld [vmem:[%s3050 + $0xac] sm:$0xf]
      %v3081 = vld [vmem:[%s3050 + $0xb4] sm:$0xf]
      %v3082 = vld [vmem:[%s3050 + $0xb8] sm:$0xf]
      %s3083 = scalar_lea.vmem %s210, 24
      %v3084 = vld [vmem:[%s3083] sm:$0xf]
      %v3117 = vunpack.c.l.b16 %v3051
      %v3118 = vunpack.c.l.b16 %v3052
      %v3119 = vunpack.c.l.b16 %v3053
      %v3120 = vunpack.c.l.b16 %v3054
      %v3121 = vunpack.c.l.b16 %v3055
      %v3122 = vunpack.c.l.b16 %v3056
      %v3123 = vunpack.c.l.b16 %v3057
      %v3124 = vunpack.c.l.b16 %v3058
      %v3125 = vunpack.c.l.b16 %v3059
      %v3126 = vunpack.c.l.b16 %v3060
      %v3127 = vunpack.c.l.b16 %v3061
      %v3128 = vunpack.c.l.b16 %v3062
      %v3129 = vunpack.c.l.b16 %v3063
      %v3130 = vunpack.c.l.b16 %v3064
      %v3131 = vunpack.c.l.b16 %v3065
      %v3132 = vunpack.c.l.b16 %v3066
      %v3133 = vunpack.c.l.b16 %v3067
      %v3134 = vunpack.c.l.b16 %v3068
      %v3135 = vunpack.c.l.b16 %v3069
      %v3136 = vunpack.c.l.b16 %v3070
      %v3137 = vunpack.c.l.b16 %v3071
      %v3138 = vunpack.c.l.b16 %v3072
      %v3139 = vunpack.c.l.b16 %v3073
      %v3140 = vunpack.c.l.b16 %v3074
      %v3141 = vunpack.c.l.b16 %v3075
      %v3142 = vunpack.c.l.b16 %v3076
      %v3143 = vunpack.c.l.b16 %v3077
      %v3144 = vunpack.c.l.b16 %v3078
      %v3145 = vunpack.c.l.b16 %v3079
      %v3146 = vunpack.c.l.b16 %v3080
      %v3147 = vunpack.c.l.b16 %v3081
      %v3148 = vunpack.c.l.b16 %v3082
      %v3149 = vpack.c.b16 %v3118, %v3117
      %v3150 = vpack.c.b16 %v3120, %v3119
      %v3151 = vpack.c.b16 %v3122, %v3121
      %v3152 = vpack.c.b16 %v3124, %v3123
      %v3153 = vpack.c.b16 %v3126, %v3125
      %v3154 = vpack.c.b16 %v3128, %v3127
      %v3155 = vpack.c.b16 %v3130, %v3129
      %v3156 = vpack.c.b16 %v3132, %v3131
      %v3157 = vpack.c.b16 %v3134, %v3133
      %v3158 = vpack.c.b16 %v3136, %v3135
      %v3159 = vpack.c.b16 %v3138, %v3137
      %v3160 = vpack.c.b16 %v3140, %v3139
      %v3161 = vpack.c.b16 %v3142, %v3141
      %v3162 = vpack.c.b16 %v3144, %v3143
      %v3163 = vpack.c.b16 %v3146, %v3145
      %v3164 = vpack.c.b16 %v3148, %v3147
      %v3166 = vsel %vm371, %v3149, 0
      %v3169 = vsel %vm371, %v3150, 0
      %v3172 = vsel %vm371, %v3151, 0
      %v3175 = vsel %vm371, %v3152, 0
      %v3178 = vsel %vm371, %v3153, 0
      %v3181 = vsel %vm371, %v3154, 0
      %v3184 = vsel %vm371, %v3155, 0
      %v3187 = vsel %vm371, %v3156, 0
      %v3190 = vsel %vm371, %v3157, 0
      %v3193 = vsel %vm371, %v3158, 0
      %v3196 = vsel %vm371, %v3159, 0
      %v3199 = vsel %vm371, %v3160, 0
      %v3202 = vsel %vm371, %v3161, 0
      %v3205 = vsel %vm371, %v3162, 0
      %v3208 = vsel %vm371, %v3163, 0
      %v3211 = vsel %vm371, %v3164, 0
      %v3214 = vsel %vm420, %v3084, 0
      %3216 = vmatprep.subr.bf16.mxu0 0
      %3217 = vmatpush1.bf16.msra.mxu0 %v3214
      %3218 = vmatprep.subr.bf16.mxu0 0
      %3219 = vmatpush1.bf16.msra.mxu0 0
      %3220 = vmatprep.subr.bf16.mxu0 0
      %3221 = vmatpush1.bf16.msra.mxu0 0
      %3222 = vmatprep.subr.bf16.mxu0 0
      %3223 = vmatpush1.bf16.msra.mxu0 0
      %3224 = vmatprep.subr.bf16.mxu0 0
      %3225 = vmatpush1.bf16.msra.mxu0 0
      %3226 = vmatprep.subr.bf16.mxu0 0
      %3227 = vmatpush1.bf16.msra.mxu0 0
      %3228 = vmatprep.subr.bf16.mxu0 0
      %3229 = vmatpush1.bf16.msra.mxu0 0
      %3230 = vmatprep.subr.bf16.mxu0 0
      %3231 = vmatpush1.bf16.msra.mxu0 0
      %3232 = vmatprep.subr.bf16.mxu0 0
      %3233 = vmatpush1.bf16.msra.mxu0 0
      %3234 = vmatprep.subr.bf16.mxu0 0
      %3235 = vmatpush1.bf16.msra.mxu0 0
      %3236 = vmatprep.subr.bf16.mxu0 0
      %3237 = vmatpush1.bf16.msra.mxu0 0
      %3238 = vmatprep.subr.bf16.mxu0 0
      %3239 = vmatpush1.bf16.msra.mxu0 0
      %3240 = vmatprep.subr.bf16.mxu0 0
      %3241 = vmatpush1.bf16.msra.mxu0 0
      %3242 = vmatprep.subr.bf16.mxu0 0
      %3243 = vmatpush1.bf16.msra.mxu0 0
      %3244 = vmatprep.subr.bf16.mxu0 0
      %3245 = vmatpush1.bf16.msra.mxu0 0
      %3246 = vmatprep.subr.bf16.mxu0 0
      %3247 = vmatpush1.bf16.msra.mxu0 0
      %3248 = vmatprep.mubr.bf16.mxu0 0
      %3249 = vmatmul.mubr.bf16.gmra.mrb[0].mxu0 %v3166
      %v3250 = vpop.f32.mrb[0].mxu0
      %v3251 = vadd.f32 0.0, %v3250
      %v3252 = vpop.f32.mrb[0].mxu0
      %v3253 = vpop.f32.mrb[0].mxu0
      %v3254 = vadd.f32 0.0, %v3253
      %v3255 = vpop.f32.mrb[0].mxu0
      %3256 = vmatprep.mubr.bf16.mxu0 0
      %3257 = vmatmul.mubr.bf16.gmra.mrb[0].mxu0 %v3169
      %v3258 = vpop.f32.mrb[0].mxu0
      %v3259 = vadd.f32 0.0, %v3258
      %v3260 = vpop.f32.mrb[0].mxu0
      %v3261 = vpop.f32.mrb[0].mxu0
      %v3262 = vadd.f32 0.0, %v3261
      %v3263 = vpop.f32.mrb[0].mxu0
      %3264 = vmatprep.mubr.bf16.mxu0 0
      %3265 = vmatmul.mubr.bf16.gmra.mrb[0].mxu0 %v3172
      %v3266 = vpop.f32.mrb[0].mxu0
      %v3267 = vadd.f32 0.0, %v3266
      %v3268 = vpop.f32.mrb[0].mxu0
      %v3269 = vpop.f32.mrb[0].mxu0
      %v3270 = vadd.f32 0.0, %v3269
      %v3271 = vpop.f32.mrb[0].mxu0
      %3272 = vmatprep.mubr.bf16.mxu0 0
      %3273 = vmatmul.mubr.bf16.gmra.mrb[0].mxu0 %v3175
      %v3274 = vpop.f32.mrb[0].mxu0
      %v3275 = vadd.f32 0.0, %v3274
      %v3276 = vpop.f32.mrb[0].mxu0
      %v3277 = vpop.f32.mrb[0].mxu0
      %v3278 = vadd.f32 0.0, %v3277
      %v3279 = vpop.f32.mrb[0].mxu0
      %3280 = vmatprep.mubr.bf16.mxu0 0
      %3281 = vmatmul.mubr.bf16.gmra.mrb[0].mxu0 %v3178
      %v3282 = vpop.f32.mrb[0].mxu0
      %v3283 = vadd.f32 0.0, %v3282
      %v3284 = vpop.f32.mrb[0].mxu0
      %v3285 = vpop.f32.mrb[0].mxu0
      %v3286 = vadd.f32 0.0, %v3285
      %v3287 = vpop.f32.mrb[0].mxu0
      %3288 = vmatprep.mubr.bf16.mxu0 0
      %3289 = vmatmul.mubr.bf16.gmra.mrb[0].mxu0 %v3181
      %v3290 = vpop.f32.mrb[0].mxu0
      %v3291 = vadd.f32 0.0, %v3290
      %v3292 = vpop.f32.mrb[0].mxu0
      %v3293 = vpop.f32.mrb[0].mxu0
      %v3294 = vadd.f32 0.0, %v3293
      %v3295 = vpop.f32.mrb[0].mxu0
      %3296 = vmatprep.mubr.bf16.mxu0 0
      %3297 = vmatmul.mubr.bf16.gmra.mrb[0].mxu0 %v3184
      %v3298 = vpop.f32.mrb[0].mxu0
      %v3299 = vadd.f32 0.0, %v3298
      %v3300 = vpop.f32.mrb[0].mxu0
      %v3301 = vpop.f32.mrb[0].mxu0
      %v3302 = vadd.f32 0.0, %v3301
      %v3303 = vpop.f32.mrb[0].mxu0
      %3304 = vmatprep.mubr.bf16.mxu0 0
      %3305 = vmatmul.mubr.bf16.gmra.mrb[0].mxu0 %v3187
      %v3306 = vpop.f32.mrb[0].mxu0
      %v3307 = vadd.f32 0.0, %v3306
      %v3308 = vpop.f32.mrb[0].mxu0
      %v3309 = vpop.f32.mrb[0].mxu0
      %v3310 = vadd.f32 0.0, %v3309
      %v3311 = vpop.f32.mrb[0].mxu0
      %3312 = vmatprep.mubr.bf16.mxu0 0
      %3313 = vmatmul.mubr.bf16.gmra.mrb[0].mxu0 %v3190
      %v3314 = vpop.f32.mrb[0].mxu0
      %v3315 = vadd.f32 0.0, %v3314
      %v3316 = vpop.f32.mrb[0].mxu0
      %v3317 = vpop.f32.mrb[0].mxu0
      %v3318 = vadd.f32 0.0, %v3317
      %v3319 = vpop.f32.mrb[0].mxu0
      %3320 = vmatprep.mubr.bf16.mxu0 0
      %3321 = vmatmul.mubr.bf16.gmra.mrb[0].mxu0 %v3193
      %v3322 = vpop.f32.mrb[0].mxu0
      %v3323 = vadd.f32 0.0, %v3322
      %v3324 = vpop.f32.mrb[0].mxu0
      %v3325 = vpop.f32.mrb[0].mxu0
      %v3326 = vadd.f32 0.0, %v3325
      %v3327 = vpop.f32.mrb[0].mxu0
      %3328 = vmatprep.mubr.bf16.mxu0 0
      %3329 = vmatmul.mubr.bf16.gmra.mrb[0].mxu0 %v3196
      %v3330 = vpop.f32.mrb[0].mxu0
      %v3331 = vadd.f32 0.0, %v3330
      %v3332 = vpop.f32.mrb[0].mxu0
      %v3333 = vpop.f32.mrb[0].mxu0
      %v3334 = vadd.f32 0.0, %v3333
      %v3335 = vpop.f32.mrb[0].mxu0
      %3336 = vmatprep.mubr.bf16.mxu0 0
      %3337 = vmatmul.mubr.bf16.gmra.mrb[0].mxu0 %v3199
      %v3338 = vpop.f32.mrb[0].mxu0
      %v3339 = vadd.f32 0.0, %v3338
      %v3340 = vpop.f32.mrb[0].mxu0
      %v3341 = vpop.f32.mrb[0].mxu0
      %v3342 = vadd.f32 0.0, %v3341
      %v3343 = vpop.f32.mrb[0].mxu0
      %3344 = vmatprep.mubr.bf16.mxu0 0
      %3345 = vmatmul.mubr.bf16.gmra.mrb[0].mxu0 %v3202
      %v3346 = vpop.f32.mrb[0].mxu0
      %v3347 = vadd.f32 0.0, %v3346
      %v3348 = vpop.f32.mrb[0].mxu0
      %v3349 = vpop.f32.mrb[0].mxu0
      %v3350 = vadd.f32 0.0, %v3349
      %v3351 = vpop.f32.mrb[0].mxu0
      %3352 = vmatprep.mubr.bf16.mxu0 0
      %3353 = vmatmul.mubr.bf16.gmra.mrb[0].mxu0 %v3205
      %v3354 = vpop.f32.mrb[0].mxu0
      %v3355 = vadd.f32 0.0, %v3354
      %v3356 = vpop.f32.mrb[0].mxu0
      %v3357 = vpop.f32.mrb[0].mxu0
      %v3358 = vadd.f32 0.0, %v3357
      %v3359 = vpop.f32.mrb[0].mxu0
      %3360 = vmatprep.mubr.bf16.mxu0 0
      %3361 = vmatmul.mubr.bf16.gmra.mrb[0].mxu0 %v3208
      %v3362 = vpop.f32.mrb[0].mxu0
      %v3363 = vadd.f32 0.0, %v3362
      %v3364 = vpop.f32.mrb[0].mxu0
      %v3365 = vpop.f32.mrb[0].mxu0
      %v3366 = vadd.f32 0.0, %v3365
      %v3367 = vpop.f32.mrb[0].mxu0
      %3368 = vmatprep.mubr.bf16.mxu0 0
      %3369 = vmatmul.mubr.bf16.gmra.mrb[0].mxu0 %v3211
      %v3370 = vpop.f32.mrb[0].mxu0
      %v3371 = vadd.f32 0.0, %v3370
      %v3372 = vpop.f32.mrb[0].mxu0
      %v3373 = vpop.f32.mrb[0].mxu0
      %v3374 = vadd.f32 0.0, %v3373
      %v3375 = vpop.f32.mrb[0].mxu0
      %3376 = vdwg.mxu0
      %v3377 = vadd.f32 %v3018, %v3251
      %v3378 = vadd.f32 %v3019, %v3254
      %v3379 = vadd.f32 %v3020, %v3259
      %v3380 = vadd.f32 %v3021, %v3262
      %v3381 = vadd.f32 %v3022, %v3267
      %v3382 = vadd.f32 %v3023, %v3270
      %v3383 = vadd.f32 %v3024, %v3275
      %v3384 = vadd.f32 %v3025, %v3278
      %v3385 = vadd.f32 %v3026, %v3283
      %v3386 = vadd.f32 %v3027, %v3286
      %v3387 = vadd.f32 %v3028, %v3291
      %v3388 = vadd.f32 %v3029, %v3294
      %v3389 = vadd.f32 %v3030, %v3299
      %v3390 = vadd.f32 %v3031, %v3302
      %v3391 = vadd.f32 %v3032, %v3307
      %v3392 = vadd.f32 %v3033, %v3310
      %v3393 = vadd.f32 %v3034, %v3315
      %v3394 = vadd.f32 %v3035, %v3318
      %v3395 = vadd.f32 %v3036, %v3323
      %v3396 = vadd.f32 %v3037, %v3326
      %v3397 = vadd.f32 %v3038, %v3331
      %v3398 = vadd.f32 %v3039, %v3334
      %v3399 = vadd.f32 %v3040, %v3339
      %v3400 = vadd.f32 %v3041, %v3342
      %v3401 = vadd.f32 %v3042, %v3347
      %v3402 = vadd.f32 %v3043, %v3350
      %v3403 = vadd.f32 %v3044, %v3355
      %v3404 = vadd.f32 %v3045, %v3358
      %v3405 = vadd.f32 %v3046, %v3363
      %v3406 = vadd.f32 %v3047, %v3366
      %v3407 = vadd.f32 %v3048, %v3371
      %v3408 = vadd.f32 %v3049, %v3374
      %s3409 = scalar_lea.vmem %s206, 216
      %v3410 = vld [vmem:[%s3409] sm:$0xf]
      %v3411 = vld [vmem:[%s3409 + $0x4] sm:$0xf]
      %v3412 = vld [vmem:[%s3409 + $0xc] sm:$0xf]
      %v3413 = vld [vmem:[%s3409 + $0x10] sm:$0xf]
      %v3414 = vld [vmem:[%s3409 + $0x18] sm:$0xf]
      %v3415 = vld [vmem:[%s3409 + $0x1c] sm:$0xf]
      %v3416 = vld [vmem:[%s3409 + $0x24] sm:$0xf]
      %v3417 = vld [vmem:[%s3409 + $0x28] sm:$0xf]
      %v3418 = vld [vmem:[%s3409 + $0x30] sm:$0xf]
      %v3419 = vld [vmem:[%s3409 + $0x34] sm:$0xf]
      %v3420 = vld [vmem:[%s3409 + $0x3c] sm:$0xf]
      %v3421 = vld [vmem:[%s3409 + $0x40] sm:$0xf]
      %v3422 = vld [vmem:[%s3409 + $0x48] sm:$0xf]
      %v3423 = vld [vmem:[%s3409 + $0x4c] sm:$0xf]
      %v3424 = vld [vmem:[%s3409 + $0x54] sm:$0xf]
      %v3425 = vld [vmem:[%s3409 + $0x58] sm:$0xf]
      %v3426 = vld [vmem:[%s3409 + $0x60] sm:$0xf]
      %v3427 = vld [vmem:[%s3409 + $0x64] sm:$0xf]
      %v3428 = vld [vmem:[%s3409 + $0x6c] sm:$0xf]
      %v3429 = vld [vmem:[%s3409 + $0x70] sm:$0xf]
      %v3430 = vld [vmem:[%s3409 + $0x78] sm:$0xf]
      %v3431 = vld [vmem:[%s3409 + $0x7c] sm:$0xf]
      %v3432 = vld [vmem:[%s3409 + $0x84] sm:$0xf]
      %v3433 = vld [vmem:[%s3409 + $0x88] sm:$0xf]
      %v3434 = vld [vmem:[%s3409 + $0x90] sm:$0xf]
      %v3435 = vld [vmem:[%s3409 + $0x94] sm:$0xf]
      %v3436 = vld [vmem:[%s3409 + $0x9c] sm:$0xf]
      %v3437 = vld [vmem:[%s3409 + $0xa0] sm:$0xf]
      %v3438 = vld [vmem:[%s3409 + $0xa8] sm:$0xf]
      %v3439 = vld [vmem:[%s3409 + $0xac] sm:$0xf]
      %v3440 = vld [vmem:[%s3409 + $0xb4] sm:$0xf]
      %v3441 = vld [vmem:[%s3409 + $0xb8] sm:$0xf]
      %s3442 = scalar_lea.vmem %s210, 28
      %v3443 = vld [vmem:[%s3442] sm:$0xf]
      %v3476 = vunpack.c.l.b16 %v3410
      %v3477 = vunpack.c.l.b16 %v3411
      %v3478 = vunpack.c.l.b16 %v3412
      %v3479 = vunpack.c.l.b16 %v3413
      %v3480 = vunpack.c.l.b16 %v3414
      %v3481 = vunpack.c.l.b16 %v3415
      %v3482 = vunpack.c.l.b16 %v3416
      %v3483 = vunpack.c.l.b16 %v3417
      %v3484 = vunpack.c.l.b16 %v3418
      %v3485 = vunpack.c.l.b16 %v3419
      %v3486 = vunpack.c.l.b16 %v3420
      %v3487 = vunpack.c.l.b16 %v3421
      %v3488 = vunpack.c.l.b16 %v3422
      %v3489 = vunpack.c.l.b16 %v3423
      %v3490 = vunpack.c.l.b16 %v3424
      %v3491 = vunpack.c.l.b16 %v3425
      %v3492 = vunpack.c.l.b16 %v3426
      %v3493 = vunpack.c.l.b16 %v3427
      %v3494 = vunpack.c.l.b16 %v3428
      %v3495 = vunpack.c.l.b16 %v3429
      %v3496 = vunpack.c.l.b16 %v3430
      %v3497 = vunpack.c.l.b16 %v3431
      %v3498 = vunpack.c.l.b16 %v3432
      %v3499 = vunpack.c.l.b16 %v3433
      %v3500 = vunpack.c.l.b16 %v3434
      %v3501 = vunpack.c.l.b16 %v3435
      %v3502 = vunpack.c.l.b16 %v3436
      %v3503 = vunpack.c.l.b16 %v3437
      %v3504 = vunpack.c.l.b16 %v3438
      %v3505 = vunpack.c.l.b16 %v3439
      %v3506 = vunpack.c.l.b16 %v3440
      %v3507 = vunpack.c.l.b16 %v3441
      %v3508 = vpack.c.b16 %v3477, %v3476
      %v3509 = vpack.c.b16 %v3479, %v3478
      %v3510 = vpack.c.b16 %v3481, %v3480
      %v3511 = vpack.c.b16 %v3483, %v3482
      %v3512 = vpack.c.b16 %v3485, %v3484
      %v3513 = vpack.c.b16 %v3487, %v3486
      %v3514 = vpack.c.b16 %v3489, %v3488
      %v3515 = vpack.c.b16 %v3491, %v3490
      %v3516 = vpack.c.b16 %v3493, %v3492
      %v3517 = vpack.c.b16 %v3495, %v3494
      %v3518 = vpack.c.b16 %v3497, %v3496
      %v3519 = vpack.c.b16 %v3499, %v3498
      %v3520 = vpack.c.b16 %v3501, %v3500
      %v3521 = vpack.c.b16 %v3503, %v3502
      %v3522 = vpack.c.b16 %v3505, %v3504
      %v3523 = vpack.c.b16 %v3507, %v3506
      %v3525 = vsel %vm371, %v3508, 0
      %v3528 = vsel %vm371, %v3509, 0
      %v3531 = vsel %vm371, %v3510, 0
      %v3534 = vsel %vm371, %v3511, 0
      %v3537 = vsel %vm371, %v3512, 0
      %v3540 = vsel %vm371, %v3513, 0
      %v3543 = vsel %vm371, %v3514, 0
      %v3546 = vsel %vm371, %v3515, 0
      %v3549 = vsel %vm371, %v3516, 0
      %v3552 = vsel %vm371, %v3517, 0
      %v3555 = vsel %vm371, %v3518, 0
      %v3558 = vsel %vm371, %v3519, 0
      %v3561 = vsel %vm371, %v3520, 0
      %v3564 = vsel %vm371, %v3521, 0
      %v3567 = vsel %vm371, %v3522, 0
      %v3570 = vsel %vm371, %v3523, 0
      %v3573 = vsel %vm420, %v3443, 0
      %3575 = vmatprep.subr.bf16.mxu0 0
      %3576 = vmatpush1.bf16.msra.mxu0 %v3573
      %3577 = vmatprep.subr.bf16.mxu0 0
      %3578 = vmatpush1.bf16.msra.mxu0 0
      %3579 = vmatprep.subr.bf16.mxu0 0
      %3580 = vmatpush1.bf16.msra.mxu0 0
      %3581 = vmatprep.subr.bf16.mxu0 0
      %3582 = vmatpush1.bf16.msra.mxu0 0
      %3583 = vmatprep.subr.bf16.mxu0 0
      %3584 = vmatpush1.bf16.msra.mxu0 0
      %3585 = vmatprep.subr.bf16.mxu0 0
      %3586 = vmatpush1.bf16.msra.mxu0 0
      %3587 = vmatprep.subr.bf16.mxu0 0
      %3588 = vmatpush1.bf16.msra.mxu0 0
      %3589 = vmatprep.subr.bf16.mxu0 0
      %3590 = vmatpush1.bf16.msra.mxu0 0
      %3591 = vmatprep.subr.bf16.mxu0 0
      %3592 = vmatpush1.bf16.msra.mxu0 0
      %3593 = vmatprep.subr.bf16.mxu0 0
      %3594 = vmatpush1.bf16.msra.mxu0 0
      %3595 = vmatprep.subr.bf16.mxu0 0
      %3596 = vmatpush1.bf16.msra.mxu0 0
      %3597 = vmatprep.subr.bf16.mxu0 0
      %3598 = vmatpush1.bf16.msra.mxu0 0
      %3599 = vmatprep.subr.bf16.mxu0 0
      %3600 = vmatpush1.bf16.msra.mxu0 0
      %3601 = vmatprep.subr.bf16.mxu0 0
      %3602 = vmatpush1.bf16.msra.mxu0 0
      %3603 = vmatprep.subr.bf16.mxu0 0
      %3604 = vmatpush1.bf16.msra.mxu0 0
      %3605 = vmatprep.subr.bf16.mxu0 0
      %3606 = vmatpush1.bf16.msra.mxu0 0
      %3607 = vmatprep.mubr.bf16.mxu0 0
      %3608 = vmatmul.mubr.bf16.gmra.mrb[0].mxu0 %v3525
      %v3609 = vpop.f32.mrb[0].mxu0
      %v3610 = vadd.f32 0.0, %v3609
      %v3611 = vpop.f32.mrb[0].mxu0
      %v3612 = vpop.f32.mrb[0].mxu0
      %v3613 = vadd.f32 0.0, %v3612
      %v3614 = vpop.f32.mrb[0].mxu0
      %3615 = vmatprep.mubr.bf16.mxu0 0
      %3616 = vmatmul.mubr.bf16.gmra.mrb[0].mxu0 %v3528
      %v3617 = vpop.f32.mrb[0].mxu0
      %v3618 = vadd.f32 0.0, %v3617
      %v3619 = vpop.f32.mrb[0].mxu0
      %v3620 = vpop.f32.mrb[0].mxu0
      %v3621 = vadd.f32 0.0, %v3620
      %v3622 = vpop.f32.mrb[0].mxu0
      %3623 = vmatprep.mubr.bf16.mxu0 0
      %3624 = vmatmul.mubr.bf16.gmra.mrb[0].mxu0 %v3531
      %v3625 = vpop.f32.mrb[0].mxu0
      %v3626 = vadd.f32 0.0, %v3625
      %v3627 = vpop.f32.mrb[0].mxu0
      %v3628 = vpop.f32.mrb[0].mxu0
      %v3629 = vadd.f32 0.0, %v3628
      %v3630 = vpop.f32.mrb[0].mxu0
      %3631 = vmatprep.mubr.bf16.mxu0 0
      %3632 = vmatmul.mubr.bf16.gmra.mrb[0].mxu0 %v3534
      %v3633 = vpop.f32.mrb[0].mxu0
      %v3634 = vadd.f32 0.0, %v3633
      %v3635 = vpop.f32.mrb[0].mxu0
      %v3636 = vpop.f32.mrb[0].mxu0
      %v3637 = vadd.f32 0.0, %v3636
      %v3638 = vpop.f32.mrb[0].mxu0
      %3639 = vmatprep.mubr.bf16.mxu0 0
      %3640 = vmatmul.mubr.bf16.gmra.mrb[0].mxu0 %v3537
      %v3641 = vpop.f32.mrb[0].mxu0
      %v3642 = vadd.f32 0.0, %v3641
      %v3643 = vpop.f32.mrb[0].mxu0
      %v3644 = vpop.f32.mrb[0].mxu0
      %v3645 = vadd.f32 0.0, %v3644
      %v3646 = vpop.f32.mrb[0].mxu0
      %3647 = vmatprep.mubr.bf16.mxu0 0
      %3648 = vmatmul.mubr.bf16.gmra.mrb[0].mxu0 %v3540
      %v3649 = vpop.f32.mrb[0].mxu0
      %v3650 = vadd.f32 0.0, %v3649
      %v3651 = vpop.f32.mrb[0].mxu0
      %v3652 = vpop.f32.mrb[0].mxu0
      %v3653 = vadd.f32 0.0, %v3652
      %v3654 = vpop.f32.mrb[0].mxu0
      %3655 = vmatprep.mubr.bf16.mxu0 0
      %3656 = vmatmul.mubr.bf16.gmra.mrb[0].mxu0 %v3543
      %v3657 = vpop.f32.mrb[0].mxu0
      %v3658 = vadd.f32 0.0, %v3657
      %v3659 = vpop.f32.mrb[0].mxu0
      %v3660 = vpop.f32.mrb[0].mxu0
      %v3661 = vadd.f32 0.0, %v3660
      %v3662 = vpop.f32.mrb[0].mxu0
      %3663 = vmatprep.mubr.bf16.mxu0 0
      %3664 = vmatmul.mubr.bf16.gmra.mrb[0].mxu0 %v3546
      %v3665 = vpop.f32.mrb[0].mxu0
      %v3666 = vadd.f32 0.0, %v3665
      %v3667 = vpop.f32.mrb[0].mxu0
      %v3668 = vpop.f32.mrb[0].mxu0
      %v3669 = vadd.f32 0.0, %v3668
      %v3670 = vpop.f32.mrb[0].mxu0
      %3671 = vmatprep.mubr.bf16.mxu0 0
      %3672 = vmatmul.mubr.bf16.gmra.mrb[0].mxu0 %v3549
      %v3673 = vpop.f32.mrb[0].mxu0
      %v3674 = vadd.f32 0.0, %v3673
      %v3675 = vpop.f32.mrb[0].mxu0
      %v3676 = vpop.f32.mrb[0].mxu0
      %v3677 = vadd.f32 0.0, %v3676
      %v3678 = vpop.f32.mrb[0].mxu0
      %3679 = vmatprep.mubr.bf16.mxu0 0
      %3680 = vmatmul.mubr.bf16.gmra.mrb[0].mxu0 %v3552
      %v3681 = vpop.f32.mrb[0].mxu0
      %v3682 = vadd.f32 0.0, %v3681
      %v3683 = vpop.f32.mrb[0].mxu0
      %v3684 = vpop.f32.mrb[0].mxu0
      %v3685 = vadd.f32 0.0, %v3684
      %v3686 = vpop.f32.mrb[0].mxu0
      %3687 = vmatprep.mubr.bf16.mxu0 0
      %3688 = vmatmul.mubr.bf16.gmra.mrb[0].mxu0 %v3555
      %v3689 = vpop.f32.mrb[0].mxu0
      %v3690 = vadd.f32 0.0, %v3689
      %v3691 = vpop.f32.mrb[0].mxu0
      %v3692 = vpop.f32.mrb[0].mxu0
      %v3693 = vadd.f32 0.0, %v3692
      %v3694 = vpop.f32.mrb[0].mxu0
      %3695 = vmatprep.mubr.bf16.mxu0 0
      %3696 = vmatmul.mubr.bf16.gmra.mrb[0].mxu0 %v3558
      %v3697 = vpop.f32.mrb[0].mxu0
      %v3698 = vadd.f32 0.0, %v3697
      %v3699 = vpop.f32.mrb[0].mxu0
      %v3700 = vpop.f32.mrb[0].mxu0
      %v3701 = vadd.f32 0.0, %v3700
      %v3702 = vpop.f32.mrb[0].mxu0
      %3703 = vmatprep.mubr.bf16.mxu0 0
      %3704 = vmatmul.mubr.bf16.gmra.mrb[0].mxu0 %v3561
      %v3705 = vpop.f32.mrb[0].mxu0
      %v3706 = vadd.f32 0.0, %v3705
      %v3707 = vpop.f32.mrb[0].mxu0
      %v3708 = vpop.f32.mrb[0].mxu0
      %v3709 = vadd.f32 0.0, %v3708
      %v3710 = vpop.f32.mrb[0].mxu0
      %3711 = vmatprep.mubr.bf16.mxu0 0
      %3712 = vmatmul.mubr.bf16.gmra.mrb[0].mxu0 %v3564
      %v3713 = vpop.f32.mrb[0].mxu0
      %v3714 = vadd.f32 0.0, %v3713
      %v3715 = vpop.f32.mrb[0].mxu0
      %v3716 = vpop.f32.mrb[0].mxu0
      %v3717 = vadd.f32 0.0, %v3716
      %v3718 = vpop.f32.mrb[0].mxu0
      %3719 = vmatprep.mubr.bf16.mxu0 0
      %3720 = vmatmul.mubr.bf16.gmra.mrb[0].mxu0 %v3567
      %v3721 = vpop.f32.mrb[0].mxu0
      %v3722 = vadd.f32 0.0, %v3721
      %v3723 = vpop.f32.mrb[0].mxu0
      %v3724 = vpop.f32.mrb[0].mxu0
      %v3725 = vadd.f32 0.0, %v3724
      %v3726 = vpop.f32.mrb[0].mxu0
      %3727 = vmatprep.mubr.bf16.mxu0 0
      %3728 = vmatmul.mubr.bf16.gmra.mrb[0].mxu0 %v3570
      %v3729 = vpop.f32.mrb[0].mxu0
      %v3730 = vadd.f32 0.0, %v3729
      %v3731 = vpop.f32.mrb[0].mxu0
      %v3732 = vpop.f32.mrb[0].mxu0
      %v3733 = vadd.f32 0.0, %v3732
      %v3734 = vpop.f32.mrb[0].mxu0
      %3735 = vdwg.mxu0
      %v3736 = vadd.f32 %v3377, %v3610
      %v3737 = vadd.f32 %v3378, %v3613
      %v3738 = vadd.f32 %v3379, %v3618
      %v3739 = vadd.f32 %v3380, %v3621
      %v3740 = vadd.f32 %v3381, %v3626
      %v3741 = vadd.f32 %v3382, %v3629
      %v3742 = vadd.f32 %v3383, %v3634
      %v3743 = vadd.f32 %v3384, %v3637
      %v3744 = vadd.f32 %v3385, %v3642
      %v3745 = vadd.f32 %v3386, %v3645
      %v3746 = vadd.f32 %v3387, %v3650
      %v3747 = vadd.f32 %v3388, %v3653
      %v3748 = vadd.f32 %v3389, %v3658
      %v3749 = vadd.f32 %v3390, %v3661
      %v3750 = vadd.f32 %v3391, %v3666
      %v3751 = vadd.f32 %v3392, %v3669
      %v3752 = vadd.f32 %v3393, %v3674
      %v3753 = vadd.f32 %v3394, %v3677
      %v3754 = vadd.f32 %v3395, %v3682
      %v3755 = vadd.f32 %v3396, %v3685
      %v3756 = vadd.f32 %v3397, %v3690
      %v3757 = vadd.f32 %v3398, %v3693
      %v3758 = vadd.f32 %v3399, %v3698
      %v3759 = vadd.f32 %v3400, %v3701
      %v3760 = vadd.f32 %v3401, %v3706
      %v3761 = vadd.f32 %v3402, %v3709
      %v3762 = vadd.f32 %v3403, %v3714
      %v3763 = vadd.f32 %v3404, %v3717
      %v3764 = vadd.f32 %v3405, %v3722
      %v3765 = vadd.f32 %v3406, %v3725
      %v3766 = vadd.f32 %v3407, %v3730
      %v3767 = vadd.f32 %v3408, %v3733
      %v3768 = vld [vmem:[%s3050] sm:$0xf]
      %v3769 = vld [vmem:[%s3050 + $0x4] sm:$0xf]
      %v3770 = vld [vmem:[%s3050 + $0x8] sm:$0x1]
      %v3771 = vld [vmem:[%s3050 + $0xc] sm:$0xf]
      %v3772 = vld [vmem:[%s3050 + $0x10] sm:$0xf]
      %v3773 = vld [vmem:[%s3050 + $0x14] sm:$0x1]
      %v3774 = vld [vmem:[%s3050 + $0x18] sm:$0xf]
      %v3775 = vld [vmem:[%s3050 + $0x1c] sm:$0xf]
      %v3776 = vld [vmem:[%s3050 + $0x20] sm:$0x1]
      %v3777 = vld [vmem:[%s3050 + $0x24] sm:$0xf]
      %v3778 = vld [vmem:[%s3050 + $0x28] sm:$0xf]
      %v3779 = vld [vmem:[%s3050 + $0x2c] sm:$0x1]
      %v3780 = vld [vmem:[%s3050 + $0x30] sm:$0xf]
      %v3781 = vld [vmem:[%s3050 + $0x34] sm:$0xf]
      %v3782 = vld [vmem:[%s3050 + $0x38] sm:$0x1]
      %v3783 = vld [vmem:[%s3050 + $0x3c] sm:$0xf]
      %v3784 = vld [vmem:[%s3050 + $0x40] sm:$0xf]
      %v3785 = vld [vmem:[%s3050 + $0x44] sm:$0x1]
      %v3786 = vld [vmem:[%s3050 + $0x48] sm:$0xf]
      %v3787 = vld [vmem:[%s3050 + $0x4c] sm:$0xf]
      %v3788 = vld [vmem:[%s3050 + $0x50] sm:$0x1]
      %v3789 = vld [vmem:[%s3050 + $0x54] sm:$0xf]
      %v3790 = vld [vmem:[%s3050 + $0x58] sm:$0xf]
      %v3791 = vld [vmem:[%s3050 + $0x5c] sm:$0x1]
      %v3792 = vld [vmem:[%s3050 + $0x60] sm:$0xf]
      %v3793 = vld [vmem:[%s3050 + $0x64] sm:$0xf]
      %v3794 = vld [vmem:[%s3050 + $0x68] sm:$0x1]
      %v3795 = vld [vmem:[%s3050 + $0x6c] sm:$0xf]
      %v3796 = vld [vmem:[%s3050 + $0x70] sm:$0xf]
      %v3797 = vld [vmem:[%s3050 + $0x74] sm:$0x1]
      %v3798 = vld [vmem:[%s3050 + $0x78] sm:$0xf]
      %v3799 = vld [vmem:[%s3050 + $0x7c] sm:$0xf]
      %v3800 = vld [vmem:[%s3050 + $0x80] sm:$0x1]
      %v3801 = vld [vmem:[%s3050 + $0x84] sm:$0xf]
      %v3802 = vld [vmem:[%s3050 + $0x88] sm:$0xf]
      %v3803 = vld [vmem:[%s3050 + $0x8c] sm:$0x1]
      %v3804 = vld [vmem:[%s3050 + $0x90] sm:$0xf]
      %v3805 = vld [vmem:[%s3050 + $0x94] sm:$0xf]
      %v3806 = vld [vmem:[%s3050 + $0x98] sm:$0x1]
      %v3807 = vld [vmem:[%s3050 + $0x9c] sm:$0xf]
      %v3808 = vld [vmem:[%s3050 + $0xa0] sm:$0xf]
      %v3809 = vld [vmem:[%s3050 + $0xa4] sm:$0x1]
      %v3810 = vld [vmem:[%s3050 + $0xa8] sm:$0xf]
      %v3811 = vld [vmem:[%s3050 + $0xac] sm:$0xf]
      %v3812 = vld [vmem:[%s3050 + $0xb0] sm:$0x1]
      %v3813 = vld [vmem:[%s3050 + $0xb4] sm:$0xf]
      %v3814 = vld [vmem:[%s3050 + $0xb8] sm:$0xf]
      %v3815 = vld [vmem:[%s3050 + $0xbc] sm:$0x1]
      %v3817 = vshrl.u32 %v3768, 16
      %v3819 = vrot.slane %v3817, 4
      %v3820 = vshll.u32 %v3768, 16
      %v3822 = vrot.slane %v3820, 5
      %v3823 = vor.u32 %v3819, %v3822
      %v3824 = vrot.slane %v3823, 4
      %v3826 = vshll.u32 %v3769, 16
      %v3828 = vrot.slane %v3826, 5
      %v3829 = vsel %vm927, %v3824, %v3828
      %v3830 = vshrl.u32 %v3769, 16
      %v3832 = vrot.slane %v3830, 4
      %v3833 = vor.u32 %v3832, %v3828
      %v3834 = vrot.slane %v3833, 4
      %v3836 = vshll.u32 %v3770, 16
      %v3838 = vrot.slane %v3836, 5
      %v3839 = vsel %vm927, %v3834, %v3838
      %v3841 = vshrl.u32 %v3771, 16
      %v3843 = vrot.slane %v3841, 4
      %v3844 = vshll.u32 %v3771, 16
      %v3846 = vrot.slane %v3844, 5
      %v3847 = vor.u32 %v3843, %v3846
      %v3848 = vrot.slane %v3847, 4
      %v3850 = vshll.u32 %v3772, 16
      %v3852 = vrot.slane %v3850, 5
      %v3853 = vsel %vm927, %v3848, %v3852
      %v3854 = vshrl.u32 %v3772, 16
      %v3856 = vrot.slane %v3854, 4
      %v3857 = vor.u32 %v3856, %v3852
      %v3858 = vrot.slane %v3857, 4
      %v3860 = vshll.u32 %v3773, 16
      %v3862 = vrot.slane %v3860, 5
      %v3863 = vsel %vm927, %v3858, %v3862
      %v3865 = vshrl.u32 %v3774, 16
      %v3867 = vrot.slane %v3865, 4
      %v3868 = vshll.u32 %v3774, 16
      %v3870 = vrot.slane %v3868, 5
      %v3871 = vor.u32 %v3867, %v3870
      %v3872 = vrot.slane %v3871, 4
      %v3874 = vshll.u32 %v3775, 16
      %v3876 = vrot.slane %v3874, 5
      %v3877 = vsel %vm927, %v3872, %v3876
      %v3878 = vshrl.u32 %v3775, 16
      %v3880 = vrot.slane %v3878, 4
      %v3881 = vor.u32 %v3880, %v3876
      %v3882 = vrot.slane %v3881, 4
      %v3884 = vshll.u32 %v3776, 16
      %v3886 = vrot.slane %v3884, 5
      %v3887 = vsel %vm927, %v3882, %v3886
      %v3889 = vshrl.u32 %v3777, 16
      %v3891 = vrot.slane %v3889, 4
      %v3892 = vshll.u32 %v3777, 16
      %v3894 = vrot.slane %v3892, 5
      %v3895 = vor.u32 %v3891, %v3894
      %v3896 = vrot.slane %v3895, 4
      %v3898 = vshll.u32 %v3778, 16
      %v3900 = vrot.slane %v3898, 5
      %v3901 = vsel %vm927, %v3896, %v3900
      %v3902 = vshrl.u32 %v3778, 16
      %v3904 = vrot.slane %v3902, 4
      %v3905 = vor.u32 %v3904, %v3900
      %v3906 = vrot.slane %v3905, 4
      %v3908 = vshll.u32 %v3779, 16
      %v3910 = vrot.slane %v3908, 5
      %v3911 = vsel %vm927, %v3906, %v3910
      %v3913 = vshrl.u32 %v3780, 16
      %v3915 = vrot.slane %v3913, 4
      %v3916 = vshll.u32 %v3780, 16
      %v3918 = vrot.slane %v3916, 5
      %v3919 = vor.u32 %v3915, %v3918
      %v3920 = vrot.slane %v3919, 4
      %v3922 = vshll.u32 %v3781, 16
      %v3924 = vrot.slane %v3922, 5
      %v3925 = vsel %vm927, %v3920, %v3924
      %v3926 = vshrl.u32 %v3781, 16
      %v3928 = vrot.slane %v3926, 4
      %v3929 = vor.u32 %v3928, %v3924
      %v3930 = vrot.slane %v3929, 4
      %v3932 = vshll.u32 %v3782, 16
      %v3934 = vrot.slane %v3932, 5
      %v3935 = vsel %vm927, %v3930, %v3934
      %v3937 = vshrl.u32 %v3783, 16
      %v3939 = vrot.slane %v3937, 4
      %v3940 = vshll.u32 %v3783, 16
      %v3942 = vrot.slane %v3940, 5
      %v3943 = vor.u32 %v3939, %v3942
      %v3944 = vrot.slane %v3943, 4
      %v3946 = vshll.u32 %v3784, 16
      %v3948 = vrot.slane %v3946, 5
      %v3949 = vsel %vm927, %v3944, %v3948
      %v3950 = vshrl.u32 %v3784, 16
      %v3952 = vrot.slane %v3950, 4
      %v3953 = vor.u32 %v3952, %v3948
      %v3954 = vrot.slane %v3953, 4
      %v3956 = vshll.u32 %v3785, 16
      %v3958 = vrot.slane %v3956, 5
      %v3959 = vsel %vm927, %v3954, %v3958
      %v3961 = vshrl.u32 %v3786, 16
      %v3963 = vrot.slane %v3961, 4
      %v3964 = vshll.u32 %v3786, 16
      %v3966 = vrot.slane %v3964, 5
      %v3967 = vor.u32 %v3963, %v3966
      %v3968 = vrot.slane %v3967, 4
      %v3970 = vshll.u32 %v3787, 16
      %v3972 = vrot.slane %v3970, 5
      %v3973 = vsel %vm927, %v3968, %v3972
      %v3974 = vshrl.u32 %v3787, 16
      %v3976 = vrot.slane %v3974, 4
      %v3977 = vor.u32 %v3976, %v3972
      %v3978 = vrot.slane %v3977, 4
      %v3980 = vshll.u32 %v3788, 16
      %v3982 = vrot.slane %v3980, 5
      %v3983 = vsel %vm927, %v3978, %v3982
      %v3985 = vshrl.u32 %v3789, 16
      %v3987 = vrot.slane %v3985, 4
      %v3988 = vshll.u32 %v3789, 16
      %v3990 = vrot.slane %v3988, 5
      %v3991 = vor.u32 %v3987, %v3990
      %v3992 = vrot.slane %v3991, 4
      %v3994 = vshll.u32 %v3790, 16
      %v3996 = vrot.slane %v3994, 5
      %v3997 = vsel %vm927, %v3992, %v3996
      %v3998 = vshrl.u32 %v3790, 16
      %v4000 = vrot.slane %v3998, 4
      %v4001 = vor.u32 %v4000, %v3996
      %v4002 = vrot.slane %v4001, 4
      %v4004 = vshll.u32 %v3791, 16
      %v4006 = vrot.slane %v4004, 5
      %v4007 = vsel %vm927, %v4002, %v4006
      %v4009 = vshrl.u32 %v3792, 16
      %v4011 = vrot.slane %v4009, 4
      %v4012 = vshll.u32 %v3792, 16
      %v4014 = vrot.slane %v4012, 5
      %v4015 = vor.u32 %v4011, %v4014
      %v4016 = vrot.slane %v4015, 4
      %v4018 = vshll.u32 %v3793, 16
      %v4020 = vrot.slane %v4018, 5
      %v4021 = vsel %vm927, %v4016, %v4020
      %v4022 = vshrl.u32 %v3793, 16
      %v4024 = vrot.slane %v4022, 4
      %v4025 = vor.u32 %v4024, %v4020
      %v4026 = vrot.slane %v4025, 4
      %v4028 = vshll.u32 %v3794, 16
      %v4030 = vrot.slane %v4028, 5
      %v4031 = vsel %vm927, %v4026, %v4030
      %v4033 = vshrl.u32 %v3795, 16
      %v4035 = vrot.slane %v4033, 4
      %v4036 = vshll.u32 %v3795, 16
      %v4038 = vrot.slane %v4036, 5
      %v4039 = vor.u32 %v4035, %v4038
      %v4040 = vrot.slane %v4039, 4
      %v4042 = vshll.u32 %v3796, 16
      %v4044 = vrot.slane %v4042, 5
      %v4045 = vsel %vm927, %v4040, %v4044
      %v4046 = vshrl.u32 %v3796, 16
      %v4048 = vrot.slane %v4046, 4
      %v4049 = vor.u32 %v4048, %v4044
      %v4050 = vrot.slane %v4049, 4
      %v4052 = vshll.u32 %v3797, 16
      %v4054 = vrot.slane %v4052, 5
      %v4055 = vsel %vm927, %v4050, %v4054
      %v4057 = vshrl.u32 %v3798, 16
      %v4059 = vrot.slane %v4057, 4
      %v4060 = vshll.u32 %v3798, 16
      %v4062 = vrot.slane %v4060, 5
      %v4063 = vor.u32 %v4059, %v4062
      %v4064 = vrot.slane %v4063, 4
      %v4066 = vshll.u32 %v3799, 16
      %v4068 = vrot.slane %v4066, 5
      %v4069 = vsel %vm927, %v4064, %v4068
      %v4070 = vshrl.u32 %v3799, 16
      %v4072 = vrot.slane %v4070, 4
      %v4073 = vor.u32 %v4072, %v4068
      %v4074 = vrot.slane %v4073, 4
      %v4076 = vshll.u32 %v3800, 16
      %v4078 = vrot.slane %v4076, 5
      %v4079 = vsel %vm927, %v4074, %v4078
      %v4081 = vshrl.u32 %v3801, 16
      %v4083 = vrot.slane %v4081, 4
      %v4084 = vshll.u32 %v3801, 16
      %v4086 = vrot.slane %v4084, 5
      %v4087 = vor.u32 %v4083, %v4086
      %v4088 = vrot.slane %v4087, 4
      %v4090 = vshll.u32 %v3802, 16
      %v4092 = vrot.slane %v4090, 5
      %v4093 = vsel %vm927, %v4088, %v4092
      %v4094 = vshrl.u32 %v3802, 16
      %v4096 = vrot.slane %v4094, 4
      %v4097 = vor.u32 %v4096, %v4092
      %v4098 = vrot.slane %v4097, 4
      %v4100 = vshll.u32 %v3803, 16
      %v4102 = vrot.slane %v4100, 5
      %v4103 = vsel %vm927, %v4098, %v4102
      %v4105 = vshrl.u32 %v3804, 16
      %v4107 = vrot.slane %v4105, 4
      %v4108 = vshll.u32 %v3804, 16
      %v4110 = vrot.slane %v4108, 5
      %v4111 = vor.u32 %v4107, %v4110
      %v4112 = vrot.slane %v4111, 4
      %v4114 = vshll.u32 %v3805, 16
      %v4116 = vrot.slane %v4114, 5
      %v4117 = vsel %vm927, %v4112, %v4116
      %v4118 = vshrl.u32 %v3805, 16
      %v4120 = vrot.slane %v4118, 4
      %v4121 = vor.u32 %v4120, %v4116
      %v4122 = vrot.slane %v4121, 4
      %v4124 = vshll.u32 %v3806, 16
      %v4126 = vrot.slane %v4124, 5
      %v4127 = vsel %vm927, %v4122, %v4126
      %v4129 = vshrl.u32 %v3807, 16
      %v4131 = vrot.slane %v4129, 4
      %v4132 = vshll.u32 %v3807, 16
      %v4134 = vrot.slane %v4132, 5
      %v4135 = vor.u32 %v4131, %v4134
      %v4136 = vrot.slane %v4135, 4
      %v4138 = vshll.u32 %v3808, 16
      %v4140 = vrot.slane %v4138, 5
      %v4141 = vsel %vm927, %v4136, %v4140
      %v4142 = vshrl.u32 %v3808, 16
      %v4144 = vrot.slane %v4142, 4
      %v4145 = vor.u32 %v4144, %v4140
      %v4146 = vrot.slane %v4145, 4
      %v4148 = vshll.u32 %v3809, 16
      %v4150 = vrot.slane %v4148, 5
      %v4151 = vsel %vm927, %v4146, %v4150
      %v4153 = vshrl.u32 %v3810, 16
      %v4155 = vrot.slane %v4153, 4
      %v4156 = vshll.u32 %v3810, 16
      %v4158 = vrot.slane %v4156, 5
      %v4159 = vor.u32 %v4155, %v4158
      %v4160 = vrot.slane %v4159, 4
      %v4162 = vshll.u32 %v3811, 16
      %v4164 = vrot.slane %v4162, 5
      %v4165 = vsel %vm927, %v4160, %v4164
      %v4166 = vshrl.u32 %v3811, 16
      %v4168 = vrot.slane %v4166, 4
      %v4169 = vor.u32 %v4168, %v4164
      %v4170 = vrot.slane %v4169, 4
      %v4172 = vshll.u32 %v3812, 16
      %v4174 = vrot.slane %v4172, 5
      %v4175 = vsel %vm927, %v4170, %v4174
      %v4177 = vshrl.u32 %v3813, 16
      %v4179 = vrot.slane %v4177, 4
      %v4180 = vshll.u32 %v3813, 16
      %v4182 = vrot.slane %v4180, 5
      %v4183 = vor.u32 %v4179, %v4182
      %v4184 = vrot.slane %v4183, 4
      %v4186 = vshll.u32 %v3814, 16
      %v4188 = vrot.slane %v4186, 5
      %v4189 = vsel %vm927, %v4184, %v4188
      %v4190 = vshrl.u32 %v3814, 16
      %v4192 = vrot.slane %v4190, 4
      %v4193 = vor.u32 %v4192, %v4188
      %v4194 = vrot.slane %v4193, 4
      %v4196 = vshll.u32 %v3815, 16
      %v4198 = vrot.slane %v4196, 5
      %v4199 = vsel %vm927, %v4194, %v4198
      %s4200 = scalar_lea.vmem %s210, 32
      %v4201 = vld [vmem:[%s4200] sm:$0xf]
      %v4202 = vunpack.c.l.b16 %v3829
      %v4203 = vunpack.c.l.b16 %v3839
      %v4204 = vunpack.c.l.b16 %v3853
      %v4205 = vunpack.c.l.b16 %v3863
      %v4206 = vunpack.c.l.b16 %v3877
      %v4207 = vunpack.c.l.b16 %v3887
      %v4208 = vunpack.c.l.b16 %v3901
      %v4209 = vunpack.c.l.b16 %v3911
      %v4210 = vunpack.c.l.b16 %v3925
      %v4211 = vunpack.c.l.b16 %v3935
      %v4212 = vunpack.c.l.b16 %v3949
      %v4213 = vunpack.c.l.b16 %v3959
      %v4214 = vunpack.c.l.b16 %v3973
      %v4215 = vunpack.c.l.b16 %v3983
      %v4216 = vunpack.c.l.b16 %v3997
      %v4217 = vunpack.c.l.b16 %v4007
      %v4218 = vunpack.c.l.b16 %v4021
      %v4219 = vunpack.c.l.b16 %v4031
      %v4220 = vunpack.c.l.b16 %v4045
      %v4221 = vunpack.c.l.b16 %v4055
      %v4222 = vunpack.c.l.b16 %v4069
      %v4223 = vunpack.c.l.b16 %v4079
      %v4224 = vunpack.c.l.b16 %v4093
      %v4225 = vunpack.c.l.b16 %v4103
      %v4226 = vunpack.c.l.b16 %v4117
      %v4227 = vunpack.c.l.b16 %v4127
      %v4228 = vunpack.c.l.b16 %v4141
      %v4229 = vunpack.c.l.b16 %v4151
      %v4230 = vunpack.c.l.b16 %v4165
      %v4231 = vunpack.c.l.b16 %v4175
      %v4232 = vunpack.c.l.b16 %v4189
      %v4233 = vunpack.c.l.b16 %v4199
      %v4234 = vpack.c.b16 %v4203, %v4202
      %v4235 = vpack.c.b16 %v4205, %v4204
      %v4236 = vpack.c.b16 %v4207, %v4206
      %v4237 = vpack.c.b16 %v4209, %v4208
      %v4238 = vpack.c.b16 %v4211, %v4210
      %v4239 = vpack.c.b16 %v4213, %v4212
      %v4240 = vpack.c.b16 %v4215, %v4214
      %v4241 = vpack.c.b16 %v4217, %v4216
      %v4242 = vpack.c.b16 %v4219, %v4218
      %v4243 = vpack.c.b16 %v4221, %v4220
      %v4244 = vpack.c.b16 %v4223, %v4222
      %v4245 = vpack.c.b16 %v4225, %v4224
      %v4246 = vpack.c.b16 %v4227, %v4226
      %v4247 = vpack.c.b16 %v4229, %v4228
      %v4248 = vpack.c.b16 %v4231, %v4230
      %v4249 = vpack.c.b16 %v4233, %v4232
      %v4251 = vsel %vm371, %v4234, 0
      %v4254 = vsel %vm371, %v4235, 0
      %v4257 = vsel %vm371, %v4236, 0
      %v4260 = vsel %vm371, %v4237, 0
      %v4263 = vsel %vm371, %v4238, 0
      %v4266 = vsel %vm371, %v4239, 0
      %v4269 = vsel %vm371, %v4240, 0
      %v4272 = vsel %vm371, %v4241, 0
      %v4275 = vsel %vm371, %v4242, 0
      %v4278 = vsel %vm371, %v4243, 0
      %v4281 = vsel %vm371, %v4244, 0
      %v4284 = vsel %vm371, %v4245, 0
      %v4287 = vsel %vm371, %v4246, 0
      %v4290 = vsel %vm371, %v4247, 0
      %v4293 = vsel %vm371, %v4248, 0
      %v4296 = vsel %vm371, %v4249, 0
      %v4299 = vsel %vm420, %v4201, 0
      %4301 = vmatprep.subr.bf16.mxu0 0
      %4302 = vmatpush1.bf16.msra.mxu0 %v4299
      %4303 = vmatprep.subr.bf16.mxu0 0
      %4304 = vmatpush1.bf16.msra.mxu0 0
      %4305 = vmatprep.subr.bf16.mxu0 0
      %4306 = vmatpush1.bf16.msra.mxu0 0
      %4307 = vmatprep.subr.bf16.mxu0 0
      %4308 = vmatpush1.bf16.msra.mxu0 0
      %4309 = vmatprep.subr.bf16.mxu0 0
      %4310 = vmatpush1.bf16.msra.mxu0 0
      %4311 = vmatprep.subr.bf16.mxu0 0
      %4312 = vmatpush1.bf16.msra.mxu0 0
      %4313 = vmatprep.subr.bf16.mxu0 0
      %4314 = vmatpush1.bf16.msra.mxu0 0
      %4315 = vmatprep.subr.bf16.mxu0 0
      %4316 = vmatpush1.bf16.msra.mxu0 0
      %4317 = vmatprep.subr.bf16.mxu0 0
      %4318 = vmatpush1.bf16.msra.mxu0 0
      %4319 = vmatprep.subr.bf16.mxu0 0
      %4320 = vmatpush1.bf16.msra.mxu0 0
      %4321 = vmatprep.subr.bf16.mxu0 0
      %4322 = vmatpush1.bf16.msra.mxu0 0
      %4323 = vmatprep.subr.bf16.mxu0 0
      %4324 = vmatpush1.bf16.msra.mxu0 0
      %4325 = vmatprep.subr.bf16.mxu0 0
      %4326 = vmatpush1.bf16.msra.mxu0 0
      %4327 = vmatprep.subr.bf16.mxu0 0
      %4328 = vmatpush1.bf16.msra.mxu0 0
      %4329 = vmatprep.subr.bf16.mxu0 0
      %4330 = vmatpush1.bf16.msra.mxu0 0
      %4331 = vmatprep.subr.bf16.mxu0 0
      %4332 = vmatpush1.bf16.msra.mxu0 0
      %4333 = vmatprep.mubr.bf16.mxu0 0
      %4334 = vmatmul.mubr.bf16.gmra.mrb[0].mxu0 %v4251
      %v4335 = vpop.f32.mrb[0].mxu0
      %v4336 = vadd.f32 0.0, %v4335
      %v4337 = vpop.f32.mrb[0].mxu0
      %v4338 = vpop.f32.mrb[0].mxu0
      %v4339 = vadd.f32 0.0, %v4338
      %v4340 = vpop.f32.mrb[0].mxu0
      %4341 = vmatprep.mubr.bf16.mxu0 0
      %4342 = vmatmul.mubr.bf16.gmra.mrb[0].mxu0 %v4254
      %v4343 = vpop.f32.mrb[0].mxu0
      %v4344 = vadd.f32 0.0, %v4343
      %v4345 = vpop.f32.mrb[0].mxu0
      %v4346 = vpop.f32.mrb[0].mxu0
      %v4347 = vadd.f32 0.0, %v4346
      %v4348 = vpop.f32.mrb[0].mxu0
      %4349 = vmatprep.mubr.bf16.mxu0 0
      %4350 = vmatmul.mubr.bf16.gmra.mrb[0].mxu0 %v4257
      %v4351 = vpop.f32.mrb[0].mxu0
      %v4352 = vadd.f32 0.0, %v4351
      %v4353 = vpop.f32.mrb[0].mxu0
      %v4354 = vpop.f32.mrb[0].mxu0
      %v4355 = vadd.f32 0.0, %v4354
      %v4356 = vpop.f32.mrb[0].mxu0
      %4357 = vmatprep.mubr.bf16.mxu0 0
      %4358 = vmatmul.mubr.bf16.gmra.mrb[0].mxu0 %v4260
      %v4359 = vpop.f32.mrb[0].mxu0
      %v4360 = vadd.f32 0.0, %v4359
      %v4361 = vpop.f32.mrb[0].mxu0
      %v4362 = vpop.f32.mrb[0].mxu0
      %v4363 = vadd.f32 0.0, %v4362
      %v4364 = vpop.f32.mrb[0].mxu0
      %4365 = vmatprep.mubr.bf16.mxu0 0
      %4366 = vmatmul.mubr.bf16.gmra.mrb[0].mxu0 %v4263
      %v4367 = vpop.f32.mrb[0].mxu0
      %v4368 = vadd.f32 0.0, %v4367
      %v4369 = vpop.f32.mrb[0].mxu0
      %v4370 = vpop.f32.mrb[0].mxu0
      %v4371 = vadd.f32 0.0, %v4370
      %v4372 = vpop.f32.mrb[0].mxu0
      %4373 = vmatprep.mubr.bf16.mxu0 0
      %4374 = vmatmul.mubr.bf16.gmra.mrb[0].mxu0 %v4266
      %v4375 = vpop.f32.mrb[0].mxu0
      %v4376 = vadd.f32 0.0, %v4375
      %v4377 = vpop.f32.mrb[0].mxu0
      %v4378 = vpop.f32.mrb[0].mxu0
      %v4379 = vadd.f32 0.0, %v4378
      %v4380 = vpop.f32.mrb[0].mxu0
      %4381 = vmatprep.mubr.bf16.mxu0 0
      %4382 = vmatmul.mubr.bf16.gmra.mrb[0].mxu0 %v4269
      %v4383 = vpop.f32.mrb[0].mxu0
      %v4384 = vadd.f32 0.0, %v4383
      %v4385 = vpop.f32.mrb[0].mxu0
      %v4386 = vpop.f32.mrb[0].mxu0
      %v4387 = vadd.f32 0.0, %v4386
      %v4388 = vpop.f32.mrb[0].mxu0
      %4389 = vmatprep.mubr.bf16.mxu0 0
      %4390 = vmatmul.mubr.bf16.gmra.mrb[0].mxu0 %v4272
      %v4391 = vpop.f32.mrb[0].mxu0
      %v4392 = vadd.f32 0.0, %v4391
      %v4393 = vpop.f32.mrb[0].mxu0
      %v4394 = vpop.f32.mrb[0].mxu0
      %v4395 = vadd.f32 0.0, %v4394
      %v4396 = vpop.f32.mrb[0].mxu0
      %4397 = vmatprep.mubr.bf16.mxu0 0
      %4398 = vmatmul.mubr.bf16.gmra.mrb[0].mxu0 %v4275
      %v4399 = vpop.f32.mrb[0].mxu0
      %v4400 = vadd.f32 0.0, %v4399
      %v4401 = vpop.f32.mrb[0].mxu0
      %v4402 = vpop.f32.mrb[0].mxu0
      %v4403 = vadd.f32 0.0, %v4402
      %v4404 = vpop.f32.mrb[0].mxu0
      %4405 = vmatprep.mubr.bf16.mxu0 0
      %4406 = vmatmul.mubr.bf16.gmra.mrb[0].mxu0 %v4278
      %v4407 = vpop.f32.mrb[0].mxu0
      %v4408 = vadd.f32 0.0, %v4407
      %v4409 = vpop.f32.mrb[0].mxu0
      %v4410 = vpop.f32.mrb[0].mxu0
      %v4411 = vadd.f32 0.0, %v4410
      %v4412 = vpop.f32.mrb[0].mxu0
      %4413 = vmatprep.mubr.bf16.mxu0 0
      %4414 = vmatmul.mubr.bf16.gmra.mrb[0].mxu0 %v4281
      %v4415 = vpop.f32.mrb[0].mxu0
      %v4416 = vadd.f32 0.0, %v4415
      %v4417 = vpop.f32.mrb[0].mxu0
      %v4418 = vpop.f32.mrb[0].mxu0
      %v4419 = vadd.f32 0.0, %v4418
      %v4420 = vpop.f32.mrb[0].mxu0
      %4421 = vmatprep.mubr.bf16.mxu0 0
      %4422 = vmatmul.mubr.bf16.gmra.mrb[0].mxu0 %v4284
      %v4423 = vpop.f32.mrb[0].mxu0
      %v4424 = vadd.f32 0.0, %v4423
      %v4425 = vpop.f32.mrb[0].mxu0
      %v4426 = vpop.f32.mrb[0].mxu0
      %v4427 = vadd.f32 0.0, %v4426
      %v4428 = vpop.f32.mrb[0].mxu0
      %4429 = vmatprep.mubr.bf16.mxu0 0
      %4430 = vmatmul.mubr.bf16.gmra.mrb[0].mxu0 %v4287
      %v4431 = vpop.f32.mrb[0].mxu0
      %v4432 = vadd.f32 0.0, %v4431
      %v4433 = vpop.f32.mrb[0].mxu0
      %v4434 = vpop.f32.mrb[0].mxu0
      %v4435 = vadd.f32 0.0, %v4434
      %v4436 = vpop.f32.mrb[0].mxu0
      %4437 = vmatprep.mubr.bf16.mxu0 0
      %4438 = vmatmul.mubr.bf16.gmra.mrb[0].mxu0 %v4290
      %v4439 = vpop.f32.mrb[0].mxu0
      %v4440 = vadd.f32 0.0, %v4439
      %v4441 = vpop.f32.mrb[0].mxu0
      %v4442 = vpop.f32.mrb[0].mxu0
      %v4443 = vadd.f32 0.0, %v4442
      %v4444 = vpop.f32.mrb[0].mxu0
      %4445 = vmatprep.mubr.bf16.mxu0 0
      %4446 = vmatmul.mubr.bf16.gmra.mrb[0].mxu0 %v4293
      %v4447 = vpop.f32.mrb[0].mxu0
      %v4448 = vadd.f32 0.0, %v4447
      %v4449 = vpop.f32.mrb[0].mxu0
      %v4450 = vpop.f32.mrb[0].mxu0
      %v4451 = vadd.f32 0.0, %v4450
      %v4452 = vpop.f32.mrb[0].mxu0
      %4453 = vmatprep.mubr.bf16.mxu0 0
      %4454 = vmatmul.mubr.bf16.gmra.mrb[0].mxu0 %v4296
      %v4455 = vpop.f32.mrb[0].mxu0
      %v4456 = vadd.f32 0.0, %v4455
      %v4457 = vpop.f32.mrb[0].mxu0
      %v4458 = vpop.f32.mrb[0].mxu0
      %v4459 = vadd.f32 0.0, %v4458
      %v4460 = vpop.f32.mrb[0].mxu0
      %4461 = vdwg.mxu0
      %v4462 = vadd.f32 %v3736, %v4336
      %v4463 = vadd.f32 %v3737, %v4339
      %v4464 = vadd.f32 %v3738, %v4344
      %v4465 = vadd.f32 %v3739, %v4347
      %v4466 = vadd.f32 %v3740, %v4352
      %v4467 = vadd.f32 %v3741, %v4355
      %v4468 = vadd.f32 %v3742, %v4360
      %v4469 = vadd.f32 %v3743, %v4363
      %v4470 = vadd.f32 %v3744, %v4368
      %v4471 = vadd.f32 %v3745, %v4371
      %v4472 = vadd.f32 %v3746, %v4376
      %v4473 = vadd.f32 %v3747, %v4379
      %v4474 = vadd.f32 %v3748, %v4384
      %v4475 = vadd.f32 %v3749, %v4387
      %v4476 = vadd.f32 %v3750, %v4392
      %v4477 = vadd.f32 %v3751, %v4395
      %v4478 = vadd.f32 %v3752, %v4400
      %v4479 = vadd.f32 %v3753, %v4403
      %v4480 = vadd.f32 %v3754, %v4408
      %v4481 = vadd.f32 %v3755, %v4411
      %v4482 = vadd.f32 %v3756, %v4416
      %v4483 = vadd.f32 %v3757, %v4419
      %v4484 = vadd.f32 %v3758, %v4424
      %v4485 = vadd.f32 %v3759, %v4427
      %v4486 = vadd.f32 %v3760, %v4432
      %v4487 = vadd.f32 %v3761, %v4435
      %v4488 = vadd.f32 %v3762, %v4440
      %v4489 = vadd.f32 %v3763, %v4443
      %v4490 = vadd.f32 %v3764, %v4448
      %v4491 = vadd.f32 %v3765, %v4451
      %v4492 = vadd.f32 %v3766, %v4456
      %v4493 = vadd.f32 %v3767, %v4459
      %v4494 = vld [vmem:[%s213] sm:$0x1]
      %v4496 = vlaneseq
      %v4497 = vshrl.u32 %v4496, 7
      %v4498 = vsub.s32 0, %v4497
      %v4499 = vrot.slane %v4494, %v4498
      %v4501 = vadd.f32 %v4462, %v4499
      %v4502 = vadd.f32 %v4463, %v4499
      %v4503 = vadd.f32 %v4464, %v4499
      %v4504 = vadd.f32 %v4465, %v4499
      %v4505 = vadd.f32 %v4466, %v4499
      %v4506 = vadd.f32 %v4467, %v4499
      %v4507 = vadd.f32 %v4468, %v4499
      %v4508 = vadd.f32 %v4469, %v4499
      %v4509 = vadd.f32 %v4470, %v4499
      %v4510 = vadd.f32 %v4471, %v4499
      %v4511 = vadd.f32 %v4472, %v4499
      %v4512 = vadd.f32 %v4473, %v4499
      %v4513 = vadd.f32 %v4474, %v4499
      %v4514 = vadd.f32 %v4475, %v4499
      %v4515 = vadd.f32 %v4476, %v4499
      %v4516 = vadd.f32 %v4477, %v4499
      %v4517 = vadd.f32 %v4478, %v4499
      %v4518 = vadd.f32 %v4479, %v4499
      %v4519 = vadd.f32 %v4480, %v4499
      %v4520 = vadd.f32 %v4481, %v4499
      %v4521 = vadd.f32 %v4482, %v4499
      %v4522 = vadd.f32 %v4483, %v4499
      %v4523 = vadd.f32 %v4484, %v4499
      %v4524 = vadd.f32 %v4485, %v4499
      %v4525 = vadd.f32 %v4486, %v4499
      %v4526 = vadd.f32 %v4487, %v4499
      %v4527 = vadd.f32 %v4488, %v4499
      %v4528 = vadd.f32 %v4489, %v4499
      %v4529 = vadd.f32 %v4490, %v4499
      %v4530 = vadd.f32 %v4491, %v4499
      %v4531 = vadd.f32 %v4492, %v4499
      %v4532 = vadd.f32 %v4493, %v4499
      %v4533 = vpack.c.bf16 %v4502, %v4501
      %v4534 = vpack.c.bf16 %v4504, %v4503
      %v4535 = vpack.c.bf16 %v4506, %v4505
      %v4536 = vpack.c.bf16 %v4508, %v4507
      %v4537 = vpack.c.bf16 %v4510, %v4509
      %v4538 = vpack.c.bf16 %v4512, %v4511
      %v4539 = vpack.c.bf16 %v4514, %v4513
      %v4540 = vpack.c.bf16 %v4516, %v4515
      %v4541 = vpack.c.bf16 %v4518, %v4517
      %v4542 = vpack.c.bf16 %v4520, %v4519
      %v4543 = vpack.c.bf16 %v4522, %v4521
      %v4544 = vpack.c.bf16 %v4524, %v4523
      %v4545 = vpack.c.bf16 %v4526, %v4525
      %v4546 = vpack.c.bf16 %v4528, %v4527
      %v4547 = vpack.c.bf16 %v4530, %v4529
      %v4548 = vpack.c.bf16 %v4532, %v4531
      %v4565 = vunpack.c.l.b16 %v4533
      %v4566 = vunpack.c.h.b16 %v4533
      %v4567 = vunpack.c.l.b16 %v4534
      %v4568 = vunpack.c.h.b16 %v4534
      %v4569 = vunpack.c.l.b16 %v4535
      %v4570 = vunpack.c.h.b16 %v4535
      %v4571 = vunpack.c.l.b16 %v4536
      %v4572 = vunpack.c.h.b16 %v4536
      %v4573 = vunpack.c.l.b16 %v4537
      %v4574 = vunpack.c.h.b16 %v4537
      %v4575 = vunpack.c.l.b16 %v4538
      %v4576 = vunpack.c.h.b16 %v4538
      %v4577 = vunpack.c.l.b16 %v4539
      %v4578 = vunpack.c.h.b16 %v4539
      %v4579 = vunpack.c.l.b16 %v4540
      %v4580 = vunpack.c.h.b16 %v4540
      %v4581 = vunpack.c.l.b16 %v4541
      %v4582 = vunpack.c.h.b16 %v4541
      %v4583 = vunpack.c.l.b16 %v4542
      %v4584 = vunpack.c.h.b16 %v4542
      %v4585 = vunpack.c.l.b16 %v4543
      %v4586 = vunpack.c.h.b16 %v4543
      %v4587 = vunpack.c.l.b16 %v4544
      %v4588 = vunpack.c.h.b16 %v4544
      %v4589 = vunpack.c.l.b16 %v4545
      %v4590 = vunpack.c.h.b16 %v4545
      %v4591 = vunpack.c.l.b16 %v4546
      %v4592 = vunpack.c.h.b16 %v4546
      %v4593 = vunpack.c.l.b16 %v4547
      %v4594 = vunpack.c.h.b16 %v4547
      %v4595 = vunpack.c.l.b16 %v4548
      %v4596 = vunpack.c.h.b16 %v4548
      %v4597 = vpack.c.b16 %v4565, %v4565
      %v4598 = vpack.c.b16 %v4566, %v4566
      %v4599 = vpack.c.b16 %v4567, %v4567
      %v4600 = vpack.c.b16 %v4568, %v4568
      %v4601 = vpack.c.b16 %v4569, %v4569
      %v4602 = vpack.c.b16 %v4570, %v4570
      %v4603 = vpack.c.b16 %v4571, %v4571
      %v4604 = vpack.c.b16 %v4572, %v4572
      %v4605 = vpack.c.b16 %v4573, %v4573
      %v4606 = vpack.c.b16 %v4574, %v4574
      %v4607 = vpack.c.b16 %v4575, %v4575
      %v4608 = vpack.c.b16 %v4576, %v4576
      %v4609 = vpack.c.b16 %v4577, %v4577
      %v4610 = vpack.c.b16 %v4578, %v4578
      %v4611 = vpack.c.b16 %v4579, %v4579
      %v4612 = vpack.c.b16 %v4580, %v4580
      %v4613 = vpack.c.b16 %v4581, %v4581
      %v4614 = vpack.c.b16 %v4582, %v4582
      %v4615 = vpack.c.b16 %v4583, %v4583
      %v4616 = vpack.c.b16 %v4584, %v4584
      %v4617 = vpack.c.b16 %v4585, %v4585
      %v4618 = vpack.c.b16 %v4586, %v4586
      %v4619 = vpack.c.b16 %v4587, %v4587
      %v4620 = vpack.c.b16 %v4588, %v4588
      %v4621 = vpack.c.b16 %v4589, %v4589
      %v4622 = vpack.c.b16 %v4590, %v4590
      %v4623 = vpack.c.b16 %v4591, %v4591
      %v4624 = vpack.c.b16 %v4592, %v4592
      %v4625 = vpack.c.b16 %v4593, %v4593
      %v4626 = vpack.c.b16 %v4594, %v4594
      %v4627 = vpack.c.b16 %v4595, %v4595
      %v4628 = vpack.c.b16 %v4596, %v4596
      %vm4661 = vcmask 125952
      %4662 = vst.msk [vmem:[%s221] sm:$0xf] %vm4661, %v4597
      %4663 = vst.msk [vmem:[%s221 + $0x4] sm:$0xf] %vm4661, %v4598
      %4664 = vst.msk [vmem:[%s221 + $0x8] sm:$0xf] %vm4661, %v4599
      %4665 = vst.msk [vmem:[%s221 + $0xc] sm:$0xf] %vm4661, %v4600
      %4666 = vst.msk [vmem:[%s221 + $0x10] sm:$0xf] %vm4661, %v4601
      %4667 = vst.msk [vmem:[%s221 + $0x14] sm:$0xf] %vm4661, %v4602
      %4668 = vst.msk [vmem:[%s221 + $0x18] sm:$0xf] %vm4661, %v4603
      %4669 = vst.msk [vmem:[%s221 + $0x1c] sm:$0xf] %vm4661, %v4604
      %4670 = vst.msk [vmem:[%s221 + $0x20] sm:$0xf] %vm4661, %v4605
      %4671 = vst.msk [vmem:[%s221 + $0x24] sm:$0xf] %vm4661, %v4606
      %4672 = vst.msk [vmem:[%s221 + $0x28] sm:$0xf] %vm4661, %v4607
      %4673 = vst.msk [vmem:[%s221 + $0x2c] sm:$0xf] %vm4661, %v4608
      %4674 = vst.msk [vmem:[%s221 + $0x30] sm:$0xf] %vm4661, %v4609
      %4675 = vst.msk [vmem:[%s221 + $0x34] sm:$0xf] %vm4661, %v4610
      %4676 = vst.msk [vmem:[%s221 + $0x38] sm:$0xf] %vm4661, %v4611
      %4677 = vst.msk [vmem:[%s221 + $0x3c] sm:$0xf] %vm4661, %v4612
      %4678 = vst.msk [vmem:[%s221 + $0x40] sm:$0xf] %vm4661, %v4613
      %4679 = vst.msk [vmem:[%s221 + $0x44] sm:$0xf] %vm4661, %v4614
      %4680 = vst.msk [vmem:[%s221 + $0x48] sm:$0xf] %vm4661, %v4615
      %4681 = vst.msk [vmem:[%s221 + $0x4c] sm:$0xf] %vm4661, %v4616
      %4682 = vst.msk [vmem:[%s221 + $0x50] sm:$0xf] %vm4661, %v4617
      %4683 = vst.msk [vmem:[%s221 + $0x54] sm:$0xf] %vm4661, %v4618
      %4684 = vst.msk [vmem:[%s221 + $0x58] sm:$0xf] %vm4661, %v4619
      %4685 = vst.msk [vmem:[%s221 + $0x5c] sm:$0xf] %vm4661, %v4620
      %4686 = vst.msk [vmem:[%s221 + $0x60] sm:$0xf] %vm4661, %v4621
      %4687 = vst.msk [vmem:[%s221 + $0x64] sm:$0xf] %vm4661, %v4622
      %4688 = vst.msk [vmem:[%s221 + $0x68] sm:$0xf] %vm4661, %v4623
      %4689 = vst.msk [vmem:[%s221 + $0x6c] sm:$0xf] %vm4661, %v4624
      %4690 = vst.msk [vmem:[%s221 + $0x70] sm:$0xf] %vm4661, %v4625
      %4691 = vst.msk [vmem:[%s221 + $0x74] sm:$0xf] %vm4661, %v4626
      %4692 = vst.msk [vmem:[%s221 + $0x78] sm:$0xf] %vm4661, %v4627
      %4693 = vst.msk [vmem:[%s221 + $0x7c] sm:$0xf] %vm4661, %v4628
      %p4694 = scmp.lt.s32.totalorder %s18, 1
      %s4695 = scalar_select %p4694, %s18, 1
      %p4696 = scmp.lt.s32.totalorder %s19, 0
      %s4697 = scalar_select %p4696, %s19, 0
      %s4698 = smul.addr %s4695, 32
      %s4699 = sadd.s32 %s4697, %s4698
      %s4700 = smul.addr %s4699, 4
      %s4701 = scalar_lea.vmem %s3, %s4700
      // Predicated region
      $region33: #{got_ocr2_multimodal_projector.2} parent=31 // pred_check
        %p4702 = pneg %p124
      $region34: #{got_ocr2_multimodal_projector.2} parent=31 // pred_check_branch
        %4704 = sbr.rel (%p4702) target = $region36
      $region35: #{got_ocr2_multimodal_projector.2} parent=31 // pred_region
        _
      $region36: #{got_ocr2_multimodal_projector.2} parent=31 // pred_fallthru
        _
    $region32: #{got_ocr2_multimodal_projector.2} parent=5 // pred_fallthru
      _
    %p4705 = scmp.le.s32.totalorder 2, %s9
    // Predicated region
    $region37: #{got_ocr2_multimodal_projector.2} parent=5 // pred_check
      %p4706 = pneg %p4705
    $region38: #{got_ocr2_multimodal_projector.2} parent=5 // pred_check_branch
      %4708 = sbr.rel (%p4706) target = $region40
    $region39: #{got_ocr2_multimodal_projector.2} parent=5 // pred_region
      %s4709 = ssub.s32 %s9, 2
      // Predicated region
      $region41: #{got_ocr2_multimodal_projector.2} parent=39 // pred_check
        %p4710 = pneg %p130
      $region42: #{got_ocr2_multimodal_projector.2} parent=39 // pred_check_branch
        %4712 = sbr.rel (%p4710) target = $region44
      $region43: #{got_ocr2_multimodal_projector.2} parent=39 // pred_region
        %p4713 = scmp.lt.s32.totalorder %s20, 1
        %s4714 = scalar_select %p4713, %s20, 1
        %p4715 = scmp.lt.s32.totalorder %s21, 0
        %s4716 = scalar_select %p4715, %s21, 0
        %s4717 = smul.addr %s4714, 32
        %s4718 = sadd.s32 %s4716, %s4717
        %s4719 = smul.addr %s4718, 4
        %s4720 = scalar_lea.vmem %s3, %s4719
      $region44: #{got_ocr2_multimodal_projector.2} parent=39 // pred_fallthru
        _
    $region40: #{got_ocr2_multimodal_projector.2} parent=5 // pred_fallthru
      _
  $region6: #{got_ocr2_multimodal_projector.2} parent=0 // loop_footer
    %s13 = sadd.s32 1, %s9
  $region7: #{got_ocr2_multimodal_projector.2} parent=0 // loop_footer_branch
    %8 = sbr.rel target = $region3
  $region8: #{got_ocr2_multimodal_projector.2} parent=0 // loop_exit
    _

</llo_original>
